<compile_context>
chip_gen: v7x
topology: tpu7x:2x2x1
jax: 0.10.0
libtpu: 0.0.40
codegen_flags: <defaults>
</compile_context>

<pallas_src>
import functools

import jax
import jax.numpy as jnp
from jax.experimental import pallas as pl
from jax.experimental.pallas import tpu as pltpu


# ----------------------------------------------------------------------------
# In-kernel helpers (operate on values, not refs)
# ----------------------------------------------------------------------------
def _sel(rows, cols, cond, dtype):
    """0/1 selection matrix S[i, j] = cond(i, j), built from 2-D iota."""
    i = jax.lax.broadcasted_iota(jnp.int32, (rows, cols), 0)
    j = jax.lax.broadcasted_iota(jnp.int32, (rows, cols), 1)
    return cond(i, j).astype(dtype)


def _conv1d_valid(x, w2d, b, K, relu):
    """Valid 1D conv.  x: (L, Cin), w2d: (K*Cin, Co), b: (1, Co) -> (Lout, Co)."""
    L, Cin = x.shape
    Co = w2d.shape[-1]
    Lout = L - K + 1
    if K * Cin < 8:
        # Tiny contraction (first layer, Cin=1): VPU broadcast-multiply-add.
        acc = jnp.zeros((Lout, Co), jnp.float32)
        for k in range(K):
            for c in range(Cin):
                acc = acc + x[k:k + Lout, c:c + 1] * w2d[k * Cin + c][None, :]
        y = acc + b
    else:
        # im2col: one MXU matmul with a K*Cin-deep contraction.
        taps = [x[k:k + Lout, :] for k in range(K)]
        xcol = taps[0] if K == 1 else jnp.concatenate(taps, axis=-1)
        y = jnp.dot(xcol, w2d, preferred_element_type=jnp.float32) + b
    if relu:
        y = jnp.maximum(y, 0.0)
    return y


def _maxpool2(v):
    """MaxPool1d(2, 2) along rows via even/odd selection matmuls (exact)."""
    L, _ = v.shape
    Lh = L // 2
    se = _sel(Lh, L, lambda i, j: j == 2 * i, v.dtype)
    so = _sel(Lh, L, lambda i, j: j == 2 * i + 1, v.dtype)
    return jnp.maximum(jnp.dot(se, v, preferred_element_type=jnp.float32),
                       jnp.dot(so, v, preferred_element_type=jnp.float32))


def _upsample2(x, wu0, wu1, bu):
    """relu(ConvTranspose1d(kernel=2, stride=2)(x)).  x: (L, Cin) -> (2L, Co)."""
    L = x.shape[0]
    y0 = jnp.maximum(jnp.dot(x, wu0, preferred_element_type=jnp.float32) + bu, 0.0)
    y1 = jnp.maximum(jnp.dot(x, wu1, preferred_element_type=jnp.float32) + bu, 0.0)
    # Interleave: up[2m] = y0[m], up[2m+1] = y1[m], via 0/1 scatter matmuls
    # (rows are disjoint, so the sum is an exact placement).
    pe = _sel(2 * L, L, lambda i, j: i == 2 * j, y0.dtype)
    po = _sel(2 * L, L, lambda i, j: i == 2 * j + 1, y0.dtype)
    return (jnp.dot(pe, y0, preferred_element_type=jnp.float32)
            + jnp.dot(po, y1, preferred_element_type=jnp.float32))


def _crop(v, size_out):
    # matches ExpandBlock.crop: left = (L - size_out) // 2, keep size_out rows
    left = (v.shape[0] - size_out) // 2
    return v[left:left + size_out, :]


# ----------------------------------------------------------------------------
# Fused whole-network kernel (one batch element per grid step)
# ----------------------------------------------------------------------------
def _unet_kernel(*refs, depth):
    x_ref = refs[0]
    o_ref = refs[-1]
    it = iter(refs[1:-1])
    nxt = lambda: next(it)[...]        # load the next (tiny) weight at use site

    x = x_ref[0]                       # (L, 1)

    # contracting path (last block has no pool / no skip copy)
    copies = []
    for d in range(depth):
        w1, b1, w2, b2 = nxt(), nxt(), nxt(), nxt()
        x = _conv1d_valid(x, w1, b1, K=3, relu=True)
        x = _conv1d_valid(x, w2, b2, K=3, relu=True)
        if d < depth - 1:
            copies.append(x)
            x = _maxpool2(x)

    # expanding path
    for d in range(depth - 1):
        wu0, wu1, bu, w1, b1, w2, b2 = (nxt(), nxt(), nxt(), nxt(), nxt(),
                                        nxt(), nxt())
        up = _upsample2(x, wu0, wu1, bu)
        cat = _crop(copies[-1 - d], up.shape[0])
        z = jnp.concatenate([cat, up], axis=-1)     # channels: [crop | up]
        x = _conv1d_valid(z, w1, b1, K=3, relu=True)
        x = _conv1d_valid(x, w2, b2, K=3, relu=True)

    # final 1x1 conv (no relu)
    lw, lb = nxt(), nxt()
    out = _conv1d_valid(x, lw, lb, K=1, relu=False)  # (Lout, 1)
    o_ref[0] = out.astype(o_ref.dtype)


def _out_length(L, depth):
    for d in range(depth):
        L -= 4                      # two K=3 valid convs
        if d < depth - 1:
            L //= 2                 # maxpool
    for _ in range(depth - 1):
        L = 2 * L - 4               # upsample x2 then two K=3 valid convs
    return L                        # K=1 last conv keeps length


# ----------------------------------------------------------------------------
# Wrapper: hoist weight reshapes, build one pallas_call for the whole forward
# ----------------------------------------------------------------------------
def unet_forward(x_nlc, params):
    """x_nlc: (N, L, 1) channels-last float32.  Returns (N, Lout, 1)."""
    N, L, Cin0 = x_nlc.shape
    depth = len(params["contracting"])

    # Hoist all weight reshapes / splits out of the kernel (done once, in HBM).
    def conv2d(w):                     # (K, Cin, Co) -> (K*Cin, Co)
        K, cin, co = w.shape
        return w.reshape(K * cin, co)

    flat = []
    for p in params["contracting"]:
        flat += [conv2d(p["w1"]), p["b1"], conv2d(p["w2"]), p["b2"]]
    for p in params["expanding"]:
        flat += [p["wu"][0], p["wu"][1], p["bu"],          # two (Cin, Co) taps
                 conv2d(p["w1"]), p["b1"], conv2d(p["w2"]), p["b2"]]
    flat += [conv2d(params["last_w"]), params["last_b"]]

    Lout = _out_length(L, depth)
    w_map = lambda n: (0, 0)           # all flattened weights are 2-D

    kernel = functools.partial(_unet_kernel, depth=depth)
    in_specs = [pl.BlockSpec((1, L, Cin0), lambda n: (n, 0, 0))]
    in_specs += [pl.BlockSpec(a.shape, w_map) for a in flat]

    return pl.pallas_call(
        kernel,
        out_shape=jax.ShapeDtypeStruct((N, Lout, 1), x_nlc.dtype),
        grid=(N,),
        in_specs=in_specs,
        out_specs=pl.BlockSpec((1, Lout, 1), lambda n: (n, 0, 0)),
        compiler_params=pltpu.CompilerParams(
            dimension_semantics=("parallel",)),   # both v7x TensorCores get work
    )(x_nlc, *flat)


# ----------------------------------------------------------------------------
# Deterministic parameter init (synthetic weights, PyTorch-style uniform bound)
# ----------------------------------------------------------------------------
def init_unet_params(key, depth=3, first_conv_channels=8):
    key_box = [key]

    def nxt():
        key_box[0], sub = jax.random.split(key_box[0])
        return sub

    def conv_params(k, cin, cout):
        bound = 1.0 / float(jnp.sqrt(cin * k))
        w = jax.random.uniform(nxt(), (k, cin, cout), jnp.float32, -bound, bound)
        b = jax.random.uniform(nxt(), (1, cout), jnp.float32, -bound, bound)
        return w, b

    params = {"contracting": [], "expanding": []}

    in_ch, out_ch = 1, first_conv_channels
    for _ in range(depth):
        w1, b1 = conv_params(3, in_ch, out_ch)
        w2, b2 = conv_params(3, out_ch, out_ch)
        params["contracting"].append({"w1": w1, "b1": b1, "w2": w2, "b2": b2})
        in_ch = out_ch
        out_ch *= 2

    in_x = out_ch // 2
    for _ in range(depth - 1):
        wu, bu = conv_params(2, in_x, in_x // 2)   # ConvTranspose1d(in_x, in_x//2, 2, 2)
        w1, b1 = conv_params(3, in_x, in_x // 2)
        w2, b2 = conv_params(3, in_x // 2, in_x // 2)
        params["expanding"].append(
            {"wu": wu, "bu": bu, "w1": w1, "b1": b1, "w2": w2, "b2": b2})
        in_x //= 2

    lw, lb = conv_params(1, in_x, 1)               # Conv1d(in_x, 1, 1)
    params["last_w"], params["last_b"] = lw, lb
    return params


# ----------------------------------------------------------------------------
if __name__ == "__main__":
    key = jax.random.PRNGKey(0)
    k_param, k_x = jax.random.split(key)

    depth, first = 3, 8          # small UNet config (same forward structure)
    N, L = 2, 64                 # batch=2, seq length=64, 1 input channel

    params = init_unet_params(k_param, depth=depth, first_conv_channels=first)

    x_ncw = jax.random.normal(k_x, (N, 1, L), jnp.float32)   # PyTorch NCW
    x = jnp.transpose(x_ncw, (0, 2, 1))                      # -> (N, L, C)

    fwd = jax.jit(unet_forward)
    out = fwd(x, params)                                     # (N, Lout, 1)
    out_ncw = jnp.transpose(out, (0, 2, 1))                  # -> (N, 1, Lout)

    jax.block_until_ready(out_ncw)
    assert out_ncw.shape == (N, 1, _out_length(L, depth)), out_ncw.shape
    print("KERNEL_OK")
</pallas_src>

<mosaic_0001>
module attributes {stable_mosaic.version = 11 : i64} {
  func.func @_unet_kernel(%arg0: i32, %arg1: memref<1x64x1xf32, #tpu.memory_space<vmem>>, %arg2: memref<3x8xf32, #tpu.memory_space<vmem>>, %arg3: memref<1x8xf32, #tpu.memory_space<vmem>>, %arg4: memref<24x8xf32, #tpu.memory_space<vmem>>, %arg5: memref<1x8xf32, #tpu.memory_space<vmem>>, %arg6: memref<24x16xf32, #tpu.memory_space<vmem>>, %arg7: memref<1x16xf32, #tpu.memory_space<vmem>>, %arg8: memref<48x16xf32, #tpu.memory_space<vmem>>, %arg9: memref<1x16xf32, #tpu.memory_space<vmem>>, %arg10: memref<48x32xf32, #tpu.memory_space<vmem>>, %arg11: memref<1x32xf32, #tpu.memory_space<vmem>>, %arg12: memref<96x32xf32, #tpu.memory_space<vmem>>, %arg13: memref<1x32xf32, #tpu.memory_space<vmem>>, %arg14: memref<32x16xf32, #tpu.memory_space<vmem>>, %arg15: memref<32x16xf32, #tpu.memory_space<vmem>>, %arg16: memref<1x16xf32, #tpu.memory_space<vmem>>, %arg17: memref<96x16xf32, #tpu.memory_space<vmem>>, %arg18: memref<1x16xf32, #tpu.memory_space<vmem>>, %arg19: memref<48x16xf32, #tpu.memory_space<vmem>>, %arg20: memref<1x16xf32, #tpu.memory_space<vmem>>, %arg21: memref<16x8xf32, #tpu.memory_space<vmem>>, %arg22: memref<16x8xf32, #tpu.memory_space<vmem>>, %arg23: memref<1x8xf32, #tpu.memory_space<vmem>>, %arg24: memref<48x8xf32, #tpu.memory_space<vmem>>, %arg25: memref<1x8xf32, #tpu.memory_space<vmem>>, %arg26: memref<24x8xf32, #tpu.memory_space<vmem>>, %arg27: memref<1x8xf32, #tpu.memory_space<vmem>>, %arg28: memref<8x1xf32, #tpu.memory_space<vmem>>, %arg29: memref<1x1xf32, #tpu.memory_space<vmem>>, %arg30: memref<1x24x1xf32, #tpu.memory_space<vmem>>) attributes {dimension_semantics = [#tpu.dimension_semantics<parallel>], iteration_bounds = array<i64: 2>, scalar_prefetch = 0 : i64, scratch_operands = 0 : i64, tpu.core_type = #tpu.core_type<tc>, window_params = [{transform_indices = @transform_0, window_bounds = array<i64: 1, 64, 1>}, {pipeline_mode = #tpu.pipeline_mode<synchronous>, transform_indices = @transform_1, window_bounds = array<i64: 3, 8>}, {pipeline_mode = #tpu.pipeline_mode<synchronous>, transform_indices = @transform_2, window_bounds = array<i64: 1, 8>}, {pipeline_mode = #tpu.pipeline_mode<synchronous>, transform_indices = @transform_3, window_bounds = array<i64: 24, 8>}, {pipeline_mode = #tpu.pipeline_mode<synchronous>, transform_indices = @transform_4, window_bounds = array<i64: 1, 8>}, {pipeline_mode = #tpu.pipeline_mode<synchronous>, transform_indices = @transform_5, window_bounds = array<i64: 24, 16>}, {pipeline_mode = #tpu.pipeline_mode<synchronous>, transform_indices = @transform_6, window_bounds = array<i64: 1, 16>}, {pipeline_mode = #tpu.pipeline_mode<synchronous>, transform_indices = @transform_7, window_bounds = array<i64: 48, 16>}, {pipeline_mode = #tpu.pipeline_mode<synchronous>, transform_indices = @transform_8, window_bounds = array<i64: 1, 16>}, {pipeline_mode = #tpu.pipeline_mode<synchronous>, transform_indices = @transform_9, window_bounds = array<i64: 48, 32>}, {pipeline_mode = #tpu.pipeline_mode<synchronous>, transform_indices = @transform_10, window_bounds = array<i64: 1, 32>}, {pipeline_mode = #tpu.pipeline_mode<synchronous>, transform_indices = @transform_11, window_bounds = array<i64: 96, 32>}, {pipeline_mode = #tpu.pipeline_mode<synchronous>, transform_indices = @transform_12, window_bounds = array<i64: 1, 32>}, {pipeline_mode = #tpu.pipeline_mode<synchronous>, transform_indices = @transform_13, window_bounds = array<i64: 32, 16>}, {pipeline_mode = #tpu.pipeline_mode<synchronous>, transform_indices = @transform_14, window_bounds = array<i64: 32, 16>}, {pipeline_mode = #tpu.pipeline_mode<synchronous>, transform_indices = @transform_15, window_bounds = array<i64: 1, 16>}, {pipeline_mode = #tpu.pipeline_mode<synchronous>, transform_indices = @transform_16, window_bounds = array<i64: 96, 16>}, {pipeline_mode = #tpu.pipeline_mode<synchronous>, transform_indices = @transform_17, window_bounds = array<i64: 1, 16>}, {pipeline_mode = #tpu.pipeline_mode<synchronous>, transform_indices = @transform_18, window_bounds = array<i64: 48, 16>}, {pipeline_mode = #tpu.pipeline_mode<synchronous>, transform_indices = @transform_19, window_bounds = array<i64: 1, 16>}, {pipeline_mode = #tpu.pipeline_mode<synchronous>, transform_indices = @transform_20, window_bounds = array<i64: 16, 8>}, {pipeline_mode = #tpu.pipeline_mode<synchronous>, transform_indices = @transform_21, window_bounds = array<i64: 16, 8>}, {pipeline_mode = #tpu.pipeline_mode<synchronous>, transform_indices = @transform_22, window_bounds = array<i64: 1, 8>}, {pipeline_mode = #tpu.pipeline_mode<synchronous>, transform_indices = @transform_23, window_bounds = array<i64: 48, 8>}, {pipeline_mode = #tpu.pipeline_mode<synchronous>, transform_indices = @transform_24, window_bounds = array<i64: 1, 8>}, {pipeline_mode = #tpu.pipeline_mode<synchronous>, transform_indices = @transform_25, window_bounds = array<i64: 24, 8>}, {pipeline_mode = #tpu.pipeline_mode<synchronous>, transform_indices = @transform_26, window_bounds = array<i64: 1, 8>}, {pipeline_mode = #tpu.pipeline_mode<synchronous>, transform_indices = @transform_27, window_bounds = array<i64: 8, 1>}, {pipeline_mode = #tpu.pipeline_mode<synchronous>, transform_indices = @transform_28, window_bounds = array<i64: 1, 1>}, {transform_indices = @transform_29, window_bounds = array<i64: 1, 24, 1>}]} {
    %c0 = arith.constant 0 : index
    %c0_0 = arith.constant 0 : index
    %c0_1 = arith.constant 0 : index
    %0 = vector.load %arg1[%c0, %c0_0, %c0_1] : memref<1x64x1xf32, #tpu.memory_space<vmem>>, vector<1x64x1xf32>
    %1 = vector.shape_cast %0 : vector<1x64x1xf32> to vector<64x1xf32>
    %c0_2 = arith.constant 0 : index
    %c0_3 = arith.constant 0 : index
    %2 = vector.load %arg2[%c0_2, %c0_3] : memref<3x8xf32, #tpu.memory_space<vmem>>, vector<3x8xf32>
    %c0_4 = arith.constant 0 : index
    %c0_5 = arith.constant 0 : index
    %3 = vector.load %arg3[%c0_4, %c0_5] : memref<1x8xf32, #tpu.memory_space<vmem>>, vector<1x8xf32>
    %c0_6 = arith.constant 0 : index
    %c0_7 = arith.constant 0 : index
    %4 = vector.load %arg4[%c0_6, %c0_7] : memref<24x8xf32, #tpu.memory_space<vmem>>, vector<24x8xf32>
    %c0_8 = arith.constant 0 : index
    %c0_9 = arith.constant 0 : index
    %5 = vector.load %arg5[%c0_8, %c0_9] : memref<1x8xf32, #tpu.memory_space<vmem>>, vector<1x8xf32>
    %cst = arith.constant 0.000000e+00 : f32
    %6 = vector.broadcast %cst : f32 to vector<62x8xf32>
    %7 = vector.extract_strided_slice %1 {offsets = [0, 0], sizes = [62, 1], strides = [1, 1]} : vector<64x1xf32> to vector<62x1xf32>
    %8 = vector.extract_strided_slice %2 {offsets = [0, 0], sizes = [1, 8], strides = [1, 1]} : vector<3x8xf32> to vector<1x8xf32>
    %9 = vector.shape_cast %8 : vector<1x8xf32> to vector<8xf32>
    %10 = vector.shape_cast %9 : vector<8xf32> to vector<1x8xf32>
    %11 = vector.broadcast %7 : vector<62x1xf32> to vector<62x8xf32>
    %12 = vector.broadcast %10 : vector<1x8xf32> to vector<62x8xf32>
    %13 = arith.mulf %11, %12 : vector<62x8xf32>
    %14 = arith.addf %6, %13 : vector<62x8xf32>
    %15 = vector.extract_strided_slice %1 {offsets = [1, 0], sizes = [62, 1], strides = [1, 1]} : vector<64x1xf32> to vector<62x1xf32>
    %16 = vector.extract_strided_slice %2 {offsets = [1, 0], sizes = [1, 8], strides = [1, 1]} : vector<3x8xf32> to vector<1x8xf32>
    %17 = vector.shape_cast %16 : vector<1x8xf32> to vector<8xf32>
    %18 = vector.shape_cast %17 : vector<8xf32> to vector<1x8xf32>
    %19 = vector.broadcast %15 : vector<62x1xf32> to vector<62x8xf32>
    %20 = vector.broadcast %18 : vector<1x8xf32> to vector<62x8xf32>
    %21 = arith.mulf %19, %20 : vector<62x8xf32>
    %22 = arith.addf %14, %21 : vector<62x8xf32>
    %23 = vector.extract_strided_slice %1 {offsets = [2, 0], sizes = [62, 1], strides = [1, 1]} : vector<64x1xf32> to vector<62x1xf32>
    %24 = vector.extract_strided_slice %2 {offsets = [2, 0], sizes = [1, 8], strides = [1, 1]} : vector<3x8xf32> to vector<1x8xf32>
    %25 = vector.shape_cast %24 : vector<1x8xf32> to vector<8xf32>
    %26 = vector.shape_cast %25 : vector<8xf32> to vector<1x8xf32>
    %27 = vector.broadcast %23 : vector<62x1xf32> to vector<62x8xf32>
    %28 = vector.broadcast %26 : vector<1x8xf32> to vector<62x8xf32>
    %29 = arith.mulf %27, %28 : vector<62x8xf32>
    %30 = arith.addf %22, %29 : vector<62x8xf32>
    %31 = vector.broadcast %3 : vector<1x8xf32> to vector<62x8xf32>
    %32 = arith.addf %30, %31 : vector<62x8xf32>
    %cst_10 = arith.constant 0.000000e+00 : f32
    %33 = vector.broadcast %cst_10 : f32 to vector<62x8xf32>
    %34 = arith.maximumf %32, %33 : vector<62x8xf32>
    %35 = vector.extract_strided_slice %34 {offsets = [0, 0], sizes = [60, 8], strides = [1, 1]} : vector<62x8xf32> to vector<60x8xf32>
    %36 = vector.extract_strided_slice %34 {offsets = [1, 0], sizes = [60, 8], strides = [1, 1]} : vector<62x8xf32> to vector<60x8xf32>
    %37 = vector.extract_strided_slice %34 {offsets = [2, 0], sizes = [60, 8], strides = [1, 1]} : vector<62x8xf32> to vector<60x8xf32>
    %38 = tpu.concatenate %35, %36, %37 in 1 : vector<60x8xf32>, vector<60x8xf32>, vector<60x8xf32> -> vector<60x24xf32>
    %cst_11 = arith.constant dense<0.000000e+00> : vector<60x8xf32>
    %39 = tpu.matmul %38, %4, %cst_11 {dimension_numbers = #tpu.dot_dimension_numbers<[1], [0], [0], [1], [0, 0, 1, 1], [], []>} : vector<60x24xf32>, vector<24x8xf32>, vector<60x8xf32> -> vector<60x8xf32>
    %40 = vector.broadcast %5 : vector<1x8xf32> to vector<60x8xf32>
    %41 = arith.addf %39, %40 : vector<60x8xf32>
    %cst_12 = arith.constant 0.000000e+00 : f32
    %42 = vector.broadcast %cst_12 : f32 to vector<60x8xf32>
    %43 = arith.maximumf %41, %42 : vector<60x8xf32>
    %44 = tpu.iota {dimensions = array<i32: 0>} : vector<30x60xi32>
    %45 = tpu.iota {dimensions = array<i32: 1>} : vector<30x60xi32>
    %c2_i32 = arith.constant 2 : i32
    %46 = vector.broadcast %c2_i32 : i32 to vector<30x60xi32>
    %47 = arith.muli %46, %44 : vector<30x60xi32>
    %48 = arith.cmpi eq, %45, %47 : vector<30x60xi32>
    %49 = arith.extui %48 : vector<30x60xi1> to vector<30x60xi32>
    %50 = arith.sitofp %49 : vector<30x60xi32> to vector<30x60xf32>
    %51 = tpu.iota {dimensions = array<i32: 0>} : vector<30x60xi32>
    %52 = tpu.iota {dimensions = array<i32: 1>} : vector<30x60xi32>
    %c2_i32_13 = arith.constant 2 : i32
    %53 = vector.broadcast %c2_i32_13 : i32 to vector<30x60xi32>
    %54 = arith.muli %53, %51 : vector<30x60xi32>
    %c1_i32 = arith.constant 1 : i32
    %55 = vector.broadcast %c1_i32 : i32 to vector<30x60xi32>
    %56 = arith.addi %54, %55 : vector<30x60xi32>
    %57 = arith.cmpi eq, %52, %56 : vector<30x60xi32>
    %58 = arith.extui %57 : vector<30x60xi1> to vector<30x60xi32>
    %59 = arith.sitofp %58 : vector<30x60xi32> to vector<30x60xf32>
    %cst_14 = arith.constant dense<0.000000e+00> : vector<30x8xf32>
    %60 = tpu.matmul %50, %43, %cst_14 {dimension_numbers = #tpu.dot_dimension_numbers<[1], [0], [0], [1], [0, 0, 1, 1], [], []>} : vector<30x60xf32>, vector<60x8xf32>, vector<30x8xf32> -> vector<30x8xf32>
    %cst_15 = arith.constant dense<0.000000e+00> : vector<30x8xf32>
    %61 = tpu.matmul %59, %43, %cst_15 {dimension_numbers = #tpu.dot_dimension_numbers<[1], [0], [0], [1], [0, 0, 1, 1], [], []>} : vector<30x60xf32>, vector<60x8xf32>, vector<30x8xf32> -> vector<30x8xf32>
    %62 = arith.maximumf %60, %61 : vector<30x8xf32>
    %c0_16 = arith.constant 0 : index
    %c0_17 = arith.constant 0 : index
    %63 = vector.load %arg6[%c0_16, %c0_17] : memref<24x16xf32, #tpu.memory_space<vmem>>, vector<24x16xf32>
    %c0_18 = arith.constant 0 : index
    %c0_19 = arith.constant 0 : index
    %64 = vector.load %arg7[%c0_18, %c0_19] : memref<1x16xf32, #tpu.memory_space<vmem>>, vector<1x16xf32>
    %c0_20 = arith.constant 0 : index
    %c0_21 = arith.constant 0 : index
    %65 = vector.load %arg8[%c0_20, %c0_21] : memref<48x16xf32, #tpu.memory_space<vmem>>, vector<48x16xf32>
    %c0_22 = arith.constant 0 : index
    %c0_23 = arith.constant 0 : index
    %66 = vector.load %arg9[%c0_22, %c0_23] : memref<1x16xf32, #tpu.memory_space<vmem>>, vector<1x16xf32>
    %67 = vector.extract_strided_slice %62 {offsets = [0, 0], sizes = [28, 8], strides = [1, 1]} : vector<30x8xf32> to vector<28x8xf32>
    %68 = vector.extract_strided_slice %62 {offsets = [1, 0], sizes = [28, 8], strides = [1, 1]} : vector<30x8xf32> to vector<28x8xf32>
    %69 = vector.extract_strided_slice %62 {offsets = [2, 0], sizes = [28, 8], strides = [1, 1]} : vector<30x8xf32> to vector<28x8xf32>
    %70 = tpu.concatenate %67, %68, %69 in 1 : vector<28x8xf32>, vector<28x8xf32>, vector<28x8xf32> -> vector<28x24xf32>
    %cst_24 = arith.constant dense<0.000000e+00> : vector<28x16xf32>
    %71 = tpu.matmul %70, %63, %cst_24 {dimension_numbers = #tpu.dot_dimension_numbers<[1], [0], [0], [1], [0, 0, 1, 1], [], []>} : vector<28x24xf32>, vector<24x16xf32>, vector<28x16xf32> -> vector<28x16xf32>
    %72 = vector.broadcast %64 : vector<1x16xf32> to vector<28x16xf32>
    %73 = arith.addf %71, %72 : vector<28x16xf32>
    %cst_25 = arith.constant 0.000000e+00 : f32
    %74 = vector.broadcast %cst_25 : f32 to vector<28x16xf32>
    %75 = arith.maximumf %73, %74 : vector<28x16xf32>
    %76 = vector.extract_strided_slice %75 {offsets = [0, 0], sizes = [26, 16], strides = [1, 1]} : vector<28x16xf32> to vector<26x16xf32>
    %77 = vector.extract_strided_slice %75 {offsets = [1, 0], sizes = [26, 16], strides = [1, 1]} : vector<28x16xf32> to vector<26x16xf32>
    %78 = vector.extract_strided_slice %75 {offsets = [2, 0], sizes = [26, 16], strides = [1, 1]} : vector<28x16xf32> to vector<26x16xf32>
    %79 = tpu.concatenate %76, %77, %78 in 1 : vector<26x16xf32>, vector<26x16xf32>, vector<26x16xf32> -> vector<26x48xf32>
    %cst_26 = arith.constant dense<0.000000e+00> : vector<26x16xf32>
    %80 = tpu.matmul %79, %65, %cst_26 {dimension_numbers = #tpu.dot_dimension_numbers<[1], [0], [0], [1], [0, 0, 1, 1], [], []>} : vector<26x48xf32>, vector<48x16xf32>, vector<26x16xf32> -> vector<26x16xf32>
    %81 = vector.broadcast %66 : vector<1x16xf32> to vector<26x16xf32>
    %82 = arith.addf %80, %81 : vector<26x16xf32>
    %cst_27 = arith.constant 0.000000e+00 : f32
    %83 = vector.broadcast %cst_27 : f32 to vector<26x16xf32>
    %84 = arith.maximumf %82, %83 : vector<26x16xf32>
    %85 = tpu.iota {dimensions = array<i32: 0>} : vector<13x26xi32>
    %86 = tpu.iota {dimensions = array<i32: 1>} : vector<13x26xi32>
    %c2_i32_28 = arith.constant 2 : i32
    %87 = vector.broadcast %c2_i32_28 : i32 to vector<13x26xi32>
    %88 = arith.muli %87, %85 : vector<13x26xi32>
    %89 = arith.cmpi eq, %86, %88 : vector<13x26xi32>
    %90 = arith.extui %89 : vector<13x26xi1> to vector<13x26xi32>
    %91 = arith.sitofp %90 : vector<13x26xi32> to vector<13x26xf32>
    %92 = tpu.iota {dimensions = array<i32: 0>} : vector<13x26xi32>
    %93 = tpu.iota {dimensions = array<i32: 1>} : vector<13x26xi32>
    %c2_i32_29 = arith.constant 2 : i32
    %94 = vector.broadcast %c2_i32_29 : i32 to vector<13x26xi32>
    %95 = arith.muli %94, %92 : vector<13x26xi32>
    %c1_i32_30 = arith.constant 1 : i32
    %96 = vector.broadcast %c1_i32_30 : i32 to vector<13x26xi32>
    %97 = arith.addi %95, %96 : vector<13x26xi32>
    %98 = arith.cmpi eq, %93, %97 : vector<13x26xi32>
    %99 = arith.extui %98 : vector<13x26xi1> to vector<13x26xi32>
    %100 = arith.sitofp %99 : vector<13x26xi32> to vector<13x26xf32>
    %cst_31 = arith.constant dense<0.000000e+00> : vector<13x16xf32>
    %101 = tpu.matmul %91, %84, %cst_31 {dimension_numbers = #tpu.dot_dimension_numbers<[1], [0], [0], [1], [0, 0, 1, 1], [], []>} : vector<13x26xf32>, vector<26x16xf32>, vector<13x16xf32> -> vector<13x16xf32>
    %cst_32 = arith.constant dense<0.000000e+00> : vector<13x16xf32>
    %102 = tpu.matmul %100, %84, %cst_32 {dimension_numbers = #tpu.dot_dimension_numbers<[1], [0], [0], [1], [0, 0, 1, 1], [], []>} : vector<13x26xf32>, vector<26x16xf32>, vector<13x16xf32> -> vector<13x16xf32>
    %103 = arith.maximumf %101, %102 : vector<13x16xf32>
    %c0_33 = arith.constant 0 : index
    %c0_34 = arith.constant 0 : index
    %104 = vector.load %arg10[%c0_33, %c0_34] : memref<48x32xf32, #tpu.memory_space<vmem>>, vector<48x32xf32>
    %c0_35 = arith.constant 0 : index
    %c0_36 = arith.constant 0 : index
    %105 = vector.load %arg11[%c0_35, %c0_36] : memref<1x32xf32, #tpu.memory_space<vmem>>, vector<1x32xf32>
    %c0_37 = arith.constant 0 : index
    %c0_38 = arith.constant 0 : index
    %106 = vector.load %arg12[%c0_37, %c0_38] : memref<96x32xf32, #tpu.memory_space<vmem>>, vector<96x32xf32>
    %c0_39 = arith.constant 0 : index
    %c0_40 = arith.constant 0 : index
    %107 = vector.load %arg13[%c0_39, %c0_40] : memref<1x32xf32, #tpu.memory_space<vmem>>, vector<1x32xf32>
    %108 = vector.extract_strided_slice %103 {offsets = [0, 0], sizes = [11, 16], strides = [1, 1]} : vector<13x16xf32> to vector<11x16xf32>
    %109 = vector.extract_strided_slice %103 {offsets = [1, 0], sizes = [11, 16], strides = [1, 1]} : vector<13x16xf32> to vector<11x16xf32>
    %110 = vector.extract_strided_slice %103 {offsets = [2, 0], sizes = [11, 16], strides = [1, 1]} : vector<13x16xf32> to vector<11x16xf32>
    %111 = tpu.concatenate %108, %109, %110 in 1 : vector<11x16xf32>, vector<11x16xf32>, vector<11x16xf32> -> vector<11x48xf32>
    %cst_41 = arith.constant dense<0.000000e+00> : vector<11x32xf32>
    %112 = tpu.matmul %111, %104, %cst_41 {dimension_numbers = #tpu.dot_dimension_numbers<[1], [0], [0], [1], [0, 0, 1, 1], [], []>} : vector<11x48xf32>, vector<48x32xf32>, vector<11x32xf32> -> vector<11x32xf32>
    %113 = vector.broadcast %105 : vector<1x32xf32> to vector<11x32xf32>
    %114 = arith.addf %112, %113 : vector<11x32xf32>
    %cst_42 = arith.constant 0.000000e+00 : f32
    %115 = vector.broadcast %cst_42 : f32 to vector<11x32xf32>
    %116 = arith.maximumf %114, %115 : vector<11x32xf32>
    %117 = vector.extract_strided_slice %116 {offsets = [0, 0], sizes = [9, 32], strides = [1, 1]} : vector<11x32xf32> to vector<9x32xf32>
    %118 = vector.extract_strided_slice %116 {offsets = [1, 0], sizes = [9, 32], strides = [1, 1]} : vector<11x32xf32> to vector<9x32xf32>
    %119 = vector.extract_strided_slice %116 {offsets = [2, 0], sizes = [9, 32], strides = [1, 1]} : vector<11x32xf32> to vector<9x32xf32>
    %120 = tpu.concatenate %117, %118, %119 in 1 : vector<9x32xf32>, vector<9x32xf32>, vector<9x32xf32> -> vector<9x96xf32>
    %cst_43 = arith.constant dense<0.000000e+00> : vector<9x32xf32>
    %121 = tpu.matmul %120, %106, %cst_43 {dimension_numbers = #tpu.dot_dimension_numbers<[1], [0], [0], [1], [0, 0, 1, 1], [], []>} : vector<9x96xf32>, vector<96x32xf32>, vector<9x32xf32> -> vector<9x32xf32>
    %122 = vector.broadcast %107 : vector<1x32xf32> to vector<9x32xf32>
    %123 = arith.addf %121, %122 : vector<9x32xf32>
    %cst_44 = arith.constant 0.000000e+00 : f32
    %124 = vector.broadcast %cst_44 : f32 to vector<9x32xf32>
    %125 = arith.maximumf %123, %124 : vector<9x32xf32>
    %c0_45 = arith.constant 0 : index
    %c0_46 = arith.constant 0 : index
    %126 = vector.load %arg14[%c0_45, %c0_46] : memref<32x16xf32, #tpu.memory_space<vmem>>, vector<32x16xf32>
    %c0_47 = arith.constant 0 : index
    %c0_48 = arith.constant 0 : index
    %127 = vector.load %arg15[%c0_47, %c0_48] : memref<32x16xf32, #tpu.memory_space<vmem>>, vector<32x16xf32>
    %c0_49 = arith.constant 0 : index
    %c0_50 = arith.constant 0 : index
    %128 = vector.load %arg16[%c0_49, %c0_50] : memref<1x16xf32, #tpu.memory_space<vmem>>, vector<1x16xf32>
    %c0_51 = arith.constant 0 : index
    %c0_52 = arith.constant 0 : index
    %129 = vector.load %arg17[%c0_51, %c0_52] : memref<96x16xf32, #tpu.memory_space<vmem>>, vector<96x16xf32>
    %c0_53 = arith.constant 0 : index
    %c0_54 = arith.constant 0 : index
    %130 = vector.load %arg18[%c0_53, %c0_54] : memref<1x16xf32, #tpu.memory_space<vmem>>, vector<1x16xf32>
    %c0_55 = arith.constant 0 : index
    %c0_56 = arith.constant 0 : index
    %131 = vector.load %arg19[%c0_55, %c0_56] : memref<48x16xf32, #tpu.memory_space<vmem>>, vector<48x16xf32>
    %c0_57 = arith.constant 0 : index
    %c0_58 = arith.constant 0 : index
    %132 = vector.load %arg20[%c0_57, %c0_58] : memref<1x16xf32, #tpu.memory_space<vmem>>, vector<1x16xf32>
    %cst_59 = arith.constant dense<0.000000e+00> : vector<9x16xf32>
    %133 = tpu.matmul %125, %126, %cst_59 {dimension_numbers = #tpu.dot_dimension_numbers<[1], [0], [0], [1], [0, 0, 1, 1], [], []>} : vector<9x32xf32>, vector<32x16xf32>, vector<9x16xf32> -> vector<9x16xf32>
    %134 = vector.broadcast %128 : vector<1x16xf32> to vector<9x16xf32>
    %135 = arith.addf %133, %134 : vector<9x16xf32>
    %cst_60 = arith.constant 0.000000e+00 : f32
    %136 = vector.broadcast %cst_60 : f32 to vector<9x16xf32>
    %137 = arith.maximumf %135, %136 : vector<9x16xf32>
    %cst_61 = arith.constant dense<0.000000e+00> : vector<9x16xf32>
    %138 = tpu.matmul %125, %127, %cst_61 {dimension_numbers = #tpu.dot_dimension_numbers<[1], [0], [0], [1], [0, 0, 1, 1], [], []>} : vector<9x32xf32>, vector<32x16xf32>, vector<9x16xf32> -> vector<9x16xf32>
    %139 = vector.broadcast %128 : vector<1x16xf32> to vector<9x16xf32>
    %140 = arith.addf %138, %139 : vector<9x16xf32>
    %cst_62 = arith.constant 0.000000e+00 : f32
    %141 = vector.broadcast %cst_62 : f32 to vector<9x16xf32>
    %142 = arith.maximumf %140, %141 : vector<9x16xf32>
    %143 = tpu.iota {dimensions = array<i32: 0>} : vector<18x9xi32>
    %144 = tpu.iota {dimensions = array<i32: 1>} : vector<18x9xi32>
    %c2_i32_63 = arith.constant 2 : i32
    %145 = vector.broadcast %c2_i32_63 : i32 to vector<18x9xi32>
    %146 = arith.muli %145, %144 : vector<18x9xi32>
    %147 = arith.cmpi eq, %143, %146 : vector<18x9xi32>
    %148 = arith.extui %147 : vector<18x9xi1> to vector<18x9xi32>
    %149 = arith.sitofp %148 : vector<18x9xi32> to vector<18x9xf32>
    %150 = tpu.iota {dimensions = array<i32: 0>} : vector<18x9xi32>
    %151 = tpu.iota {dimensions = array<i32: 1>} : vector<18x9xi32>
    %c2_i32_64 = arith.constant 2 : i32
    %152 = vector.broadcast %c2_i32_64 : i32 to vector<18x9xi32>
    %153 = arith.muli %152, %151 : vector<18x9xi32>
    %c1_i32_65 = arith.constant 1 : i32
    %154 = vector.broadcast %c1_i32_65 : i32 to vector<18x9xi32>
    %155 = arith.addi %153, %154 : vector<18x9xi32>
    %156 = arith.cmpi eq, %150, %155 : vector<18x9xi32>
    %157 = arith.extui %156 : vector<18x9xi1> to vector<18x9xi32>
    %158 = arith.sitofp %157 : vector<18x9xi32> to vector<18x9xf32>
    %cst_66 = arith.constant dense<0.000000e+00> : vector<18x16xf32>
    %159 = tpu.matmul %149, %137, %cst_66 {dimension_numbers = #tpu.dot_dimension_numbers<[1], [0], [0], [1], [0, 0, 1, 1], [], []>} : vector<18x9xf32>, vector<9x16xf32>, vector<18x16xf32> -> vector<18x16xf32>
    %cst_67 = arith.constant dense<0.000000e+00> : vector<18x16xf32>
    %160 = tpu.matmul %158, %142, %cst_67 {dimension_numbers = #tpu.dot_dimension_numbers<[1], [0], [0], [1], [0, 0, 1, 1], [], []>} : vector<18x9xf32>, vector<9x16xf32>, vector<18x16xf32> -> vector<18x16xf32>
    %161 = arith.addf %159, %160 : vector<18x16xf32>
    %162 = vector.extract_strided_slice %84 {offsets = [4, 0], sizes = [18, 16], strides = [1, 1]} : vector<26x16xf32> to vector<18x16xf32>
    %163 = tpu.concatenate %162, %161 in 1 : vector<18x16xf32>, vector<18x16xf32> -> vector<18x32xf32>
    %164 = vector.extract_strided_slice %163 {offsets = [0, 0], sizes = [16, 32], strides = [1, 1]} : vector<18x32xf32> to vector<16x32xf32>
    %165 = vector.extract_strided_slice %163 {offsets = [1, 0], sizes = [16, 32], strides = [1, 1]} : vector<18x32xf32> to vector<16x32xf32>
    %166 = vector.extract_strided_slice %163 {offsets = [2, 0], sizes = [16, 32], strides = [1, 1]} : vector<18x32xf32> to vector<16x32xf32>
    %167 = tpu.concatenate %164, %165, %166 in 1 : vector<16x32xf32>, vector<16x32xf32>, vector<16x32xf32> -> vector<16x96xf32>
    %cst_68 = arith.constant dense<0.000000e+00> : vector<16x16xf32>
    %168 = tpu.matmul %167, %129, %cst_68 {dimension_numbers = #tpu.dot_dimension_numbers<[1], [0], [0], [1], [0, 0, 1, 1], [], []>} : vector<16x96xf32>, vector<96x16xf32>, vector<16x16xf32> -> vector<16x16xf32>
    %169 = vector.broadcast %130 : vector<1x16xf32> to vector<16x16xf32>
    %170 = arith.addf %168, %169 : vector<16x16xf32>
    %cst_69 = arith.constant 0.000000e+00 : f32
    %171 = vector.broadcast %cst_69 : f32 to vector<16x16xf32>
    %172 = arith.maximumf %170, %171 : vector<16x16xf32>
    %173 = vector.extract_strided_slice %172 {offsets = [0, 0], sizes = [14, 16], strides = [1, 1]} : vector<16x16xf32> to vector<14x16xf32>
    %174 = vector.extract_strided_slice %172 {offsets = [1, 0], sizes = [14, 16], strides = [1, 1]} : vector<16x16xf32> to vector<14x16xf32>
    %175 = vector.extract_strided_slice %172 {offsets = [2, 0], sizes = [14, 16], strides = [1, 1]} : vector<16x16xf32> to vector<14x16xf32>
    %176 = tpu.concatenate %173, %174, %175 in 1 : vector<14x16xf32>, vector<14x16xf32>, vector<14x16xf32> -> vector<14x48xf32>
    %cst_70 = arith.constant dense<0.000000e+00> : vector<14x16xf32>
    %177 = tpu.matmul %176, %131, %cst_70 {dimension_numbers = #tpu.dot_dimension_numbers<[1], [0], [0], [1], [0, 0, 1, 1], [], []>} : vector<14x48xf32>, vector<48x16xf32>, vector<14x16xf32> -> vector<14x16xf32>
    %178 = vector.broadcast %132 : vector<1x16xf32> to vector<14x16xf32>
    %179 = arith.addf %177, %178 : vector<14x16xf32>
    %cst_71 = arith.constant 0.000000e+00 : f32
    %180 = vector.broadcast %cst_71 : f32 to vector<14x16xf32>
    %181 = arith.maximumf %179, %180 : vector<14x16xf32>
    %c0_72 = arith.constant 0 : index
    %c0_73 = arith.constant 0 : index
    %182 = vector.load %arg21[%c0_72, %c0_73] : memref<16x8xf32, #tpu.memory_space<vmem>>, vector<16x8xf32>
    %c0_74 = arith.constant 0 : index
    %c0_75 = arith.constant 0 : index
    %183 = vector.load %arg22[%c0_74, %c0_75] : memref<16x8xf32, #tpu.memory_space<vmem>>, vector<16x8xf32>
    %c0_76 = arith.constant 0 : index
    %c0_77 = arith.constant 0 : index
    %184 = vector.load %arg23[%c0_76, %c0_77] : memref<1x8xf32, #tpu.memory_space<vmem>>, vector<1x8xf32>
    %c0_78 = arith.constant 0 : index
    %c0_79 = arith.constant 0 : index
    %185 = vector.load %arg24[%c0_78, %c0_79] : memref<48x8xf32, #tpu.memory_space<vmem>>, vector<48x8xf32>
    %c0_80 = arith.constant 0 : index
    %c0_81 = arith.constant 0 : index
    %186 = vector.load %arg25[%c0_80, %c0_81] : memref<1x8xf32, #tpu.memory_space<vmem>>, vector<1x8xf32>
    %c0_82 = arith.constant 0 : index
    %c0_83 = arith.constant 0 : index
    %187 = vector.load %arg26[%c0_82, %c0_83] : memref<24x8xf32, #tpu.memory_space<vmem>>, vector<24x8xf32>
    %c0_84 = arith.constant 0 : index
    %c0_85 = arith.constant 0 : index
    %188 = vector.load %arg27[%c0_84, %c0_85] : memref<1x8xf32, #tpu.memory_space<vmem>>, vector<1x8xf32>
    %cst_86 = arith.constant dense<0.000000e+00> : vector<14x8xf32>
    %189 = tpu.matmul %181, %182, %cst_86 {dimension_numbers = #tpu.dot_dimension_numbers<[1], [0], [0], [1], [0, 0, 1, 1], [], []>} : vector<14x16xf32>, vector<16x8xf32>, vector<14x8xf32> -> vector<14x8xf32>
    %190 = vector.broadcast %184 : vector<1x8xf32> to vector<14x8xf32>
    %191 = arith.addf %189, %190 : vector<14x8xf32>
    %cst_87 = arith.constant 0.000000e+00 : f32
    %192 = vector.broadcast %cst_87 : f32 to vector<14x8xf32>
    %193 = arith.maximumf %191, %192 : vector<14x8xf32>
    %cst_88 = arith.constant dense<0.000000e+00> : vector<14x8xf32>
    %194 = tpu.matmul %181, %183, %cst_88 {dimension_numbers = #tpu.dot_dimension_numbers<[1], [0], [0], [1], [0, 0, 1, 1], [], []>} : vector<14x16xf32>, vector<16x8xf32>, vector<14x8xf32> -> vector<14x8xf32>
    %195 = vector.broadcast %184 : vector<1x8xf32> to vector<14x8xf32>
    %196 = arith.addf %194, %195 : vector<14x8xf32>
    %cst_89 = arith.constant 0.000000e+00 : f32
    %197 = vector.broadcast %cst_89 : f32 to vector<14x8xf32>
    %198 = arith.maximumf %196, %197 : vector<14x8xf32>
    %199 = tpu.iota {dimensions = array<i32: 0>} : vector<28x14xi32>
    %200 = tpu.iota {dimensions = array<i32: 1>} : vector<28x14xi32>
    %c2_i32_90 = arith.constant 2 : i32
    %201 = vector.broadcast %c2_i32_90 : i32 to vector<28x14xi32>
    %202 = arith.muli %201, %200 : vector<28x14xi32>
    %203 = arith.cmpi eq, %199, %202 : vector<28x14xi32>
    %204 = arith.extui %203 : vector<28x14xi1> to vector<28x14xi32>
    %205 = arith.sitofp %204 : vector<28x14xi32> to vector<28x14xf32>
    %206 = tpu.iota {dimensions = array<i32: 0>} : vector<28x14xi32>
    %207 = tpu.iota {dimensions = array<i32: 1>} : vector<28x14xi32>
    %c2_i32_91 = arith.constant 2 : i32
    %208 = vector.broadcast %c2_i32_91 : i32 to vector<28x14xi32>
    %209 = arith.muli %208, %207 : vector<28x14xi32>
    %c1_i32_92 = arith.constant 1 : i32
    %210 = vector.broadcast %c1_i32_92 : i32 to vector<28x14xi32>
    %211 = arith.addi %209, %210 : vector<28x14xi32>
    %212 = arith.cmpi eq, %206, %211 : vector<28x14xi32>
    %213 = arith.extui %212 : vector<28x14xi1> to vector<28x14xi32>
    %214 = arith.sitofp %213 : vector<28x14xi32> to vector<28x14xf32>
    %cst_93 = arith.constant dense<0.000000e+00> : vector<28x8xf32>
    %215 = tpu.matmul %205, %193, %cst_93 {dimension_numbers = #tpu.dot_dimension_numbers<[1], [0], [0], [1], [0, 0, 1, 1], [], []>} : vector<28x14xf32>, vector<14x8xf32>, vector<28x8xf32> -> vector<28x8xf32>
    %cst_94 = arith.constant dense<0.000000e+00> : vector<28x8xf32>
    %216 = tpu.matmul %214, %198, %cst_94 {dimension_numbers = #tpu.dot_dimension_numbers<[1], [0], [0], [1], [0, 0, 1, 1], [], []>} : vector<28x14xf32>, vector<14x8xf32>, vector<28x8xf32> -> vector<28x8xf32>
    %217 = arith.addf %215, %216 : vector<28x8xf32>
    %218 = vector.extract_strided_slice %43 {offsets = [16, 0], sizes = [28, 8], strides = [1, 1]} : vector<60x8xf32> to vector<28x8xf32>
    %219 = tpu.concatenate %218, %217 in 1 : vector<28x8xf32>, vector<28x8xf32> -> vector<28x16xf32>
    %220 = vector.extract_strided_slice %219 {offsets = [0, 0], sizes = [26, 16], strides = [1, 1]} : vector<28x16xf32> to vector<26x16xf32>
    %221 = vector.extract_strided_slice %219 {offsets = [1, 0], sizes = [26, 16], strides = [1, 1]} : vector<28x16xf32> to vector<26x16xf32>
    %222 = vector.extract_strided_slice %219 {offsets = [2, 0], sizes = [26, 16], strides = [1, 1]} : vector<28x16xf32> to vector<26x16xf32>
    %223 = tpu.concatenate %220, %221, %222 in 1 : vector<26x16xf32>, vector<26x16xf32>, vector<26x16xf32> -> vector<26x48xf32>
    %cst_95 = arith.constant dense<0.000000e+00> : vector<26x8xf32>
    %224 = tpu.matmul %223, %185, %cst_95 {dimension_numbers = #tpu.dot_dimension_numbers<[1], [0], [0], [1], [0, 0, 1, 1], [], []>} : vector<26x48xf32>, vector<48x8xf32>, vector<26x8xf32> -> vector<26x8xf32>
    %225 = vector.broadcast %186 : vector<1x8xf32> to vector<26x8xf32>
    %226 = arith.addf %224, %225 : vector<26x8xf32>
    %cst_96 = arith.constant 0.000000e+00 : f32
    %227 = vector.broadcast %cst_96 : f32 to vector<26x8xf32>
    %228 = arith.maximumf %226, %227 : vector<26x8xf32>
    %229 = vector.extract_strided_slice %228 {offsets = [0, 0], sizes = [24, 8], strides = [1, 1]} : vector<26x8xf32> to vector<24x8xf32>
    %230 = vector.extract_strided_slice %228 {offsets = [1, 0], sizes = [24, 8], strides = [1, 1]} : vector<26x8xf32> to vector<24x8xf32>
    %231 = vector.extract_strided_slice %228 {offsets = [2, 0], sizes = [24, 8], strides = [1, 1]} : vector<26x8xf32> to vector<24x8xf32>
    %232 = tpu.concatenate %229, %230, %231 in 1 : vector<24x8xf32>, vector<24x8xf32>, vector<24x8xf32> -> vector<24x24xf32>
    %cst_97 = arith.constant dense<0.000000e+00> : vector<24x8xf32>
    %233 = tpu.matmul %232, %187, %cst_97 {dimension_numbers = #tpu.dot_dimension_numbers<[1], [0], [0], [1], [0, 0, 1, 1], [], []>} : vector<24x24xf32>, vector<24x8xf32>, vector<24x8xf32> -> vector<24x8xf32>
    %234 = vector.broadcast %188 : vector<1x8xf32> to vector<24x8xf32>
    %235 = arith.addf %233, %234 : vector<24x8xf32>
    %cst_98 = arith.constant 0.000000e+00 : f32
    %236 = vector.broadcast %cst_98 : f32 to vector<24x8xf32>
    %237 = arith.maximumf %235, %236 : vector<24x8xf32>
    %c0_99 = arith.constant 0 : index
    %c0_100 = arith.constant 0 : index
    %238 = vector.load %arg28[%c0_99, %c0_100] : memref<8x1xf32, #tpu.memory_space<vmem>>, vector<8x1xf32>
    %c0_101 = arith.constant 0 : index
    %c0_102 = arith.constant 0 : index
    %239 = vector.load %arg29[%c0_101, %c0_102] : memref<1x1xf32, #tpu.memory_space<vmem>>, vector<1x1xf32>
    %cst_103 = arith.constant dense<0.000000e+00> : vector<24x1xf32>
    %240 = tpu.matmul %237, %238, %cst_103 {dimension_numbers = #tpu.dot_dimension_numbers<[1], [0], [0], [1], [0, 0, 1, 1], [], []>} : vector<24x8xf32>, vector<8x1xf32>, vector<24x1xf32> -> vector<24x1xf32>
    %241 = vector.broadcast %239 : vector<1x1xf32> to vector<24x1xf32>
    %242 = arith.addf %240, %241 : vector<24x1xf32>
    %c0_104 = arith.constant 0 : index
    %c0_105 = arith.constant 0 : index
    %c0_106 = arith.constant 0 : index
    %243 = vector.load %arg30[%c0_104, %c0_105, %c0_106] : memref<1x24x1xf32, #tpu.memory_space<vmem>>, vector<1x24x1xf32>
    %244 = vector.shape_cast %243 : vector<1x24x1xf32> to vector<24x1xf32>
    %245 = vector.shape_cast %242 : vector<24x1xf32> to vector<1x24x1xf32>
    tpu.vector_store %arg30[%c0_104, %c0_105, %c0_106], %245 {strides = array<i32>} : memref<1x24x1xf32, #tpu.memory_space<vmem>>, vector<1x24x1xf32>,
    return
  }
  func.func @transform_0(%arg0: i32) -> (i32, i32, i32) {
    %c0_i32 = arith.constant 0 : i32
    %c0_i32_0 = arith.constant 0 : i32
    %c0_i32_1 = arith.constant 0 : i32
    return %arg0, %c0_i32, %c0_i32_0 : i32, i32, i32
  }
  func.func @transform_1(%arg0: i32) -> (i32, i32) {
    %c0_i32 = arith.constant 0 : i32
    %c0_i32_0 = arith.constant 0 : i32
    %c0_i32_1 = arith.constant 0 : i32
    return %c0_i32, %c0_i32_0 : i32, i32
  }
  func.func @transform_2(%arg0: i32) -> (i32, i32) {
    %c0_i32 = arith.constant 0 : i32
    %c0_i32_0 = arith.constant 0 : i32
    %c0_i32_1 = arith.constant 0 : i32
    return %c0_i32, %c0_i32_0 : i32, i32
  }
  func.func @transform_3(%arg0: i32) -> (i32, i32) {
    %c0_i32 = arith.constant 0 : i32
    %c0_i32_0 = arith.constant 0 : i32
    %c0_i32_1 = arith.constant 0 : i32
    return %c0_i32, %c0_i32_0 : i32, i32
  }
  func.func @transform_4(%arg0: i32) -> (i32, i32) {
    %c0_i32 = arith.constant 0 : i32
    %c0_i32_0 = arith.constant 0 : i32
    %c0_i32_1 = arith.constant 0 : i32
    return %c0_i32, %c0_i32_0 : i32, i32
  }
  func.func @transform_5(%arg0: i32) -> (i32, i32) {
    %c0_i32 = arith.constant 0 : i32
    %c0_i32_0 = arith.constant 0 : i32
    %c0_i32_1 = arith.constant 0 : i32
    return %c0_i32, %c0_i32_0 : i32, i32
  }
  func.func @transform_6(%arg0: i32) -> (i32, i32) {
    %c0_i32 = arith.constant 0 : i32
    %c0_i32_0 = arith.constant 0 : i32
    %c0_i32_1 = arith.constant 0 : i32
    return %c0_i32, %c0_i32_0 : i32, i32
  }
  func.func @transform_7(%arg0: i32) -> (i32, i32) {
    %c0_i32 = arith.constant 0 : i32
    %c0_i32_0 = arith.constant 0 : i32
    %c0_i32_1 = arith.constant 0 : i32
    return %c0_i32, %c0_i32_0 : i32, i32
  }
  func.func @transform_8(%arg0: i32) -> (i32, i32) {
    %c0_i32 = arith.constant 0 : i32
    %c0_i32_0 = arith.constant 0 : i32
    %c0_i32_1 = arith.constant 0 : i32
    return %c0_i32, %c0_i32_0 : i32, i32
  }
  func.func @transform_9(%arg0: i32) -> (i32, i32) {
    %c0_i32 = arith.constant 0 : i32
    %c0_i32_0 = arith.constant 0 : i32
    %c0_i32_1 = arith.constant 0 : i32
    return %c0_i32, %c0_i32_0 : i32, i32
  }
  func.func @transform_10(%arg0: i32) -> (i32, i32) {
    %c0_i32 = arith.constant 0 : i32
    %c0_i32_0 = arith.constant 0 : i32
    %c0_i32_1 = arith.constant 0 : i32
    return %c0_i32, %c0_i32_0 : i32, i32
  }
  func.func @transform_11(%arg0: i32) -> (i32, i32) {
    %c0_i32 = arith.constant 0 : i32
    %c0_i32_0 = arith.constant 0 : i32
    %c0_i32_1 = arith.constant 0 : i32
    return %c0_i32, %c0_i32_0 : i32, i32
  }
  func.func @transform_12(%arg0: i32) -> (i32, i32) {
    %c0_i32 = arith.constant 0 : i32
    %c0_i32_0 = arith.constant 0 : i32
    %c0_i32_1 = arith.constant 0 : i32
    return %c0_i32, %c0_i32_0 : i32, i32
  }
  func.func @transform_13(%arg0: i32) -> (i32, i32) {
    %c0_i32 = arith.constant 0 : i32
    %c0_i32_0 = arith.constant 0 : i32
    %c0_i32_1 = arith.constant 0 : i32
    return %c0_i32, %c0_i32_0 : i32, i32
  }
  func.func @transform_14(%arg0: i32) -> (i32, i32) {
    %c0_i32 = arith.constant 0 : i32
    %c0_i32_0 = arith.constant 0 : i32
    %c0_i32_1 = arith.constant 0 : i32
    return %c0_i32, %c0_i32_0 : i32, i32
  }
  func.func @transform_15(%arg0: i32) -> (i32, i32) {
    %c0_i32 = arith.constant 0 : i32
    %c0_i32_0 = arith.constant 0 : i32
    %c0_i32_1 = arith.constant 0 : i32
    return %c0_i32, %c0_i32_0 : i32, i32
  }
  func.func @transform_16(%arg0: i32) -> (i32, i32) {
    %c0_i32 = arith.constant 0 : i32
    %c0_i32_0 = arith.constant 0 : i32
    %c0_i32_1 = arith.constant 0 : i32
    return %c0_i32, %c0_i32_0 : i32, i32
  }
  func.func @transform_17(%arg0: i32) -> (i32, i32) {
    %c0_i32 = arith.constant 0 : i32
    %c0_i32_0 = arith.constant 0 : i32
    %c0_i32_1 = arith.constant 0 : i32
    return %c0_i32, %c0_i32_0 : i32, i32
  }
  func.func @transform_18(%arg0: i32) -> (i32, i32) {
    %c0_i32 = arith.constant 0 : i32
    %c0_i32_0 = arith.constant 0 : i32
    %c0_i32_1 = arith.constant 0 : i32
    return %c0_i32, %c0_i32_0 : i32, i32
  }
  func.func @transform_19(%arg0: i32) -> (i32, i32) {
    %c0_i32 = arith.constant 0 : i32
    %c0_i32_0 = arith.constant 0 : i32
    %c0_i32_1 = arith.constant 0 : i32
    return %c0_i32, %c0_i32_0 : i32, i32
  }
  func.func @transform_20(%arg0: i32) -> (i32, i32) {
    %c0_i32 = arith.constant 0 : i32
    %c0_i32_0 = arith.constant 0 : i32
    %c0_i32_1 = arith.constant 0 : i32
    return %c0_i32, %c0_i32_0 : i32, i32
  }
  func.func @transform_21(%arg0: i32) -> (i32, i32) {
    %c0_i32 = arith.constant 0 : i32
    %c0_i32_0 = arith.constant 0 : i32
    %c0_i32_1 = arith.constant 0 : i32
    return %c0_i32, %c0_i32_0 : i32, i32
  }
  func.func @transform_22(%arg0: i32) -> (i32, i32) {
    %c0_i32 = arith.constant 0 : i32
    %c0_i32_0 = arith.constant 0 : i32
    %c0_i32_1 = arith.constant 0 : i32
    return %c0_i32, %c0_i32_0 : i32, i32
  }
  func.func @transform_23(%arg0: i32) -> (i32, i32) {
    %c0_i32 = arith.constant 0 : i32
    %c0_i32_0 = arith.constant 0 : i32
    %c0_i32_1 = arith.constant 0 : i32
    return %c0_i32, %c0_i32_0 : i32, i32
  }
  func.func @transform_24(%arg0: i32) -> (i32, i32) {
    %c0_i32 = arith.constant 0 : i32
    %c0_i32_0 = arith.constant 0 : i32
    %c0_i32_1 = arith.constant 0 : i32
    return %c0_i32, %c0_i32_0 : i32, i32
  }
  func.func @transform_25(%arg0: i32) -> (i32, i32) {
    %c0_i32 = arith.constant 0 : i32
    %c0_i32_0 = arith.constant 0 : i32
    %c0_i32_1 = arith.constant 0 : i32
    return %c0_i32, %c0_i32_0 : i32, i32
  }
  func.func @transform_26(%arg0: i32) -> (i32, i32) {
    %c0_i32 = arith.constant 0 : i32
    %c0_i32_0 = arith.constant 0 : i32
    %c0_i32_1 = arith.constant 0 : i32
    return %c0_i32, %c0_i32_0 : i32, i32
  }
  func.func @transform_27(%arg0: i32) -> (i32, i32) {
    %c0_i32 = arith.constant 0 : i32
    %c0_i32_0 = arith.constant 0 : i32
    %c0_i32_1 = arith.constant 0 : i32
    return %c0_i32, %c0_i32_0 : i32, i32
  }
  func.func @transform_28(%arg0: i32) -> (i32, i32) {
    %c0_i32 = arith.constant 0 : i32
    %c0_i32_0 = arith.constant 0 : i32
    %c0_i32_1 = arith.constant 0 : i32
    return %c0_i32, %c0_i32_0 : i32, i32
  }
  func.func @transform_29(%arg0: i32) -> (i32, i32, i32) {
    %c0_i32 = arith.constant 0 : i32
    %c0_i32_0 = arith.constant 0 : i32
    %c0_i32_1 = arith.constant 0 : i32
    return %arg0, %c0_i32, %c0_i32_0 : i32, i32, i32
  }
}

</mosaic_0001>

<llo_original>
// kernel: unet_forward.1
$region0: #{unet_forward.1}
  #allocation0 [shape = 'u32[]', space=smem, size = 0x4, offset = 0x4, fixed_abs, tag = 'smem constant byte address 0x4 - core index']
  #allocation1 [shape = 'u32[144,128]{1,0:T(1,128)}', space=vmem, size = 0x12000, scoped, tag = 'internal scratch']
  #allocation2 [shape = 'f32[1,1]{1,0:T(1,128)S(1)}', space=vmem, size = 0x200, scoped, tag = 'scoped memory for unet_forward.1']
  %s0 = inlined_call_operand.smem [shape: u32[30], index: -1, kind: input, shape index: {}]
  %s1 = sld [smem:[%s0]]
  %s2 = scalar_lea.smem %s0, 1
  %s3 = sld [smem:[%s2]]
  %s4 = scalar_lea.smem %s0, 2
  %s5 = sld [smem:[%s4]]
  %s6 = scalar_lea.smem %s0, 3
  %s7 = sld [smem:[%s6]]
  %s8 = scalar_lea.smem %s0, 4
  %s9 = sld [smem:[%s8]]
  %s10 = scalar_lea.smem %s0, 5
  %s11 = sld [smem:[%s10]]
  %s12 = scalar_lea.smem %s0, 6
  %s13 = sld [smem:[%s12]]
  %s14 = scalar_lea.smem %s0, 7
  %s15 = sld [smem:[%s14]]
  %s16 = scalar_lea.smem %s0, 8
  %s17 = sld [smem:[%s16]]
  %s18 = scalar_lea.smem %s0, 9
  %s19 = sld [smem:[%s18]]
  %s20 = scalar_lea.smem %s0, 10
  %s21 = sld [smem:[%s20]]
  %s22 = scalar_lea.smem %s0, 11
  %s23 = sld [smem:[%s22]]
  %s24 = scalar_lea.smem %s0, 12
  %s25 = sld [smem:[%s24]]
  %s26 = scalar_lea.smem %s0, 13
  %s27 = sld [smem:[%s26]]
  %s28 = scalar_lea.smem %s0, 14
  %s29 = sld [smem:[%s28]]
  %s30 = scalar_lea.smem %s0, 15
  %s31 = sld [smem:[%s30]]
  %s32 = scalar_lea.smem %s0, 16
  %s33 = sld [smem:[%s32]]
  %s34 = scalar_lea.smem %s0, 17
  %s35 = sld [smem:[%s34]]
  %s36 = scalar_lea.smem %s0, 18
  %s37 = sld [smem:[%s36]]
  %s38 = scalar_lea.smem %s0, 19
  %s39 = sld [smem:[%s38]]
  %s40 = scalar_lea.smem %s0, 20
  %s41 = sld [smem:[%s40]]
  %s42 = scalar_lea.smem %s0, 21
  %s43 = sld [smem:[%s42]]
  %s44 = scalar_lea.smem %s0, 22
  %s45 = sld [smem:[%s44]]
  %s46 = scalar_lea.smem %s0, 23
  %s47 = sld [smem:[%s46]]
  %s48 = scalar_lea.smem %s0, 24
  %s49 = sld [smem:[%s48]]
  %s50 = scalar_lea.smem %s0, 25
  %s51 = sld [smem:[%s50]]
  %s52 = scalar_lea.smem %s0, 26
  %s53 = sld [smem:[%s52]]
  %s54 = scalar_lea.smem %s0, 27
  %s55 = sld [smem:[%s54]]
  %s56 = scalar_lea.smem %s0, 28
  %s57 = sld [smem:[%s56]]
  %s58 = scalar_lea.smem %s0, 29
  %s59 = sld [smem:[%s58]]
  %s60 = sld [smem:[#allocation0]]
  $region149: #{unet_forward.1} parent=0
    _
  %s62 = ssub.s32 1, %s60
  %s63 = scalar_select 0, %s62, %s60
  %v64 = vstv %s57
  %65 = vst [vmem:[#allocation2] sm:$0x1] %v64
  loop: start=0, step=1, limit=4
  $region2: #{unet_forward.1} parent=0 // loop_pre_header
    _
  $region3: #{unet_forward.1} parent=0 // loop_header
    %s67 = sphi 0, %s71
    %p68 = scmp.ge.s32.totalorder %s67, 4
    %s77 = sphi 0, %s79
    %s80 = sphi 0, %s77
    %s81 = sphi 0, %s80
    %s97 = sphi 0, %s81
    %s101 = sphi 0, %s101
    %s103 = sphi 0, %s101
    %s104 = sphi 0, %s103
    %s118 = sphi 0, %s104
    %s122 = sphi 0, %s122
    %s124 = sphi 0, %s122
    %s125 = sphi 0, %s124
    %s139 = sphi 0, %s125
    %s143 = sphi 0, %s143
    %s145 = sphi 0, %s143
    %s146 = sphi 0, %s145
    %s160 = sphi 0, %s146
    %s164 = sphi 0, %s164
    %s166 = sphi 0, %s164
    %s167 = sphi 0, %s166
    %s181 = sphi 0, %s167
    %s185 = sphi 0, %s185
    %s187 = sphi 0, %s185
    %s188 = sphi 0, %s187
    %s202 = sphi 0, %s188
    %s206 = sphi 0, %s206
    %s208 = sphi 0, %s206
    %s209 = sphi 0, %s208
    %s223 = sphi 0, %s209
    %s227 = sphi 0, %s227
    %s229 = sphi 0, %s227
    %s230 = sphi 0, %s229
    %s244 = sphi 0, %s230
    %s248 = sphi 0, %s248
    %s250 = sphi 0, %s248
    %s251 = sphi 0, %s250
    %s265 = sphi 0, %s251
    %s269 = sphi 0, %s269
    %s271 = sphi 0, %s269
    %s272 = sphi 0, %s271
    %s286 = sphi 0, %s272
    %s290 = sphi 0, %s290
    %s292 = sphi 0, %s290
    %s293 = sphi 0, %s292
    %s307 = sphi 0, %s293
    %s311 = sphi 0, %s311
    %s313 = sphi 0, %s311
    %s314 = sphi 0, %s313
    %s328 = sphi 0, %s314
    %s332 = sphi 0, %s332
    %s334 = sphi 0, %s332
    %s335 = sphi 0, %s334
    %s349 = sphi 0, %s335
    %s353 = sphi 0, %s353
    %s355 = sphi 0, %s353
    %s356 = sphi 0, %s355
    %s370 = sphi 0, %s356
    %s374 = sphi 0, %s374
    %s376 = sphi 0, %s374
    %s377 = sphi 0, %s376
    %s391 = sphi 0, %s377
    %s395 = sphi 0, %s395
    %s397 = sphi 0, %s395
    %s398 = sphi 0, %s397
    %s412 = sphi 0, %s398
    %s416 = sphi 0, %s416
    %s418 = sphi 0, %s416
    %s419 = sphi 0, %s418
    %s433 = sphi 0, %s419
    %s437 = sphi 0, %s437
    %s439 = sphi 0, %s437
    %s440 = sphi 0, %s439
    %s454 = sphi 0, %s440
    %s458 = sphi 0, %s458
    %s460 = sphi 0, %s458
    %s461 = sphi 0, %s460
    %s475 = sphi 0, %s461
    %s479 = sphi 0, %s479
    %s481 = sphi 0, %s479
    %s482 = sphi 0, %s481
    %s496 = sphi 0, %s482
    %s500 = sphi 0, %s500
    %s502 = sphi 0, %s500
    %s503 = sphi 0, %s502
    %s517 = sphi 0, %s503
    %s521 = sphi 0, %s521
    %s523 = sphi 0, %s521
    %s524 = sphi 0, %s523
    %s538 = sphi 0, %s524
    %s542 = sphi 0, %s542
    %s544 = sphi 0, %s542
    %s545 = sphi 0, %s544
    %s559 = sphi 0, %s545
    %s563 = sphi 0, %s563
    %s565 = sphi 0, %s563
    %s566 = sphi 0, %s565
    %s580 = sphi 0, %s566
    %s584 = sphi 0, %s584
    %s586 = sphi 0, %s584
    %s587 = sphi 0, %s586
    %s601 = sphi 0, %s587
    %s605 = sphi 0, %s605
    %s607 = sphi 0, %s605
    %s608 = sphi 0, %s607
    %s622 = sphi 0, %s608
    %s626 = sphi 0, %s626
    %s628 = sphi 0, %s626
    %s629 = sphi 0, %s628
    %s643 = sphi 0, %s629
    %s647 = sphi 0, %s647
    %s649 = sphi 0, %s647
    %s650 = sphi 0, %s649
    %s664 = sphi 0, %s650
    %s668 = sphi 0, %s668
    %s670 = sphi 0, %s668
    %s671 = sphi 0, %s670
    %s685 = sphi 0, %s671
    %s691 = sphi 0, %s693
    %s694 = sphi 0, %s691
    %s695 = sphi 0, %s694
    %s711 = sphi 0, %s695
  $region4: #{unet_forward.1} parent=0 // loop_header_branch
    %70 = sbr.rel (%p68) target = $region8
  $region5: #{unet_forward.1} parent=0 // loop_body
    %s72 = ssub.s32 %s67, 1
    %s73 = ssub.s32 %s67, 2
    %s74 = sadd.s32 %s67, 1
    %s75 = ssub.s32 %s67, %s74
    %p76 = scmp.eq.s32.totalorder %s75, 0
    %s78 = sadd.s32 %s77, 1
    %s79 = scalar_select %p76, %s77, %s78
    %p82 = pneg %p76
    %p83 = scmp.eq.s32.totalorder %s67, 1
    %p84 = por %p82, %p83
    %p85 = scmp.ne.s32.totalorder %s77, %s80
    %p86 = scmp.eq.s32.totalorder %s67, 0
    %p87 = por %p85, %p86
    %p88 = scmp.ne.s32.totalorder %s77, %s80
    %p89 = scmp.eq.s32.totalorder %s72, 1
    %p90 = por %p88, %p89
    %p91 = scmp.ne.s32.totalorder %s80, %s81
    %p92 = scmp.eq.s32.totalorder %s72, 0
    %p93 = por %p91, %p92
    %p94 = scmp.ne.s32.totalorder %s80, %s81
    %p95 = scmp.eq.s32.totalorder %s73, 1
    %p96 = por %p94, %p95
    %p98 = scmp.ne.s32.totalorder %s81, %s97
    %p99 = scmp.eq.s32.totalorder %s73, 0
    %p100 = por %p98, %p99
    %s102 = sadd.s32 %s101, 1
    %p105 = scmp.eq.s32.totalorder %s67, 1
    %p106 = scmp.ne.s32.totalorder %s101, %s103
    %p107 = scmp.eq.s32.totalorder %s67, 0
    %p108 = por %p106, %p107
    %p109 = scmp.ne.s32.totalorder %s101, %s103
    %p110 = scmp.eq.s32.totalorder %s72, 1
    %p111 = por %p109, %p110
    %p112 = scmp.ne.s32.totalorder %s103, %s104
    %p113 = scmp.eq.s32.totalorder %s72, 0
    %p114 = por %p112, %p113
    %p115 = scmp.ne.s32.totalorder %s103, %s104
    %p116 = scmp.eq.s32.totalorder %s73, 1
    %p117 = por %p115, %p116
    %p119 = scmp.ne.s32.totalorder %s104, %s118
    %p120 = scmp.eq.s32.totalorder %s73, 0
    %p121 = por %p119, %p120
    %s123 = sadd.s32 %s122, 1
    %p126 = scmp.eq.s32.totalorder %s67, 1
    %p127 = scmp.ne.s32.totalorder %s122, %s124
    %p128 = scmp.eq.s32.totalorder %s67, 0
    %p129 = por %p127, %p128
    %p130 = scmp.ne.s32.totalorder %s122, %s124
    %p131 = scmp.eq.s32.totalorder %s72, 1
    %p132 = por %p130, %p131
    %p133 = scmp.ne.s32.totalorder %s124, %s125
    %p134 = scmp.eq.s32.totalorder %s72, 0
    %p135 = por %p133, %p134
    %p136 = scmp.ne.s32.totalorder %s124, %s125
    %p137 = scmp.eq.s32.totalorder %s73, 1
    %p138 = por %p136, %p137
    %p140 = scmp.ne.s32.totalorder %s125, %s139
    %p141 = scmp.eq.s32.totalorder %s73, 0
    %p142 = por %p140, %p141
    %s144 = sadd.s32 %s143, 1
    %p147 = scmp.eq.s32.totalorder %s67, 1
    %p148 = scmp.ne.s32.totalorder %s143, %s145
    %p149 = scmp.eq.s32.totalorder %s67, 0
    %p150 = por %p148, %p149
    %p151 = scmp.ne.s32.totalorder %s143, %s145
    %p152 = scmp.eq.s32.totalorder %s72, 1
    %p153 = por %p151, %p152
    %p154 = scmp.ne.s32.totalorder %s145, %s146
    %p155 = scmp.eq.s32.totalorder %s72, 0
    %p156 = por %p154, %p155
    %p157 = scmp.ne.s32.totalorder %s145, %s146
    %p158 = scmp.eq.s32.totalorder %s73, 1
    %p159 = por %p157, %p158
    %p161 = scmp.ne.s32.totalorder %s146, %s160
    %p162 = scmp.eq.s32.totalorder %s73, 0
    %p163 = por %p161, %p162
    %s165 = sadd.s32 %s164, 1
    %p168 = scmp.eq.s32.totalorder %s67, 1
    %p169 = scmp.ne.s32.totalorder %s164, %s166
    %p170 = scmp.eq.s32.totalorder %s67, 0
    %p171 = por %p169, %p170
    %p172 = scmp.ne.s32.totalorder %s164, %s166
    %p173 = scmp.eq.s32.totalorder %s72, 1
    %p174 = por %p172, %p173
    %p175 = scmp.ne.s32.totalorder %s166, %s167
    %p176 = scmp.eq.s32.totalorder %s72, 0
    %p177 = por %p175, %p176
    %p178 = scmp.ne.s32.totalorder %s166, %s167
    %p179 = scmp.eq.s32.totalorder %s73, 1
    %p180 = por %p178, %p179
    %p182 = scmp.ne.s32.totalorder %s167, %s181
    %p183 = scmp.eq.s32.totalorder %s73, 0
    %p184 = por %p182, %p183
    %s186 = sadd.s32 %s185, 1
    %p189 = scmp.eq.s32.totalorder %s67, 1
    %p190 = scmp.ne.s32.totalorder %s185, %s187
    %p191 = scmp.eq.s32.totalorder %s67, 0
    %p192 = por %p190, %p191
    %p193 = scmp.ne.s32.totalorder %s185, %s187
    %p194 = scmp.eq.s32.totalorder %s72, 1
    %p195 = por %p193, %p194
    %p196 = scmp.ne.s32.totalorder %s187, %s188
    %p197 = scmp.eq.s32.totalorder %s72, 0
    %p198 = por %p196, %p197
    %p199 = scmp.ne.s32.totalorder %s187, %s188
    %p200 = scmp.eq.s32.totalorder %s73, 1
    %p201 = por %p199, %p200
    %p203 = scmp.ne.s32.totalorder %s188, %s202
    %p204 = scmp.eq.s32.totalorder %s73, 0
    %p205 = por %p203, %p204
    %s207 = sadd.s32 %s206, 1
    %p210 = scmp.eq.s32.totalorder %s67, 1
    %p211 = scmp.ne.s32.totalorder %s206, %s208
    %p212 = scmp.eq.s32.totalorder %s67, 0
    %p213 = por %p211, %p212
    %p214 = scmp.ne.s32.totalorder %s206, %s208
    %p215 = scmp.eq.s32.totalorder %s72, 1
    %p216 = por %p214, %p215
    %p217 = scmp.ne.s32.totalorder %s208, %s209
    %p218 = scmp.eq.s32.totalorder %s72, 0
    %p219 = por %p217, %p218
    %p220 = scmp.ne.s32.totalorder %s208, %s209
    %p221 = scmp.eq.s32.totalorder %s73, 1
    %p222 = por %p220, %p221
    %p224 = scmp.ne.s32.totalorder %s209, %s223
    %p225 = scmp.eq.s32.totalorder %s73, 0
    %p226 = por %p224, %p225
    %s228 = sadd.s32 %s227, 1
    %p231 = scmp.eq.s32.totalorder %s67, 1
    %p232 = scmp.ne.s32.totalorder %s227, %s229
    %p233 = scmp.eq.s32.totalorder %s67, 0
    %p234 = por %p232, %p233
    %p235 = scmp.ne.s32.totalorder %s227, %s229
    %p236 = scmp.eq.s32.totalorder %s72, 1
    %p237 = por %p235, %p236
    %p238 = scmp.ne.s32.totalorder %s229, %s230
    %p239 = scmp.eq.s32.totalorder %s72, 0
    %p240 = por %p238, %p239
    %p241 = scmp.ne.s32.totalorder %s229, %s230
    %p242 = scmp.eq.s32.totalorder %s73, 1
    %p243 = por %p241, %p242
    %p245 = scmp.ne.s32.totalorder %s230, %s244
    %p246 = scmp.eq.s32.totalorder %s73, 0
    %p247 = por %p245, %p246
    %s249 = sadd.s32 %s248, 1
    %p252 = scmp.eq.s32.totalorder %s67, 1
    %p253 = scmp.ne.s32.totalorder %s248, %s250
    %p254 = scmp.eq.s32.totalorder %s67, 0
    %p255 = por %p253, %p254
    %p256 = scmp.ne.s32.totalorder %s248, %s250
    %p257 = scmp.eq.s32.totalorder %s72, 1
    %p258 = por %p256, %p257
    %p259 = scmp.ne.s32.totalorder %s250, %s251
    %p260 = scmp.eq.s32.totalorder %s72, 0
    %p261 = por %p259, %p260
    %p262 = scmp.ne.s32.totalorder %s250, %s251
    %p263 = scmp.eq.s32.totalorder %s73, 1
    %p264 = por %p262, %p263
    %p266 = scmp.ne.s32.totalorder %s251, %s265
    %p267 = scmp.eq.s32.totalorder %s73, 0
    %p268 = por %p266, %p267
    %s270 = sadd.s32 %s269, 1
    %p273 = scmp.eq.s32.totalorder %s67, 1
    %p274 = scmp.ne.s32.totalorder %s269, %s271
    %p275 = scmp.eq.s32.totalorder %s67, 0
    %p276 = por %p274, %p275
    %p277 = scmp.ne.s32.totalorder %s269, %s271
    %p278 = scmp.eq.s32.totalorder %s72, 1
    %p279 = por %p277, %p278
    %p280 = scmp.ne.s32.totalorder %s271, %s272
    %p281 = scmp.eq.s32.totalorder %s72, 0
    %p282 = por %p280, %p281
    %p283 = scmp.ne.s32.totalorder %s271, %s272
    %p284 = scmp.eq.s32.totalorder %s73, 1
    %p285 = por %p283, %p284
    %p287 = scmp.ne.s32.totalorder %s272, %s286
    %p288 = scmp.eq.s32.totalorder %s73, 0
    %p289 = por %p287, %p288
    %s291 = sadd.s32 %s290, 1
    %p294 = scmp.eq.s32.totalorder %s67, 1
    %p295 = scmp.ne.s32.totalorder %s290, %s292
    %p296 = scmp.eq.s32.totalorder %s67, 0
    %p297 = por %p295, %p296
    %p298 = scmp.ne.s32.totalorder %s290, %s292
    %p299 = scmp.eq.s32.totalorder %s72, 1
    %p300 = por %p298, %p299
    %p301 = scmp.ne.s32.totalorder %s292, %s293
    %p302 = scmp.eq.s32.totalorder %s72, 0
    %p303 = por %p301, %p302
    %p304 = scmp.ne.s32.totalorder %s292, %s293
    %p305 = scmp.eq.s32.totalorder %s73, 1
    %p306 = por %p304, %p305
    %p308 = scmp.ne.s32.totalorder %s293, %s307
    %p309 = scmp.eq.s32.totalorder %s73, 0
    %p310 = por %p308, %p309
    %s312 = sadd.s32 %s311, 1
    %p315 = scmp.eq.s32.totalorder %s67, 1
    %p316 = scmp.ne.s32.totalorder %s311, %s313
    %p317 = scmp.eq.s32.totalorder %s67, 0
    %p318 = por %p316, %p317
    %p319 = scmp.ne.s32.totalorder %s311, %s313
    %p320 = scmp.eq.s32.totalorder %s72, 1
    %p321 = por %p319, %p320
    %p322 = scmp.ne.s32.totalorder %s313, %s314
    %p323 = scmp.eq.s32.totalorder %s72, 0
    %p324 = por %p322, %p323
    %p325 = scmp.ne.s32.totalorder %s313, %s314
    %p326 = scmp.eq.s32.totalorder %s73, 1
    %p327 = por %p325, %p326
    %p329 = scmp.ne.s32.totalorder %s314, %s328
    %p330 = scmp.eq.s32.totalorder %s73, 0
    %p331 = por %p329, %p330
    %s333 = sadd.s32 %s332, 1
    %p336 = scmp.eq.s32.totalorder %s67, 1
    %p337 = scmp.ne.s32.totalorder %s332, %s334
    %p338 = scmp.eq.s32.totalorder %s67, 0
    %p339 = por %p337, %p338
    %p340 = scmp.ne.s32.totalorder %s332, %s334
    %p341 = scmp.eq.s32.totalorder %s72, 1
    %p342 = por %p340, %p341
    %p343 = scmp.ne.s32.totalorder %s334, %s335
    %p344 = scmp.eq.s32.totalorder %s72, 0
    %p345 = por %p343, %p344
    %p346 = scmp.ne.s32.totalorder %s334, %s335
    %p347 = scmp.eq.s32.totalorder %s73, 1
    %p348 = por %p346, %p347
    %p350 = scmp.ne.s32.totalorder %s335, %s349
    %p351 = scmp.eq.s32.totalorder %s73, 0
    %p352 = por %p350, %p351
    %s354 = sadd.s32 %s353, 1
    %p357 = scmp.eq.s32.totalorder %s67, 1
    %p358 = scmp.ne.s32.totalorder %s353, %s355
    %p359 = scmp.eq.s32.totalorder %s67, 0
    %p360 = por %p358, %p359
    %p361 = scmp.ne.s32.totalorder %s353, %s355
    %p362 = scmp.eq.s32.totalorder %s72, 1
    %p363 = por %p361, %p362
    %p364 = scmp.ne.s32.totalorder %s355, %s356
    %p365 = scmp.eq.s32.totalorder %s72, 0
    %p366 = por %p364, %p365
    %p367 = scmp.ne.s32.totalorder %s355, %s356
    %p368 = scmp.eq.s32.totalorder %s73, 1
    %p369 = por %p367, %p368
    %p371 = scmp.ne.s32.totalorder %s356, %s370
    %p372 = scmp.eq.s32.totalorder %s73, 0
    %p373 = por %p371, %p372
    %s375 = sadd.s32 %s374, 1
    %p378 = scmp.eq.s32.totalorder %s67, 1
    %p379 = scmp.ne.s32.totalorder %s374, %s376
    %p380 = scmp.eq.s32.totalorder %s67, 0
    %p381 = por %p379, %p380
    %p382 = scmp.ne.s32.totalorder %s374, %s376
    %p383 = scmp.eq.s32.totalorder %s72, 1
    %p384 = por %p382, %p383
    %p385 = scmp.ne.s32.totalorder %s376, %s377
    %p386 = scmp.eq.s32.totalorder %s72, 0
    %p387 = por %p385, %p386
    %p388 = scmp.ne.s32.totalorder %s376, %s377
    %p389 = scmp.eq.s32.totalorder %s73, 1
    %p390 = por %p388, %p389
    %p392 = scmp.ne.s32.totalorder %s377, %s391
    %p393 = scmp.eq.s32.totalorder %s73, 0
    %p394 = por %p392, %p393
    %s396 = sadd.s32 %s395, 1
    %p399 = scmp.eq.s32.totalorder %s67, 1
    %p400 = scmp.ne.s32.totalorder %s395, %s397
    %p401 = scmp.eq.s32.totalorder %s67, 0
    %p402 = por %p400, %p401
    %p403 = scmp.ne.s32.totalorder %s395, %s397
    %p404 = scmp.eq.s32.totalorder %s72, 1
    %p405 = por %p403, %p404
    %p406 = scmp.ne.s32.totalorder %s397, %s398
    %p407 = scmp.eq.s32.totalorder %s72, 0
    %p408 = por %p406, %p407
    %p409 = scmp.ne.s32.totalorder %s397, %s398
    %p410 = scmp.eq.s32.totalorder %s73, 1
    %p411 = por %p409, %p410
    %p413 = scmp.ne.s32.totalorder %s398, %s412
    %p414 = scmp.eq.s32.totalorder %s73, 0
    %p415 = por %p413, %p414
    %s417 = sadd.s32 %s416, 1
    %p420 = scmp.eq.s32.totalorder %s67, 1
    %p421 = scmp.ne.s32.totalorder %s416, %s418
    %p422 = scmp.eq.s32.totalorder %s67, 0
    %p423 = por %p421, %p422
    %p424 = scmp.ne.s32.totalorder %s416, %s418
    %p425 = scmp.eq.s32.totalorder %s72, 1
    %p426 = por %p424, %p425
    %p427 = scmp.ne.s32.totalorder %s418, %s419
    %p428 = scmp.eq.s32.totalorder %s72, 0
    %p429 = por %p427, %p428
    %p430 = scmp.ne.s32.totalorder %s418, %s419
    %p431 = scmp.eq.s32.totalorder %s73, 1
    %p432 = por %p430, %p431
    %p434 = scmp.ne.s32.totalorder %s419, %s433
    %p435 = scmp.eq.s32.totalorder %s73, 0
    %p436 = por %p434, %p435
    %s438 = sadd.s32 %s437, 1
    %p441 = scmp.eq.s32.totalorder %s67, 1
    %p442 = scmp.ne.s32.totalorder %s437, %s439
    %p443 = scmp.eq.s32.totalorder %s67, 0
    %p444 = por %p442, %p443
    %p445 = scmp.ne.s32.totalorder %s437, %s439
    %p446 = scmp.eq.s32.totalorder %s72, 1
    %p447 = por %p445, %p446
    %p448 = scmp.ne.s32.totalorder %s439, %s440
    %p449 = scmp.eq.s32.totalorder %s72, 0
    %p450 = por %p448, %p449
    %p451 = scmp.ne.s32.totalorder %s439, %s440
    %p452 = scmp.eq.s32.totalorder %s73, 1
    %p453 = por %p451, %p452
    %p455 = scmp.ne.s32.totalorder %s440, %s454
    %p456 = scmp.eq.s32.totalorder %s73, 0
    %p457 = por %p455, %p456
    %s459 = sadd.s32 %s458, 1
    %p462 = scmp.eq.s32.totalorder %s67, 1
    %p463 = scmp.ne.s32.totalorder %s458, %s460
    %p464 = scmp.eq.s32.totalorder %s67, 0
    %p465 = por %p463, %p464
    %p466 = scmp.ne.s32.totalorder %s458, %s460
    %p467 = scmp.eq.s32.totalorder %s72, 1
    %p468 = por %p466, %p467
    %p469 = scmp.ne.s32.totalorder %s460, %s461
    %p470 = scmp.eq.s32.totalorder %s72, 0
    %p471 = por %p469, %p470
    %p472 = scmp.ne.s32.totalorder %s460, %s461
    %p473 = scmp.eq.s32.totalorder %s73, 1
    %p474 = por %p472, %p473
    %p476 = scmp.ne.s32.totalorder %s461, %s475
    %p477 = scmp.eq.s32.totalorder %s73, 0
    %p478 = por %p476, %p477
    %s480 = sadd.s32 %s479, 1
    %p483 = scmp.eq.s32.totalorder %s67, 1
    %p484 = scmp.ne.s32.totalorder %s479, %s481
    %p485 = scmp.eq.s32.totalorder %s67, 0
    %p486 = por %p484, %p485
    %p487 = scmp.ne.s32.totalorder %s479, %s481
    %p488 = scmp.eq.s32.totalorder %s72, 1
    %p489 = por %p487, %p488
    %p490 = scmp.ne.s32.totalorder %s481, %s482
    %p491 = scmp.eq.s32.totalorder %s72, 0
    %p492 = por %p490, %p491
    %p493 = scmp.ne.s32.totalorder %s481, %s482
    %p494 = scmp.eq.s32.totalorder %s73, 1
    %p495 = por %p493, %p494
    %p497 = scmp.ne.s32.totalorder %s482, %s496
    %p498 = scmp.eq.s32.totalorder %s73, 0
    %p499 = por %p497, %p498
    %s501 = sadd.s32 %s500, 1
    %p504 = scmp.eq.s32.totalorder %s67, 1
    %p505 = scmp.ne.s32.totalorder %s500, %s502
    %p506 = scmp.eq.s32.totalorder %s67, 0
    %p507 = por %p505, %p506
    %p508 = scmp.ne.s32.totalorder %s500, %s502
    %p509 = scmp.eq.s32.totalorder %s72, 1
    %p510 = por %p508, %p509
    %p511 = scmp.ne.s32.totalorder %s502, %s503
    %p512 = scmp.eq.s32.totalorder %s72, 0
    %p513 = por %p511, %p512
    %p514 = scmp.ne.s32.totalorder %s502, %s503
    %p515 = scmp.eq.s32.totalorder %s73, 1
    %p516 = por %p514, %p515
    %p518 = scmp.ne.s32.totalorder %s503, %s517
    %p519 = scmp.eq.s32.totalorder %s73, 0
    %p520 = por %p518, %p519
    %s522 = sadd.s32 %s521, 1
    %p525 = scmp.eq.s32.totalorder %s67, 1
    %p526 = scmp.ne.s32.totalorder %s521, %s523
    %p527 = scmp.eq.s32.totalorder %s67, 0
    %p528 = por %p526, %p527
    %p529 = scmp.ne.s32.totalorder %s521, %s523
    %p530 = scmp.eq.s32.totalorder %s72, 1
    %p531 = por %p529, %p530
    %p532 = scmp.ne.s32.totalorder %s523, %s524
    %p533 = scmp.eq.s32.totalorder %s72, 0
    %p534 = por %p532, %p533
    %p535 = scmp.ne.s32.totalorder %s523, %s524
    %p536 = scmp.eq.s32.totalorder %s73, 1
    %p537 = por %p535, %p536
    %p539 = scmp.ne.s32.totalorder %s524, %s538
    %p540 = scmp.eq.s32.totalorder %s73, 0
    %p541 = por %p539, %p540
    %s543 = sadd.s32 %s542, 1
    %p546 = scmp.eq.s32.totalorder %s67, 1
    %p547 = scmp.ne.s32.totalorder %s542, %s544
    %p548 = scmp.eq.s32.totalorder %s67, 0
    %p549 = por %p547, %p548
    %p550 = scmp.ne.s32.totalorder %s542, %s544
    %p551 = scmp.eq.s32.totalorder %s72, 1
    %p552 = por %p550, %p551
    %p553 = scmp.ne.s32.totalorder %s544, %s545
    %p554 = scmp.eq.s32.totalorder %s72, 0
    %p555 = por %p553, %p554
    %p556 = scmp.ne.s32.totalorder %s544, %s545
    %p557 = scmp.eq.s32.totalorder %s73, 1
    %p558 = por %p556, %p557
    %p560 = scmp.ne.s32.totalorder %s545, %s559
    %p561 = scmp.eq.s32.totalorder %s73, 0
    %p562 = por %p560, %p561
    %s564 = sadd.s32 %s563, 1
    %p567 = scmp.eq.s32.totalorder %s67, 1
    %p568 = scmp.ne.s32.totalorder %s563, %s565
    %p569 = scmp.eq.s32.totalorder %s67, 0
    %p570 = por %p568, %p569
    %p571 = scmp.ne.s32.totalorder %s563, %s565
    %p572 = scmp.eq.s32.totalorder %s72, 1
    %p573 = por %p571, %p572
    %p574 = scmp.ne.s32.totalorder %s565, %s566
    %p575 = scmp.eq.s32.totalorder %s72, 0
    %p576 = por %p574, %p575
    %p577 = scmp.ne.s32.totalorder %s565, %s566
    %p578 = scmp.eq.s32.totalorder %s73, 1
    %p579 = por %p577, %p578
    %p581 = scmp.ne.s32.totalorder %s566, %s580
    %p582 = scmp.eq.s32.totalorder %s73, 0
    %p583 = por %p581, %p582
    %s585 = sadd.s32 %s584, 1
    %p588 = scmp.eq.s32.totalorder %s67, 1
    %p589 = scmp.ne.s32.totalorder %s584, %s586
    %p590 = scmp.eq.s32.totalorder %s67, 0
    %p591 = por %p589, %p590
    %p592 = scmp.ne.s32.totalorder %s584, %s586
    %p593 = scmp.eq.s32.totalorder %s72, 1
    %p594 = por %p592, %p593
    %p595 = scmp.ne.s32.totalorder %s586, %s587
    %p596 = scmp.eq.s32.totalorder %s72, 0
    %p597 = por %p595, %p596
    %p598 = scmp.ne.s32.totalorder %s586, %s587
    %p599 = scmp.eq.s32.totalorder %s73, 1
    %p600 = por %p598, %p599
    %p602 = scmp.ne.s32.totalorder %s587, %s601
    %p603 = scmp.eq.s32.totalorder %s73, 0
    %p604 = por %p602, %p603
    %s606 = sadd.s32 %s605, 1
    %p609 = scmp.eq.s32.totalorder %s67, 1
    %p610 = scmp.ne.s32.totalorder %s605, %s607
    %p611 = scmp.eq.s32.totalorder %s67, 0
    %p612 = por %p610, %p611
    %p613 = scmp.ne.s32.totalorder %s605, %s607
    %p614 = scmp.eq.s32.totalorder %s72, 1
    %p615 = por %p613, %p614
    %p616 = scmp.ne.s32.totalorder %s607, %s608
    %p617 = scmp.eq.s32.totalorder %s72, 0
    %p618 = por %p616, %p617
    %p619 = scmp.ne.s32.totalorder %s607, %s608
    %p620 = scmp.eq.s32.totalorder %s73, 1
    %p621 = por %p619, %p620
    %p623 = scmp.ne.s32.totalorder %s608, %s622
    %p624 = scmp.eq.s32.totalorder %s73, 0
    %p625 = por %p623, %p624
    %s627 = sadd.s32 %s626, 1
    %p630 = scmp.eq.s32.totalorder %s67, 1
    %p631 = scmp.ne.s32.totalorder %s626, %s628
    %p632 = scmp.eq.s32.totalorder %s67, 0
    %p633 = por %p631, %p632
    %p634 = scmp.ne.s32.totalorder %s626, %s628
    %p635 = scmp.eq.s32.totalorder %s72, 1
    %p636 = por %p634, %p635
    %p637 = scmp.ne.s32.totalorder %s628, %s629
    %p638 = scmp.eq.s32.totalorder %s72, 0
    %p639 = por %p637, %p638
    %p640 = scmp.ne.s32.totalorder %s628, %s629
    %p641 = scmp.eq.s32.totalorder %s73, 1
    %p642 = por %p640, %p641
    %p644 = scmp.ne.s32.totalorder %s629, %s643
    %p645 = scmp.eq.s32.totalorder %s73, 0
    %p646 = por %p644, %p645
    %s648 = sadd.s32 %s647, 1
    %p651 = scmp.eq.s32.totalorder %s67, 1
    %p652 = scmp.ne.s32.totalorder %s647, %s649
    %p653 = scmp.eq.s32.totalorder %s67, 0
    %p654 = por %p652, %p653
    %p655 = scmp.ne.s32.totalorder %s647, %s649
    %p656 = scmp.eq.s32.totalorder %s72, 1
    %p657 = por %p655, %p656
    %p658 = scmp.ne.s32.totalorder %s649, %s650
    %p659 = scmp.eq.s32.totalorder %s72, 0
    %p660 = por %p658, %p659
    %p661 = scmp.ne.s32.totalorder %s649, %s650
    %p662 = scmp.eq.s32.totalorder %s73, 1
    %p663 = por %p661, %p662
    %p665 = scmp.ne.s32.totalorder %s650, %s664
    %p666 = scmp.eq.s32.totalorder %s73, 0
    %p667 = por %p665, %p666
    %s669 = sadd.s32 %s668, 1
    %p672 = scmp.eq.s32.totalorder %s67, 1
    %p673 = scmp.ne.s32.totalorder %s668, %s670
    %p674 = scmp.eq.s32.totalorder %s67, 0
    %p675 = por %p673, %p674
    %p676 = scmp.ne.s32.totalorder %s668, %s670
    %p677 = scmp.eq.s32.totalorder %s72, 1
    %p678 = por %p676, %p677
    %p679 = scmp.ne.s32.totalorder %s670, %s671
    %p680 = scmp.eq.s32.totalorder %s72, 0
    %p681 = por %p679, %p680
    %p682 = scmp.ne.s32.totalorder %s670, %s671
    %p683 = scmp.eq.s32.totalorder %s73, 1
    %p684 = por %p682, %p683
    %p686 = scmp.ne.s32.totalorder %s671, %s685
    %p687 = scmp.eq.s32.totalorder %s73, 0
    %p688 = por %p686, %p687
    %s689 = ssub.s32 %s67, %s74
    %p690 = scmp.eq.s32.totalorder %s689, 0
    %s692 = sadd.s32 %s691, 1
    %s693 = scalar_select %p690, %s691, %s692
    %p696 = pneg %p690
    %p697 = scmp.eq.s32.totalorder %s67, 1
    %p698 = por %p696, %p697
    %p699 = scmp.ne.s32.totalorder %s691, %s694
    %p700 = scmp.eq.s32.totalorder %s67, 0
    %p701 = por %p699, %p700
    %p702 = scmp.ne.s32.totalorder %s691, %s694
    %p703 = scmp.eq.s32.totalorder %s72, 1
    %p704 = por %p702, %p703
    %p705 = scmp.ne.s32.totalorder %s694, %s695
    %p706 = scmp.eq.s32.totalorder %s72, 0
    %p707 = por %p705, %p706
    %p708 = scmp.ne.s32.totalorder %s694, %s695
    %p709 = scmp.eq.s32.totalorder %s73, 1
    %p710 = por %p708, %p709
    %p712 = scmp.ne.s32.totalorder %s695, %s711
    %p713 = scmp.eq.s32.totalorder %s73, 0
    %p714 = por %p712, %p713
    %p715 = scmp.le.s32.totalorder 1, %s67
    %p716 = scmp.lt.s32.totalorder %s67, 3
    %p717 = pnand %p715, %p716
    %p718 = pneg %p717
    // Predicated region
    $region9: #{unet_forward.1} parent=5 // pred_check
      _
    $region10: #{unet_forward.1} parent=5 // pred_check_branch
      %720 = sbr.rel (%p717) target = $region12
    $region11: #{unet_forward.1} parent=5 // pred_region
      %s721 = ssub.s32 %s67, 1
      // Predicated region
      $region13: #{unet_forward.1} parent=11 // pred_check
        %p722 = pneg %p114
      $region14: #{unet_forward.1} parent=11 // pred_check_branch
        %724 = sbr.rel (%p722) target = $region16
      $region15: #{unet_forward.1} parent=11 // pred_region
        _
      $region16: #{unet_forward.1} parent=11 // pred_fallthru
        _
      // Predicated region
      $region17: #{unet_forward.1} parent=11 // pred_check
        %p725 = pneg %p135
      $region18: #{unet_forward.1} parent=11 // pred_check_branch
        %727 = sbr.rel (%p725) target = $region20
      $region19: #{unet_forward.1} parent=11 // pred_region
        _
      $region20: #{unet_forward.1} parent=11 // pred_fallthru
        _
      // Predicated region
      $region21: #{unet_forward.1} parent=11 // pred_check
        %p728 = pneg %p156
      $region22: #{unet_forward.1} parent=11 // pred_check_branch
        %730 = sbr.rel (%p728) target = $region24
      $region23: #{unet_forward.1} parent=11 // pred_region
        _
      $region24: #{unet_forward.1} parent=11 // pred_fallthru
        _
      // Predicated region
      $region25: #{unet_forward.1} parent=11 // pred_check
        %p731 = pneg %p177
      $region26: #{unet_forward.1} parent=11 // pred_check_branch
        %733 = sbr.rel (%p731) target = $region28
      $region27: #{unet_forward.1} parent=11 // pred_region
        _
      $region28: #{unet_forward.1} parent=11 // pred_fallthru
        _
      // Predicated region
      $region29: #{unet_forward.1} parent=11 // pred_check
        %p734 = pneg %p198
      $region30: #{unet_forward.1} parent=11 // pred_check_branch
        %736 = sbr.rel (%p734) target = $region32
      $region31: #{unet_forward.1} parent=11 // pred_region
        _
      $region32: #{unet_forward.1} parent=11 // pred_fallthru
        _
      // Predicated region
      $region33: #{unet_forward.1} parent=11 // pred_check
        %p737 = pneg %p219
      $region34: #{unet_forward.1} parent=11 // pred_check_branch
        %739 = sbr.rel (%p737) target = $region36
      $region35: #{unet_forward.1} parent=11 // pred_region
        _
      $region36: #{unet_forward.1} parent=11 // pred_fallthru
        _
      // Predicated region
      $region37: #{unet_forward.1} parent=11 // pred_check
        %p740 = pneg %p240
      $region38: #{unet_forward.1} parent=11 // pred_check_branch
        %742 = sbr.rel (%p740) target = $region40
      $region39: #{unet_forward.1} parent=11 // pred_region
        _
      $region40: #{unet_forward.1} parent=11 // pred_fallthru
        _
      // Predicated region
      $region41: #{unet_forward.1} parent=11 // pred_check
        %p743 = pneg %p261
      $region42: #{unet_forward.1} parent=11 // pred_check_branch
        %745 = sbr.rel (%p743) target = $region44
      $region43: #{unet_forward.1} parent=11 // pred_region
        _
      $region44: #{unet_forward.1} parent=11 // pred_fallthru
        _
      // Predicated region
      $region45: #{unet_forward.1} parent=11 // pred_check
        %p746 = pneg %p282
      $region46: #{unet_forward.1} parent=11 // pred_check_branch
        %748 = sbr.rel (%p746) target = $region48
      $region47: #{unet_forward.1} parent=11 // pred_region
        _
      $region48: #{unet_forward.1} parent=11 // pred_fallthru
        _
      // Predicated region
      $region49: #{unet_forward.1} parent=11 // pred_check
        %p749 = pneg %p303
      $region50: #{unet_forward.1} parent=11 // pred_check_branch
        %751 = sbr.rel (%p749) target = $region52
      $region51: #{unet_forward.1} parent=11 // pred_region
        _
      $region52: #{unet_forward.1} parent=11 // pred_fallthru
        _
      // Predicated region
      $region53: #{unet_forward.1} parent=11 // pred_check
        %p752 = pneg %p324
      $region54: #{unet_forward.1} parent=11 // pred_check_branch
        %754 = sbr.rel (%p752) target = $region56
      $region55: #{unet_forward.1} parent=11 // pred_region
        _
      $region56: #{unet_forward.1} parent=11 // pred_fallthru
        _
      // Predicated region
      $region57: #{unet_forward.1} parent=11 // pred_check
        %p755 = pneg %p345
      $region58: #{unet_forward.1} parent=11 // pred_check_branch
        %757 = sbr.rel (%p755) target = $region60
      $region59: #{unet_forward.1} parent=11 // pred_region
        _
      $region60: #{unet_forward.1} parent=11 // pred_fallthru
        _
      // Predicated region
      $region61: #{unet_forward.1} parent=11 // pred_check
        %p758 = pneg %p366
      $region62: #{unet_forward.1} parent=11 // pred_check_branch
        %760 = sbr.rel (%p758) target = $region64
      $region63: #{unet_forward.1} parent=11 // pred_region
        _
      $region64: #{unet_forward.1} parent=11 // pred_fallthru
        _
      // Predicated region
      $region65: #{unet_forward.1} parent=11 // pred_check
        %p761 = pneg %p387
      $region66: #{unet_forward.1} parent=11 // pred_check_branch
        %763 = sbr.rel (%p761) target = $region68
      $region67: #{unet_forward.1} parent=11 // pred_region
        _
      $region68: #{unet_forward.1} parent=11 // pred_fallthru
        _
      // Predicated region
      $region69: #{unet_forward.1} parent=11 // pred_check
        %p764 = pneg %p408
      $region70: #{unet_forward.1} parent=11 // pred_check_branch
        %766 = sbr.rel (%p764) target = $region72
      $region71: #{unet_forward.1} parent=11 // pred_region
        _
      $region72: #{unet_forward.1} parent=11 // pred_fallthru
        _
      // Predicated region
      $region73: #{unet_forward.1} parent=11 // pred_check
        %p767 = pneg %p429
      $region74: #{unet_forward.1} parent=11 // pred_check_branch
        %769 = sbr.rel (%p767) target = $region76
      $region75: #{unet_forward.1} parent=11 // pred_region
        _
      $region76: #{unet_forward.1} parent=11 // pred_fallthru
        _
      // Predicated region
      $region77: #{unet_forward.1} parent=11 // pred_check
        %p770 = pneg %p450
      $region78: #{unet_forward.1} parent=11 // pred_check_branch
        %772 = sbr.rel (%p770) target = $region80
      $region79: #{unet_forward.1} parent=11 // pred_region
        _
      $region80: #{unet_forward.1} parent=11 // pred_fallthru
        _
      // Predicated region
      $region81: #{unet_forward.1} parent=11 // pred_check
        %p773 = pneg %p471
      $region82: #{unet_forward.1} parent=11 // pred_check_branch
        %775 = sbr.rel (%p773) target = $region84
      $region83: #{unet_forward.1} parent=11 // pred_region
        _
      $region84: #{unet_forward.1} parent=11 // pred_fallthru
        _
      // Predicated region
      $region85: #{unet_forward.1} parent=11 // pred_check
        %p776 = pneg %p492
      $region86: #{unet_forward.1} parent=11 // pred_check_branch
        %778 = sbr.rel (%p776) target = $region88
      $region87: #{unet_forward.1} parent=11 // pred_region
        _
      $region88: #{unet_forward.1} parent=11 // pred_fallthru
        _
      // Predicated region
      $region89: #{unet_forward.1} parent=11 // pred_check
        %p779 = pneg %p513
      $region90: #{unet_forward.1} parent=11 // pred_check_branch
        %781 = sbr.rel (%p779) target = $region92
      $region91: #{unet_forward.1} parent=11 // pred_region
        _
      $region92: #{unet_forward.1} parent=11 // pred_fallthru
        _
      // Predicated region
      $region93: #{unet_forward.1} parent=11 // pred_check
        %p782 = pneg %p534
      $region94: #{unet_forward.1} parent=11 // pred_check_branch
        %784 = sbr.rel (%p782) target = $region96
      $region95: #{unet_forward.1} parent=11 // pred_region
        _
      $region96: #{unet_forward.1} parent=11 // pred_fallthru
        _
      // Predicated region
      $region97: #{unet_forward.1} parent=11 // pred_check
        %p785 = pneg %p555
      $region98: #{unet_forward.1} parent=11 // pred_check_branch
        %787 = sbr.rel (%p785) target = $region100
      $region99: #{unet_forward.1} parent=11 // pred_region
        _
      $region100: #{unet_forward.1} parent=11 // pred_fallthru
        _
      // Predicated region
      $region101: #{unet_forward.1} parent=11 // pred_check
        %p788 = pneg %p576
      $region102: #{unet_forward.1} parent=11 // pred_check_branch
        %790 = sbr.rel (%p788) target = $region104
      $region103: #{unet_forward.1} parent=11 // pred_region
        _
      $region104: #{unet_forward.1} parent=11 // pred_fallthru
        _
      // Predicated region
      $region105: #{unet_forward.1} parent=11 // pred_check
        %p791 = pneg %p597
      $region106: #{unet_forward.1} parent=11 // pred_check_branch
        %793 = sbr.rel (%p791) target = $region108
      $region107: #{unet_forward.1} parent=11 // pred_region
        _
      $region108: #{unet_forward.1} parent=11 // pred_fallthru
        _
      // Predicated region
      $region109: #{unet_forward.1} parent=11 // pred_check
        %p794 = pneg %p618
      $region110: #{unet_forward.1} parent=11 // pred_check_branch
        %796 = sbr.rel (%p794) target = $region112
      $region111: #{unet_forward.1} parent=11 // pred_region
        _
      $region112: #{unet_forward.1} parent=11 // pred_fallthru
        _
      // Predicated region
      $region113: #{unet_forward.1} parent=11 // pred_check
        %p797 = pneg %p639
      $region114: #{unet_forward.1} parent=11 // pred_check_branch
        %799 = sbr.rel (%p797) target = $region116
      $region115: #{unet_forward.1} parent=11 // pred_region
        _
      $region116: #{unet_forward.1} parent=11 // pred_fallthru
        _
      // Predicated region
      $region117: #{unet_forward.1} parent=11 // pred_check
        %p800 = pneg %p660
      $region118: #{unet_forward.1} parent=11 // pred_check_branch
        %802 = sbr.rel (%p800) target = $region120
      $region119: #{unet_forward.1} parent=11 // pred_region
        _
      $region120: #{unet_forward.1} parent=11 // pred_fallthru
        _
      // Predicated region
      $region121: #{unet_forward.1} parent=11 // pred_check
        %p803 = pneg %p681
      $region122: #{unet_forward.1} parent=11 // pred_check_branch
        %805 = sbr.rel (%p803) target = $region124
      $region123: #{unet_forward.1} parent=11 // pred_region
        _
      $region124: #{unet_forward.1} parent=11 // pred_fallthru
        _
    $region12: #{unet_forward.1} parent=5 // pred_fallthru
      _
    %p806 = scmp.lt.s32.totalorder %s67, 2
    // Predicated region
    $region125: #{unet_forward.1} parent=5 // pred_check
      %p807 = pneg %p806
    $region126: #{unet_forward.1} parent=5 // pred_check_branch
      %809 = sbr.rel (%p807) target = $region128
    $region127: #{unet_forward.1} parent=5 // pred_region
      // Predicated region
      $region129: #{unet_forward.1} parent=127 // pred_check
        %p810 = pneg %p87
      $region130: #{unet_forward.1} parent=127 // pred_check_branch
        %812 = sbr.rel (%p810) target = $region132
      $region131: #{unet_forward.1} parent=127 // pred_region
        %p813 = scmp.lt.s32.totalorder %s67, 1
        %s814 = scalar_select %p813, %s67, 1
        %s815 = smul.addr %s814, 8
        %s816 = smul.addr %s815, 8
        %s817 = scalar_lea.vmem %s1, %s816
      $region132: #{unet_forward.1} parent=127 // pred_fallthru
        _
    $region128: #{unet_forward.1} parent=5 // pred_fallthru
      _
    %p818 = scmp.le.s32.totalorder 1, %s67
    %p819 = scmp.lt.s32.totalorder %s67, 3
    %p820 = pnand %p818, %p819
    %p821 = pneg %p820
    // Predicated region
    $region133: #{unet_forward.1} parent=5 // pred_check
      _
    $region134: #{unet_forward.1} parent=5 // pred_check_branch
      %823 = sbr.rel (%p820) target = $region136
    $region135: #{unet_forward.1} parent=5 // pred_region
      %s824 = ssub.s32 %s67, 1
      %p825 = scmp.lt.s32.totalorder %s72, 1
      %s826 = scalar_select %p825, %s72, 1
      %s827 = smul.addr %s826, 8
      %s828 = smul.addr %s827, 8
      %s829 = scalar_lea.vmem %s1, %s828
      %p830 = pneg %p93
      %p831 = pneg %p90
      %p832 = pneg %p114
      %p833 = pneg %p111
      %p834 = pneg %p135
      %p835 = pneg %p132
      %p836 = pneg %p156
      %p837 = pneg %p153
      %p838 = pneg %p177
      %p839 = pneg %p174
      %p840 = pneg %p198
      %p841 = pneg %p195
      %p842 = pneg %p219
      %p843 = pneg %p216
      %p844 = pneg %p240
      %p845 = pneg %p237
      %p846 = pneg %p261
      %p847 = pneg %p258
      %p848 = pneg %p282
      %p849 = pneg %p279
      %p850 = pneg %p303
      %p851 = pneg %p300
      %p852 = pneg %p324
      %p853 = pneg %p321
      %p854 = pneg %p345
      %p855 = pneg %p342
      %p856 = pneg %p366
      %p857 = pneg %p363
      %p858 = pneg %p387
      %p859 = pneg %p384
      %p860 = pneg %p408
      %p861 = pneg %p405
      %p862 = pneg %p429
      %p863 = pneg %p426
      %p864 = pneg %p450
      %p865 = pneg %p447
      %p866 = pneg %p471
      %p867 = pneg %p468
      %p868 = pneg %p492
      %p869 = pneg %p489
      %p870 = pneg %p513
      %p871 = pneg %p510
      %p872 = pneg %p534
      %p873 = pneg %p531
      %p874 = pneg %p555
      %p875 = pneg %p552
      %p876 = pneg %p576
      %p877 = pneg %p573
      %p878 = pneg %p597
      %p879 = pneg %p594
      %p880 = pneg %p618
      %p881 = pneg %p615
      %p882 = pneg %p639
      %p883 = pneg %p636
      %p884 = pneg %p660
      %p885 = pneg %p657
      %p886 = pneg %p681
      %p887 = pneg %p678
      %p888 = pneg %p707
      %p889 = pneg %p704
      %p890 = scmp.lt.s32.totalorder %s72, 1
      %s891 = scalar_select %p890, %s72, 1
      %s892 = smul.addr %s891, 3
      %s893 = smul.addr %s892, 8
      %s894 = scalar_lea.vmem %s59, %s893
      %p895 = scmp.lt.s32.totalorder %s72, 1
      %s896 = scalar_select %p895, %s72, 1
      %s897 = smul.addr %s896, 8
      %s898 = smul.addr %s897, 8
      %s899 = scalar_lea.vmem %s1, %s898
      %p900 = scmp.lt.s32.totalorder %s72, 1
      %s901 = scalar_select %p900, %s72, 1
      %s902 = smul.addr %s901, 3
      %s903 = smul.addr %s902, 8
      %s904 = scalar_lea.vmem %s59, %s903
      %v905 = vld [vmem:[%s899] sm:$0xff]
      %v906 = vld [vmem:[%s899 + $0x8] sm:$0xff]
      %v907 = vld [vmem:[%s899 + $0x10] sm:$0xff]
      %v908 = vld [vmem:[%s899 + $0x18] sm:$0xff]
      %v909 = vld [vmem:[%s899 + $0x20] sm:$0xff]
      %v910 = vld [vmem:[%s899 + $0x28] sm:$0xff]
      %v911 = vld [vmem:[%s899 + $0x30] sm:$0xff]
      %v912 = vld [vmem:[%s899 + $0x38] sm:$0xff]
      %v913 = vld [vmem:[%s3] sm:$0x7]
      %v914 = vld [vmem:[%s5] sm:$0x1]
      %v915 = vld [vmem:[%s7] sm:$0xff]
      %v916 = vld [vmem:[%s7 + $0x8] sm:$0xff]
      %v917 = vld [vmem:[%s7 + $0x10] sm:$0xff]
      %v918 = vld [vmem:[%s9] sm:$0x1]
      %920 = vset.pattern.permute.xlu0 0
      %921 = vperm.xlu0 %920, %v905
      %v922 = vpop.permute.xlu0 %921
      %925 = vset.pattern.permute.xlu0 0
      %926 = vperm.xlu0 %925, %v906
      %v927 = vpop.permute.xlu0 %926
      %930 = vset.pattern.permute.xlu0 0
      %931 = vperm.xlu0 %930, %v907
      %v932 = vpop.permute.xlu0 %931
      %935 = vset.pattern.permute.xlu0 0
      %936 = vperm.xlu0 %935, %v908
      %v937 = vpop.permute.xlu0 %936
      %940 = vset.pattern.permute.xlu0 0
      %941 = vperm.xlu0 %940, %v909
      %v942 = vpop.permute.xlu0 %941
      %945 = vset.pattern.permute.xlu0 0
      %946 = vperm.xlu0 %945, %v910
      %v947 = vpop.permute.xlu0 %946
      %950 = vset.pattern.permute.xlu0 0
      %951 = vperm.xlu0 %950, %v911
      %v952 = vpop.permute.xlu0 %951
      %955 = vset.pattern.permute.xlu0 0
      %956 = vperm.xlu0 %955, %v912
      %v957 = vpop.permute.xlu0 %956
      %v959 = vlaneseq
      %v960 = vshrl.u32 %v959, 7
      %v961 = vsub.s32 0, %v960
      %v962 = vrot.slane %v913, %v961
      %v963 = vmul.f32 %v922, %v962
      %v964 = vmul.f32 %v927, %v962
      %v965 = vmul.f32 %v932, %v962
      %v966 = vmul.f32 %v937, %v962
      %v967 = vmul.f32 %v942, %v962
      %v968 = vmul.f32 %v947, %v962
      %v969 = vmul.f32 %v952, %v962
      %v970 = vmul.f32 %v957, %v962
      %v971 = vadd.f32 %v963, 0.0
      %v972 = vadd.f32 %v964, 0.0
      %v973 = vadd.f32 %v965, 0.0
      %v974 = vadd.f32 %v966, 0.0
      %v975 = vadd.f32 %v967, 0.0
      %v976 = vadd.f32 %v968, 0.0
      %v977 = vadd.f32 %v969, 0.0
      %v978 = vadd.f32 %v970, 0.0
      %v979 = vlaneseq
      %v980 = vshrl.u32 %v979, 7
      %v981 = vsub.s32 1, %v980
      %v982 = vrot.slane %v913, %v981
      %v983 = vmul.f32 %v922, %v982
      %v984 = vmul.f32 %v927, %v982
      %v985 = vmul.f32 %v932, %v982
      %v986 = vmul.f32 %v937, %v982
      %v987 = vmul.f32 %v942, %v982
      %v988 = vmul.f32 %v947, %v982
      %v989 = vmul.f32 %v952, %v982
      %v990 = vmul.f32 %v957, %v982
      %vm999 = vcmask 1046528
      %v1000 = vrot.slane %v983, 1
      %v1001 = vrot.slane %v984, 1
      %v1002 = vsel %vm999, %v1000, %v1001
      %v1003 = vrot.slane %v985, 1
      %v1004 = vsel %vm999, %v1001, %v1003
      %v1005 = vrot.slane %v986, 1
      %v1006 = vsel %vm999, %v1003, %v1005
      %v1007 = vrot.slane %v987, 1
      %v1008 = vsel %vm999, %v1005, %v1007
      %v1009 = vrot.slane %v988, 1
      %v1010 = vsel %vm999, %v1007, %v1009
      %v1011 = vrot.slane %v989, 1
      %v1012 = vsel %vm999, %v1009, %v1011
      %v1013 = vrot.slane %v990, 1
      %v1014 = vsel %vm999, %v1011, %v1013
      %v1023 = vadd.f32 %v971, %v1002
      %v1024 = vadd.f32 %v972, %v1004
      %v1025 = vadd.f32 %v973, %v1006
      %v1026 = vadd.f32 %v974, %v1008
      %v1027 = vadd.f32 %v975, %v1010
      %v1028 = vadd.f32 %v976, %v1012
      %v1029 = vadd.f32 %v977, %v1014
      %v1030 = vadd.f32 %v978, %v1013
      %v1031 = vlaneseq
      %v1032 = vshrl.u32 %v1031, 7
      %v1033 = vsub.s32 2, %v1032
      %v1034 = vrot.slane %v913, %v1033
      %v1035 = vmul.f32 %v922, %v1034
      %v1036 = vmul.f32 %v927, %v1034
      %v1037 = vmul.f32 %v932, %v1034
      %v1038 = vmul.f32 %v937, %v1034
      %v1039 = vmul.f32 %v942, %v1034
      %v1040 = vmul.f32 %v947, %v1034
      %v1041 = vmul.f32 %v952, %v1034
      %v1042 = vmul.f32 %v957, %v1034
      %vm1051 = vcmask 1045504
      %v1052 = vrot.slane %v1035, 2
      %v1053 = vrot.slane %v1036, 2
      %v1054 = vsel %vm1051, %v1052, %v1053
      %v1055 = vrot.slane %v1037, 2
      %v1056 = vsel %vm1051, %v1053, %v1055
      %v1057 = vrot.slane %v1038, 2
      %v1058 = vsel %vm1051, %v1055, %v1057
      %v1059 = vrot.slane %v1039, 2
      %v1060 = vsel %vm1051, %v1057, %v1059
      %v1061 = vrot.slane %v1040, 2
      %v1062 = vsel %vm1051, %v1059, %v1061
      %v1063 = vrot.slane %v1041, 2
      %v1064 = vsel %vm1051, %v1061, %v1063
      %v1065 = vrot.slane %v1042, 2
      %v1066 = vsel %vm1051, %v1063, %v1065
      %v1075 = vadd.f32 %v1023, %v1054
      %v1076 = vadd.f32 %v1024, %v1056
      %v1077 = vadd.f32 %v1025, %v1058
      %v1078 = vadd.f32 %v1026, %v1060
      %v1079 = vadd.f32 %v1027, %v1062
      %v1080 = vadd.f32 %v1028, %v1064
      %v1081 = vadd.f32 %v1029, %v1066
      %v1082 = vadd.f32 %v1030, %v1065
      %v1084 = vlaneseq
      %v1085 = vshrl.u32 %v1084, 7
      %v1086 = vsub.s32 0, %v1085
      %v1087 = vrot.slane %v914, %v1086
      %v1089 = vadd.f32 %v1075, %v1087
      %v1090 = vadd.f32 %v1076, %v1087
      %v1091 = vadd.f32 %v1077, %v1087
      %v1092 = vadd.f32 %v1078, %v1087
      %v1093 = vadd.f32 %v1079, %v1087
      %v1094 = vadd.f32 %v1080, %v1087
      %v1095 = vadd.f32 %v1081, %v1087
      %v1096 = vadd.f32 %v1082, %v1087
      %v1097 = vmax.f32 %v1089, 0.0
      %v1098 = vmax.f32 %v1090, 0.0
      %v1099 = vmax.f32 %v1091, 0.0
      %v1100 = vmax.f32 %v1092, 0.0
      %v1101 = vmax.f32 %v1093, 0.0
      %v1102 = vmax.f32 %v1094, 0.0
      %v1103 = vmax.f32 %v1095, 0.0
      %v1104 = vmax.f32 %v1096, 0.0
      %v1113 = vrot.slane %v1097, 1
      %v1114 = vrot.slane %v1098, 1
      %v1115 = vsel %vm999, %v1113, %v1114
      %v1116 = vrot.slane %v1099, 1
      %v1117 = vsel %vm999, %v1114, %v1116
      %v1118 = vrot.slane %v1100, 1
      %v1119 = vsel %vm999, %v1116, %v1118
      %v1120 = vrot.slane %v1101, 1
      %v1121 = vsel %vm999, %v1118, %v1120
      %v1122 = vrot.slane %v1102, 1
      %v1123 = vsel %vm999, %v1120, %v1122
      %v1124 = vrot.slane %v1103, 1
      %v1125 = vsel %vm999, %v1122, %v1124
      %v1126 = vrot.slane %v1104, 1
      %v1127 = vsel %vm999, %v1124, %v1126
      %1128 = vrot.lane.b32.xlu0 %v1115, 8
      %v1129 = vpop.permute.xlu0 %1128
      %1130 = vrot.lane.b32.xlu0 %v1117, 8
      %v1131 = vpop.permute.xlu0 %1130
      %1132 = vrot.lane.b32.xlu0 %v1119, 8
      %v1133 = vpop.permute.xlu0 %1132
      %1134 = vrot.lane.b32.xlu0 %v1121, 8
      %v1135 = vpop.permute.xlu0 %1134
      %1136 = vrot.lane.b32.xlu0 %v1123, 8
      %v1137 = vpop.permute.xlu0 %1136
      %1138 = vrot.lane.b32.xlu0 %v1125, 8
      %v1139 = vpop.permute.xlu0 %1138
      %1140 = vrot.lane.b32.xlu0 %v1127, 8
      %v1141 = vpop.permute.xlu0 %1140
      %1142 = vrot.lane.b32.xlu0 %v1126, 8
      %v1143 = vpop.permute.xlu0 %1142
      %v1152 = vrot.slane %v1097, 2
      %v1153 = vrot.slane %v1098, 2
      %v1154 = vsel %vm1051, %v1152, %v1153
      %v1155 = vrot.slane %v1099, 2
      %v1156 = vsel %vm1051, %v1153, %v1155
      %v1157 = vrot.slane %v1100, 2
      %v1158 = vsel %vm1051, %v1155, %v1157
      %v1159 = vrot.slane %v1101, 2
      %v1160 = vsel %vm1051, %v1157, %v1159
      %v1161 = vrot.slane %v1102, 2
      %v1162 = vsel %vm1051, %v1159, %v1161
      %v1163 = vrot.slane %v1103, 2
      %v1164 = vsel %vm1051, %v1161, %v1163
      %v1165 = vrot.slane %v1104, 2
      %v1166 = vsel %vm1051, %v1163, %v1165
      %1167 = vrot.lane.b32.xlu0 %v1154, 16
      %v1168 = vpop.permute.xlu0 %1167
      %1169 = vrot.lane.b32.xlu0 %v1156, 16
      %v1170 = vpop.permute.xlu0 %1169
      %1171 = vrot.lane.b32.xlu0 %v1158, 16
      %v1172 = vpop.permute.xlu0 %1171
      %1173 = vrot.lane.b32.xlu0 %v1160, 16
      %v1174 = vpop.permute.xlu0 %1173
      %1175 = vrot.lane.b32.xlu0 %v1162, 16
      %v1176 = vpop.permute.xlu0 %1175
      %1177 = vrot.lane.b32.xlu0 %v1164, 16
      %v1178 = vpop.permute.xlu0 %1177
      %1179 = vrot.lane.b32.xlu0 %v1166, 16
      %v1180 = vpop.permute.xlu0 %1179
      %1181 = vrot.lane.b32.xlu0 %v1165, 16
      %v1182 = vpop.permute.xlu0 %1181
      %vm1191 = vcmask 64512
      %v1192 = vsel %vm1191, %v1097, %v1129
      %v1193 = vsel %vm1191, %v1098, %v1131
      %v1194 = vsel %vm1191, %v1099, %v1133
      %v1195 = vsel %vm1191, %v1100, %v1135
      %v1196 = vsel %vm1191, %v1101, %v1137
      %v1197 = vsel %vm1191, %v1102, %v1139
      %v1198 = vsel %vm1191, %v1103, %v1141
      %v1199 = vsel %vm1191, %v1104, %v1143
      %vm1200 = vcmask 130048
      %v1201 = vsel %vm1200, %v1192, %v1168
      %v1202 = vsel %vm1200, %v1193, %v1170
      %v1203 = vsel %vm1200, %v1194, %v1172
      %v1204 = vsel %vm1200, %v1195, %v1174
      %v1205 = vsel %vm1200, %v1196, %v1176
      %v1206 = vsel %vm1200, %v1197, %v1178
      %v1207 = vsel %vm1200, %v1198, %v1180
      %v1208 = vsel %vm1200, %v1199, %v1182
      %v1210 = vlaneseq
      %v1211 = vshrl.u32 %v1210, 7
      %v1212 = vsub.s32 0, %v1211
      %v1213 = vrot.slane %v918, %v1212
      %vm1215 = vcmask 195584
      %v1217 = vsel %vm1215, %v1201, 0
      %v1220 = vsel %vm1215, %v1202, 0
      %v1223 = vsel %vm1215, %v1203, 0
      %v1226 = vsel %vm1215, %v1204, 0
      %v1229 = vsel %vm1215, %v1205, 0
      %v1232 = vsel %vm1215, %v1206, 0
      %v1235 = vsel %vm1215, %v1207, 0
      %v1238 = vsel %vm1215, %v1208, 0
      %1240 = vmatprep.subr.mxu0 0.0
      %1241 = vmatpush1.msra.mxu0 %v915
      %1242 = vmatprep.subr.mxu0 0.0
      %1243 = vmatpush1.msra.mxu0 %v916
      %1244 = vmatprep.subr.mxu0 0.0
      %1245 = vmatpush1.msra.mxu0 %v917
      %1246 = vmatprep.subr.mxu0 0.0
      %1247 = vmatpush1.msra.mxu0 0.0
      %1248 = vmatprep.subr.mxu0 0.0
      %1249 = vmatpush1.msra.mxu0 0.0
      %1250 = vmatprep.subr.mxu0 0.0
      %1251 = vmatpush1.msra.mxu0 0.0
      %1252 = vmatprep.subr.mxu0 0.0
      %1253 = vmatpush1.msra.mxu0 0.0
      %1254 = vmatprep.subr.mxu0 0.0
      %1255 = vmatpush1.msra.mxu0 0.0
      %1256 = vmatprep.subr.mxu0 0.0
      %1257 = vmatpush1.msra.mxu0 0.0
      %1258 = vmatprep.subr.mxu0 0.0
      %1259 = vmatpush1.msra.mxu0 0.0
      %1260 = vmatprep.subr.mxu0 0.0
      %1261 = vmatpush1.msra.mxu0 0.0
      %1262 = vmatprep.subr.mxu0 0.0
      %1263 = vmatpush1.msra.mxu0 0.0
      %1264 = vmatprep.subr.mxu0 0.0
      %1265 = vmatpush1.msra.mxu0 0.0
      %1266 = vmatprep.subr.mxu0 0.0
      %1267 = vmatpush1.msra.mxu0 0.0
      %1268 = vmatprep.subr.mxu0 0.0
      %1269 = vmatpush1.msra.mxu0 0.0
      %1270 = vmatprep.subr.mxu0 0.0
      %1271 = vmatpush1.msra.mxu0 0.0
      %1272 = vmatprep.subr.mxu0 0.0
      %1273 = vmatpush1.msra.mxu0 0.0
      %1274 = vmatprep.subr.mxu0 0.0
      %1275 = vmatpush1.msra.mxu0 0.0
      %1276 = vmatprep.subr.mxu0 0.0
      %1277 = vmatpush1.msra.mxu0 0.0
      %1278 = vmatprep.subr.mxu0 0.0
      %1279 = vmatpush1.msra.mxu0 0.0
      %1280 = vmatprep.subr.mxu0 0.0
      %1281 = vmatpush1.msra.mxu0 0.0
      %1282 = vmatprep.subr.mxu0 0.0
      %1283 = vmatpush1.msra.mxu0 0.0
      %1284 = vmatprep.subr.mxu0 0.0
      %1285 = vmatpush1.msra.mxu0 0.0
      %1286 = vmatprep.subr.mxu0 0.0
      %1287 = vmatpush1.msra.mxu0 0.0
      %1288 = vmatprep.subr.mxu0 0.0
      %1289 = vmatpush1.msra.mxu0 0.0
      %1290 = vmatprep.subr.mxu0 0.0
      %1291 = vmatpush1.msra.mxu0 0.0
      %1292 = vmatprep.subr.mxu0 0.0
      %1293 = vmatpush1.msra.mxu0 0.0
      %1294 = vmatprep.subr.mxu0 0.0
      %1295 = vmatpush1.msra.mxu0 0.0
      %1296 = vmatprep.subr.mxu0 0.0
      %1297 = vmatpush1.msra.mxu0 0.0
      %1298 = vmatprep.subr.mxu0 0.0
      %1299 = vmatpush1.msra.mxu0 0.0
      %1300 = vmatprep.subr.mxu0 0.0
      %1301 = vmatpush1.msra.mxu0 0.0
      %1302 = vmatprep.subr.mxu0 0.0
      %1303 = vmatpush1.msra.mxu0 0.0
      %1304 = vmatprep.mubr.f32.mxu0 0.0
      %1305 = vmatmul.mubr.f32.gmra.mrb[0].mxu0 %v1217
      %v1306 = vpop.f32.mrb[0].mxu0
      %v1307 = vadd.f32 %v1213, %v1306
      %v1308 = vpop.f32.mrb[0].mxu0
      %1309 = vmatprep.mubr.f32.mxu0 0.0
      %1310 = vmatmul.mubr.f32.gmra.mrb[0].mxu0 %v1220
      %v1311 = vpop.f32.mrb[0].mxu0
      %v1312 = vadd.f32 %v1213, %v1311
      %v1313 = vpop.f32.mrb[0].mxu0
      %1314 = vmatprep.mubr.f32.mxu0 0.0
      %1315 = vmatmul.mubr.f32.gmra.mrb[0].mxu0 %v1223
      %v1316 = vpop.f32.mrb[0].mxu0
      %v1317 = vadd.f32 %v1213, %v1316
      %v1318 = vpop.f32.mrb[0].mxu0
      %1319 = vmatprep.mubr.f32.mxu0 0.0
      %1320 = vmatmul.mubr.f32.gmra.mrb[0].mxu0 %v1226
      %v1321 = vpop.f32.mrb[0].mxu0
      %v1322 = vadd.f32 %v1213, %v1321
      %v1323 = vpop.f32.mrb[0].mxu0
      %1324 = vmatprep.mubr.f32.mxu0 0.0
      %1325 = vmatmul.mubr.f32.gmra.mrb[0].mxu0 %v1229
      %v1326 = vpop.f32.mrb[0].mxu0
      %v1327 = vadd.f32 %v1213, %v1326
      %v1328 = vpop.f32.mrb[0].mxu0
      %1329 = vmatprep.mubr.f32.mxu0 0.0
      %1330 = vmatmul.mubr.f32.gmra.mrb[0].mxu0 %v1232
      %v1331 = vpop.f32.mrb[0].mxu0
      %v1332 = vadd.f32 %v1213, %v1331
      %v1333 = vpop.f32.mrb[0].mxu0
      %1334 = vmatprep.mubr.f32.mxu0 0.0
      %1335 = vmatmul.mubr.f32.gmra.mrb[0].mxu0 %v1235
      %v1336 = vpop.f32.mrb[0].mxu0
      %v1337 = vadd.f32 %v1213, %v1336
      %v1338 = vpop.f32.mrb[0].mxu0
      %1339 = vmatprep.mubr.f32.mxu0 0.0
      %1340 = vmatmul.mubr.f32.gmra.mrb[0].mxu0 %v1238
      %v1341 = vpop.f32.mrb[0].mxu0
      %v1342 = vadd.f32 %v1213, %v1341
      %v1343 = vpop.f32.mrb[0].mxu0
      %1344 = vdwg.mxu0
      %v1345 = vmax.f32 %v1307, 0.0
      %v1346 = vmax.f32 %v1312, 0.0
      %v1347 = vmax.f32 %v1317, 0.0
      %v1348 = vmax.f32 %v1322, 0.0
      %v1349 = vmax.f32 %v1327, 0.0
      %v1350 = vmax.f32 %v1332, 0.0
      %v1351 = vmax.f32 %v1337, 0.0
      %v1352 = vmax.f32 %v1342, 0.0
      %v1353 = vlaneseq
      %v1354 = vshrl.u32 %v1353, 7
      %v1355 = vadd.s32 %v1354, 8
      %v1356 = vadd.s32 %v1354, 16
      %v1357 = vadd.s32 %v1354, 24
      %v1358 = vlaneseq
      %v1359 = vand.u32 %v1358, 127
      %v1360 = vmul.u32 %v1354, 2
      %v1361 = vmul.u32 %v1355, 2
      %v1362 = vmul.u32 %v1356, 2
      %v1363 = vmul.u32 %v1357, 2
      %vm1364 = vcmp.eq.s32.totalorder %v1359, %v1360
      %vm1365 = vcmp.eq.s32.totalorder %v1359, %v1361
      %vm1366 = vcmp.eq.s32.totalorder %v1359, %v1362
      %vm1367 = vcmp.eq.s32.totalorder %v1359, %v1363
      %v1368 = vsel %vm1364, 1, 0
      %v1369 = vsel %vm1365, 1, 0
      %v1370 = vsel %vm1366, 1, 0
      %v1371 = vsel %vm1367, 1, 0
      %v1372 = vcvt.s32.f32 %v1368
      %v1373 = vcvt.s32.f32 %v1369
      %v1374 = vcvt.s32.f32 %v1370
      %v1375 = vcvt.s32.f32 %v1371
      %v1376 = vadd.s32 %v1360, 1
      %v1377 = vadd.s32 %v1361, 1
      %v1378 = vadd.s32 %v1362, 1
      %v1379 = vadd.s32 %v1363, 1
      %vm1380 = vcmp.eq.s32.totalorder %v1359, %v1376
      %vm1381 = vcmp.eq.s32.totalorder %v1359, %v1377
      %vm1382 = vcmp.eq.s32.totalorder %v1359, %v1378
      %vm1383 = vcmp.eq.s32.totalorder %v1359, %v1379
      %v1384 = vsel %vm1380, 1, 0
      %v1385 = vsel %vm1381, 1, 0
      %v1386 = vsel %vm1382, 1, 0
      %v1387 = vsel %vm1383, 1, 0
      %v1388 = vcvt.s32.f32 %v1384
      %v1389 = vcvt.s32.f32 %v1385
      %v1390 = vcvt.s32.f32 %v1386
      %v1391 = vcvt.s32.f32 %v1387
      %vm1392 = vcmask 490496
      %v1394 = vsel %vm1392, %v1372, 0
      %v1397 = vsel %vm1392, %v1373, 0
      %v1400 = vsel %vm1392, %v1374, 0
      %v1403 = vsel %vm1392, %v1375, 0
      %vm1405 = vcmask 1043456
      %v1407 = vsel %vm1405, %v1352, 0
      %1409 = vmatprep.subr.mxu0 0.0
      %1410 = vmatpush1.msra.mxu0 %v1345
      %1411 = vmatprep.subr.mxu0 0.0
      %1412 = vmatpush1.msra.mxu0 %v1346
      %1413 = vmatprep.subr.mxu0 0.0
      %1414 = vmatpush1.msra.mxu0 %v1347
      %1415 = vmatprep.subr.mxu0 0.0
      %1416 = vmatpush1.msra.mxu0 %v1348
      %1417 = vmatprep.subr.mxu0 0.0
      %1418 = vmatpush1.msra.mxu0 %v1349
      %1419 = vmatprep.subr.mxu0 0.0
      %1420 = vmatpush1.msra.mxu0 %v1350
      %1421 = vmatprep.subr.mxu0 0.0
      %1422 = vmatpush1.msra.mxu0 %v1351
      %1423 = vmatprep.subr.mxu0 0.0
      %1424 = vmatpush1.msra.mxu0 %v1407
      %1425 = vmatprep.subr.mxu0 0.0
      %1426 = vmatpush1.msra.mxu0 0.0
      %1427 = vmatprep.subr.mxu0 0.0
      %1428 = vmatpush1.msra.mxu0 0.0
      %1429 = vmatprep.subr.mxu0 0.0
      %1430 = vmatpush1.msra.mxu0 0.0
      %1431 = vmatprep.subr.mxu0 0.0
      %1432 = vmatpush1.msra.mxu0 0.0
      %1433 = vmatprep.subr.mxu0 0.0
      %1434 = vmatpush1.msra.mxu0 0.0
      %1435 = vmatprep.subr.mxu0 0.0
      %1436 = vmatpush1.msra.mxu0 0.0
      %1437 = vmatprep.subr.mxu0 0.0
      %1438 = vmatpush1.msra.mxu0 0.0
      %1439 = vmatprep.subr.mxu0 0.0
      %1440 = vmatpush1.msra.mxu0 0.0
      %1441 = vmatprep.subr.mxu0 0.0
      %1442 = vmatpush1.msra.mxu0 0.0
      %1443 = vmatprep.subr.mxu0 0.0
      %1444 = vmatpush1.msra.mxu0 0.0
      %1445 = vmatprep.subr.mxu0 0.0
      %1446 = vmatpush1.msra.mxu0 0.0
      %1447 = vmatprep.subr.mxu0 0.0
      %1448 = vmatpush1.msra.mxu0 0.0
      %1449 = vmatprep.subr.mxu0 0.0
      %1450 = vmatpush1.msra.mxu0 0.0
      %1451 = vmatprep.subr.mxu0 0.0
      %1452 = vmatpush1.msra.mxu0 0.0
      %1453 = vmatprep.subr.mxu0 0.0
      %1454 = vmatpush1.msra.mxu0 0.0
      %1455 = vmatprep.subr.mxu0 0.0
      %1456 = vmatpush1.msra.mxu0 0.0
      %1457 = vmatprep.subr.mxu0 0.0
      %1458 = vmatpush1.msra.mxu0 0.0
      %1459 = vmatprep.subr.mxu0 0.0
      %1460 = vmatpush1.msra.mxu0 0.0
      %1461 = vmatprep.subr.mxu0 0.0
      %1462 = vmatpush1.msra.mxu0 0.0
      %1463 = vmatprep.subr.mxu0 0.0
      %1464 = vmatpush1.msra.mxu0 0.0
      %1465 = vmatprep.subr.mxu0 0.0
      %1466 = vmatpush1.msra.mxu0 0.0
      %1467 = vmatprep.subr.mxu0 0.0
      %1468 = vmatpush1.msra.mxu0 0.0
      %1469 = vmatprep.subr.mxu0 0.0
      %1470 = vmatpush1.msra.mxu0 0.0
      %1471 = vmatprep.subr.mxu0 0.0
      %1472 = vmatpush1.msra.mxu0 0.0
      %1473 = vmatprep.mubr.f32.mxu0 0.0
      %1474 = vmatmul.mubr.f32.gmra.mrb[0].mxu0 %v1394
      %v1475 = vpop.f32.mrb[0].mxu0
      %v1476 = vadd.f32 0.0, %v1475
      %v1477 = vpop.f32.mrb[0].mxu0
      %1478 = vmatprep.mubr.f32.mxu0 0.0
      %1479 = vmatmul.mubr.f32.gmra.mrb[0].mxu0 %v1397
      %v1480 = vpop.f32.mrb[0].mxu0
      %v1481 = vadd.f32 0.0, %v1480
      %v1482 = vpop.f32.mrb[0].mxu0
      %1483 = vmatprep.mubr.f32.mxu0 0.0
      %1484 = vmatmul.mubr.f32.gmra.mrb[0].mxu0 %v1400
      %v1485 = vpop.f32.mrb[0].mxu0
      %v1486 = vadd.f32 0.0, %v1485
      %v1487 = vpop.f32.mrb[0].mxu0
      %1488 = vmatprep.mubr.f32.mxu0 0.0
      %1489 = vmatmul.mubr.f32.gmra.mrb[0].mxu0 %v1403
      %v1490 = vpop.f32.mrb[0].mxu0
      %v1491 = vadd.f32 0.0, %v1490
      %v1492 = vpop.f32.mrb[0].mxu0
      %1493 = vdwg.mxu0
      %v1495 = vsel %vm1392, %v1388, 0
      %v1498 = vsel %vm1392, %v1389, 0
      %v1501 = vsel %vm1392, %v1390, 0
      %v1504 = vsel %vm1392, %v1391, 0
      %1506 = vmatprep.subr.mxu0 0.0
      %1507 = vmatpush1.msra.mxu0 %v1345
      %1508 = vmatprep.subr.mxu0 0.0
      %1509 = vmatpush1.msra.mxu0 %v1346
      %1510 = vmatprep.subr.mxu0 0.0
      %1511 = vmatpush1.msra.mxu0 %v1347
      %1512 = vmatprep.subr.mxu0 0.0
      %1513 = vmatpush1.msra.mxu0 %v1348
      %1514 = vmatprep.subr.mxu0 0.0
      %1515 = vmatpush1.msra.mxu0 %v1349
      %1516 = vmatprep.subr.mxu0 0.0
      %1517 = vmatpush1.msra.mxu0 %v1350
      %1518 = vmatprep.subr.mxu0 0.0
      %1519 = vmatpush1.msra.mxu0 %v1351
      %1520 = vmatprep.subr.mxu0 0.0
      %1521 = vmatpush1.msra.mxu0 %v1407
      %1522 = vmatprep.subr.mxu0 0.0
      %1523 = vmatpush1.msra.mxu0 0.0
      %1524 = vmatprep.subr.mxu0 0.0
      %1525 = vmatpush1.msra.mxu0 0.0
      %1526 = vmatprep.subr.mxu0 0.0
      %1527 = vmatpush1.msra.mxu0 0.0
      %1528 = vmatprep.subr.mxu0 0.0
      %1529 = vmatpush1.msra.mxu0 0.0
      %1530 = vmatprep.subr.mxu0 0.0
      %1531 = vmatpush1.msra.mxu0 0.0
      %1532 = vmatprep.subr.mxu0 0.0
      %1533 = vmatpush1.msra.mxu0 0.0
      %1534 = vmatprep.subr.mxu0 0.0
      %1535 = vmatpush1.msra.mxu0 0.0
      %1536 = vmatprep.subr.mxu0 0.0
      %1537 = vmatpush1.msra.mxu0 0.0
      %1538 = vmatprep.subr.mxu0 0.0
      %1539 = vmatpush1.msra.mxu0 0.0
      %1540 = vmatprep.subr.mxu0 0.0
      %1541 = vmatpush1.msra.mxu0 0.0
      %1542 = vmatprep.subr.mxu0 0.0
      %1543 = vmatpush1.msra.mxu0 0.0
      %1544 = vmatprep.subr.mxu0 0.0
      %1545 = vmatpush1.msra.mxu0 0.0
      %1546 = vmatprep.subr.mxu0 0.0
      %1547 = vmatpush1.msra.mxu0 0.0
      %1548 = vmatprep.subr.mxu0 0.0
      %1549 = vmatpush1.msra.mxu0 0.0
      %1550 = vmatprep.subr.mxu0 0.0
      %1551 = vmatpush1.msra.mxu0 0.0
      %1552 = vmatprep.subr.mxu0 0.0
      %1553 = vmatpush1.msra.mxu0 0.0
      %1554 = vmatprep.subr.mxu0 0.0
      %1555 = vmatpush1.msra.mxu0 0.0
      %1556 = vmatprep.subr.mxu0 0.0
      %1557 = vmatpush1.msra.mxu0 0.0
      %1558 = vmatprep.subr.mxu0 0.0
      %1559 = vmatpush1.msra.mxu0 0.0
      %1560 = vmatprep.subr.mxu0 0.0
      %1561 = vmatpush1.msra.mxu0 0.0
      %1562 = vmatprep.subr.mxu0 0.0
      %1563 = vmatpush1.msra.mxu0 0.0
      %1564 = vmatprep.subr.mxu0 0.0
      %1565 = vmatpush1.msra.mxu0 0.0
      %1566 = vmatprep.subr.mxu0 0.0
      %1567 = vmatpush1.msra.mxu0 0.0
      %1568 = vmatprep.subr.mxu0 0.0
      %1569 = vmatpush1.msra.mxu0 0.0
      %1570 = vmatprep.mubr.f32.mxu0 0.0
      %1571 = vmatmul.mubr.f32.gmra.mrb[0].mxu0 %v1495
      %v1572 = vpop.f32.mrb[0].mxu0
      %v1573 = vadd.f32 0.0, %v1572
      %v1574 = vpop.f32.mrb[0].mxu0
      %1575 = vmatprep.mubr.f32.mxu0 0.0
      %1576 = vmatmul.mubr.f32.gmra.mrb[0].mxu0 %v1498
      %v1577 = vpop.f32.mrb[0].mxu0
      %v1578 = vadd.f32 0.0, %v1577
      %v1579 = vpop.f32.mrb[0].mxu0
      %1580 = vmatprep.mubr.f32.mxu0 0.0
      %1581 = vmatmul.mubr.f32.gmra.mrb[0].mxu0 %v1501
      %v1582 = vpop.f32.mrb[0].mxu0
      %v1583 = vadd.f32 0.0, %v1582
      %v1584 = vpop.f32.mrb[0].mxu0
      %1585 = vmatprep.mubr.f32.mxu0 0.0
      %1586 = vmatmul.mubr.f32.gmra.mrb[0].mxu0 %v1504
      %v1587 = vpop.f32.mrb[0].mxu0
      %v1588 = vadd.f32 0.0, %v1587
      %v1589 = vpop.f32.mrb[0].mxu0
      %1590 = vdwg.mxu0
      %v1591 = vmax.f32 %v1476, %v1573
      %v1592 = vmax.f32 %v1481, %v1578
      %v1593 = vmax.f32 %v1486, %v1583
      %v1594 = vmax.f32 %v1491, %v1588
      %v1595 = vld [vmem:[%s11] sm:$0xff]
      %v1596 = vld [vmem:[%s11 + $0x8] sm:$0xff]
      %v1597 = vld [vmem:[%s11 + $0x10] sm:$0xff]
      %v1598 = vld [vmem:[%s13] sm:$0x1]
      %v1599 = vld [vmem:[%s15] sm:$0xff]
      %v1600 = vld [vmem:[%s15 + $0x8] sm:$0xff]
      %v1601 = vld [vmem:[%s15 + $0x10] sm:$0xff]
      %v1602 = vld [vmem:[%s15 + $0x18] sm:$0xff]
      %v1603 = vld [vmem:[%s15 + $0x20] sm:$0xff]
      %v1604 = vld [vmem:[%s15 + $0x28] sm:$0xff]
      %v1605 = vld [vmem:[%s17] sm:$0x1]
      %v1610 = vrot.slane %v1591, 1
      %v1611 = vrot.slane %v1592, 1
      %v1612 = vsel %vm999, %v1610, %v1611
      %v1613 = vrot.slane %v1593, 1
      %v1614 = vsel %vm999, %v1611, %v1613
      %v1615 = vrot.slane %v1594, 1
      %v1616 = vsel %vm999, %v1613, %v1615
      %1617 = vrot.lane.b32.xlu0 %v1612, 8
      %v1618 = vpop.permute.xlu0 %1617
      %1619 = vrot.lane.b32.xlu0 %v1614, 8
      %v1620 = vpop.permute.xlu0 %1619
      %1621 = vrot.lane.b32.xlu0 %v1616, 8
      %v1622 = vpop.permute.xlu0 %1621
      %1623 = vrot.lane.b32.xlu0 %v1615, 8
      %v1624 = vpop.permute.xlu0 %1623
      %v1629 = vrot.slane %v1591, 2
      %v1630 = vrot.slane %v1592, 2
      %v1631 = vsel %vm1051, %v1629, %v1630
      %v1632 = vrot.slane %v1593, 2
      %v1633 = vsel %vm1051, %v1630, %v1632
      %v1634 = vrot.slane %v1594, 2
      %v1635 = vsel %vm1051, %v1632, %v1634
      %1636 = vrot.lane.b32.xlu0 %v1631, 16
      %v1637 = vpop.permute.xlu0 %1636
      %1638 = vrot.lane.b32.xlu0 %v1633, 16
      %v1639 = vpop.permute.xlu0 %1638
      %1640 = vrot.lane.b32.xlu0 %v1635, 16
      %v1641 = vpop.permute.xlu0 %1640
      %1642 = vrot.lane.b32.xlu0 %v1634, 16
      %v1643 = vpop.permute.xlu0 %1642
      %v1648 = vsel %vm1191, %v1591, %v1618
      %v1649 = vsel %vm1191, %v1592, %v1620
      %v1650 = vsel %vm1191, %v1593, %v1622
      %v1651 = vsel %vm1191, %v1594, %v1624
      %v1652 = vsel %vm1200, %v1648, %v1637
      %v1653 = vsel %vm1200, %v1649, %v1639
      %v1654 = vsel %vm1200, %v1650, %v1641
      %v1655 = vsel %vm1200, %v1651, %v1643
      %v1657 = vlaneseq
      %v1658 = vshrl.u32 %v1657, 7
      %v1659 = vsub.s32 0, %v1658
      %v1660 = vrot.slane %v1598, %v1659
      %v1663 = vsel %vm1215, %v1652, 0
      %v1666 = vsel %vm1215, %v1653, 0
      %v1669 = vsel %vm1215, %v1654, 0
      %v1672 = vsel %vm1215, %v1655, 0
      %1674 = vmatprep.subr.mxu0 0.0
      %1675 = vmatpush1.msra.mxu0 %v1595
      %1676 = vmatprep.subr.mxu0 0.0
      %1677 = vmatpush1.msra.mxu0 %v1596
      %1678 = vmatprep.subr.mxu0 0.0
      %1679 = vmatpush1.msra.mxu0 %v1597
      %1680 = vmatprep.subr.mxu0 0.0
      %1681 = vmatpush1.msra.mxu0 0.0
      %1682 = vmatprep.subr.mxu0 0.0
      %1683 = vmatpush1.msra.mxu0 0.0
      %1684 = vmatprep.subr.mxu0 0.0
      %1685 = vmatpush1.msra.mxu0 0.0
      %1686 = vmatprep.subr.mxu0 0.0
      %1687 = vmatpush1.msra.mxu0 0.0
      %1688 = vmatprep.subr.mxu0 0.0
      %1689 = vmatpush1.msra.mxu0 0.0
      %1690 = vmatprep.subr.mxu0 0.0
      %1691 = vmatpush1.msra.mxu0 0.0
      %1692 = vmatprep.subr.mxu0 0.0
      %1693 = vmatpush1.msra.mxu0 0.0
      %1694 = vmatprep.subr.mxu0 0.0
      %1695 = vmatpush1.msra.mxu0 0.0
      %1696 = vmatprep.subr.mxu0 0.0
      %1697 = vmatpush1.msra.mxu0 0.0
      %1698 = vmatprep.subr.mxu0 0.0
      %1699 = vmatpush1.msra.mxu0 0.0
      %1700 = vmatprep.subr.mxu0 0.0
      %1701 = vmatpush1.msra.mxu0 0.0
      %1702 = vmatprep.subr.mxu0 0.0
      %1703 = vmatpush1.msra.mxu0 0.0
      %1704 = vmatprep.subr.mxu0 0.0
      %1705 = vmatpush1.msra.mxu0 0.0
      %1706 = vmatprep.subr.mxu0 0.0
      %1707 = vmatpush1.msra.mxu0 0.0
      %1708 = vmatprep.subr.mxu0 0.0
      %1709 = vmatpush1.msra.mxu0 0.0
      %1710 = vmatprep.subr.mxu0 0.0
      %1711 = vmatpush1.msra.mxu0 0.0
      %1712 = vmatprep.subr.mxu0 0.0
      %1713 = vmatpush1.msra.mxu0 0.0
      %1714 = vmatprep.subr.mxu0 0.0
      %1715 = vmatpush1.msra.mxu0 0.0
      %1716 = vmatprep.subr.mxu0 0.0
      %1717 = vmatpush1.msra.mxu0 0.0
      %1718 = vmatprep.subr.mxu0 0.0
      %1719 = vmatpush1.msra.mxu0 0.0
      %1720 = vmatprep.subr.mxu0 0.0
      %1721 = vmatpush1.msra.mxu0 0.0
      %1722 = vmatprep.subr.mxu0 0.0
      %1723 = vmatpush1.msra.mxu0 0.0
      %1724 = vmatprep.subr.mxu0 0.0
      %1725 = vmatpush1.msra.mxu0 0.0
      %1726 = vmatprep.subr.mxu0 0.0
      %1727 = vmatpush1.msra.mxu0 0.0
      %1728 = vmatprep.subr.mxu0 0.0
      %1729 = vmatpush1.msra.mxu0 0.0
      %1730 = vmatprep.subr.mxu0 0.0
      %1731 = vmatpush1.msra.mxu0 0.0
      %1732 = vmatprep.subr.mxu0 0.0
      %1733 = vmatpush1.msra.mxu0 0.0
      %1734 = vmatprep.subr.mxu0 0.0
      %1735 = vmatpush1.msra.mxu0 0.0
      %1736 = vmatprep.subr.mxu0 0.0
      %1737 = vmatpush1.msra.mxu0 0.0
      %1738 = vmatprep.mubr.f32.mxu0 0.0
      %1739 = vmatmul.mubr.f32.gmra.mrb[0].mxu0 %v1663
      %v1740 = vpop.f32.mrb[0].mxu0
      %v1741 = vadd.f32 %v1660, %v1740
      %v1742 = vpop.f32.mrb[0].mxu0
      %1743 = vmatprep.mubr.f32.mxu0 0.0
      %1744 = vmatmul.mubr.f32.gmra.mrb[0].mxu0 %v1666
      %v1745 = vpop.f32.mrb[0].mxu0
      %v1746 = vadd.f32 %v1660, %v1745
      %v1747 = vpop.f32.mrb[0].mxu0
      %1748 = vmatprep.mubr.f32.mxu0 0.0
      %1749 = vmatmul.mubr.f32.gmra.mrb[0].mxu0 %v1669
      %v1750 = vpop.f32.mrb[0].mxu0
      %v1751 = vadd.f32 %v1660, %v1750
      %v1752 = vpop.f32.mrb[0].mxu0
      %1753 = vmatprep.mubr.f32.mxu0 0.0
      %1754 = vmatmul.mubr.f32.gmra.mrb[0].mxu0 %v1672
      %v1755 = vpop.f32.mrb[0].mxu0
      %v1756 = vadd.f32 %v1660, %v1755
      %v1757 = vpop.f32.mrb[0].mxu0
      %1758 = vdwg.mxu0
      %v1759 = vmax.f32 %v1741, 0.0
      %v1760 = vmax.f32 %v1746, 0.0
      %v1761 = vmax.f32 %v1751, 0.0
      %v1762 = vmax.f32 %v1756, 0.0
      %v1767 = vrot.slane %v1759, 1
      %v1768 = vrot.slane %v1760, 1
      %v1769 = vsel %vm999, %v1767, %v1768
      %v1770 = vrot.slane %v1761, 1
      %v1771 = vsel %vm999, %v1768, %v1770
      %v1772 = vrot.slane %v1762, 1
      %v1773 = vsel %vm999, %v1770, %v1772
      %1774 = vrot.lane.b32.xlu0 %v1769, 16
      %v1775 = vpop.permute.xlu0 %1774
      %1776 = vrot.lane.b32.xlu0 %v1771, 16
      %v1777 = vpop.permute.xlu0 %1776
      %1778 = vrot.lane.b32.xlu0 %v1773, 16
      %v1779 = vpop.permute.xlu0 %1778
      %1780 = vrot.lane.b32.xlu0 %v1772, 16
      %v1781 = vpop.permute.xlu0 %1780
      %v1786 = vrot.slane %v1759, 2
      %v1787 = vrot.slane %v1760, 2
      %v1788 = vsel %vm1051, %v1786, %v1787
      %v1789 = vrot.slane %v1761, 2
      %v1790 = vsel %vm1051, %v1787, %v1789
      %v1791 = vrot.slane %v1762, 2
      %v1792 = vsel %vm1051, %v1789, %v1791
      %1793 = vrot.lane.b32.xlu0 %v1788, 32
      %v1794 = vpop.permute.xlu0 %1793
      %1795 = vrot.lane.b32.xlu0 %v1790, 32
      %v1796 = vpop.permute.xlu0 %1795
      %1797 = vrot.lane.b32.xlu0 %v1792, 32
      %v1798 = vpop.permute.xlu0 %1797
      %1799 = vrot.lane.b32.xlu0 %v1791, 32
      %v1800 = vpop.permute.xlu0 %1799
      %v1805 = vsel %vm1200, %v1759, %v1775
      %v1806 = vsel %vm1200, %v1760, %v1777
      %v1807 = vsel %vm1200, %v1761, %v1779
      %v1808 = vsel %vm1200, %v1762, %v1781
      %vm1809 = vcmask 261120
      %v1810 = vsel %vm1809, %v1805, %v1794
      %v1811 = vsel %vm1809, %v1806, %v1796
      %v1812 = vsel %vm1809, %v1807, %v1798
      %v1813 = vsel %vm1809, %v1808, %v1800
      %v1815 = vlaneseq
      %v1816 = vshrl.u32 %v1815, 7
      %v1817 = vsub.s32 0, %v1816
      %v1818 = vrot.slane %v1605, %v1817
      %vm1820 = vcmask 392192
      %v1822 = vsel %vm1820, %v1810, 0
      %v1825 = vsel %vm1820, %v1811, 0
      %v1828 = vsel %vm1820, %v1812, 0
      %v1831 = vsel %vm1820, %v1813, 0
      %1833 = vmatprep.subr.mxu0 0.0
      %1834 = vmatpush1.msra.mxu0 %v1599
      %1835 = vmatprep.subr.mxu0 0.0
      %1836 = vmatpush1.msra.mxu0 %v1600
      %1837 = vmatprep.subr.mxu0 0.0
      %1838 = vmatpush1.msra.mxu0 %v1601
      %1839 = vmatprep.subr.mxu0 0.0
      %1840 = vmatpush1.msra.mxu0 %v1602
      %1841 = vmatprep.subr.mxu0 0.0
      %1842 = vmatpush1.msra.mxu0 %v1603
      %1843 = vmatprep.subr.mxu0 0.0
      %1844 = vmatpush1.msra.mxu0 %v1604
      %1845 = vmatprep.subr.mxu0 0.0
      %1846 = vmatpush1.msra.mxu0 0.0
      %1847 = vmatprep.subr.mxu0 0.0
      %1848 = vmatpush1.msra.mxu0 0.0
      %1849 = vmatprep.subr.mxu0 0.0
      %1850 = vmatpush1.msra.mxu0 0.0
      %1851 = vmatprep.subr.mxu0 0.0
      %1852 = vmatpush1.msra.mxu0 0.0
      %1853 = vmatprep.subr.mxu0 0.0
      %1854 = vmatpush1.msra.mxu0 0.0
      %1855 = vmatprep.subr.mxu0 0.0
      %1856 = vmatpush1.msra.mxu0 0.0
      %1857 = vmatprep.subr.mxu0 0.0
      %1858 = vmatpush1.msra.mxu0 0.0
      %1859 = vmatprep.subr.mxu0 0.0
      %1860 = vmatpush1.msra.mxu0 0.0
      %1861 = vmatprep.subr.mxu0 0.0
      %1862 = vmatpush1.msra.mxu0 0.0
      %1863 = vmatprep.subr.mxu0 0.0
      %1864 = vmatpush1.msra.mxu0 0.0
      %1865 = vmatprep.subr.mxu0 0.0
      %1866 = vmatpush1.msra.mxu0 0.0
      %1867 = vmatprep.subr.mxu0 0.0
      %1868 = vmatpush1.msra.mxu0 0.0
      %1869 = vmatprep.subr.mxu0 0.0
      %1870 = vmatpush1.msra.mxu0 0.0
      %1871 = vmatprep.subr.mxu0 0.0
      %1872 = vmatpush1.msra.mxu0 0.0
      %1873 = vmatprep.subr.mxu0 0.0
      %1874 = vmatpush1.msra.mxu0 0.0
      %1875 = vmatprep.subr.mxu0 0.0
      %1876 = vmatpush1.msra.mxu0 0.0
      %1877 = vmatprep.subr.mxu0 0.0
      %1878 = vmatpush1.msra.mxu0 0.0
      %1879 = vmatprep.subr.mxu0 0.0
      %1880 = vmatpush1.msra.mxu0 0.0
      %1881 = vmatprep.subr.mxu0 0.0
      %1882 = vmatpush1.msra.mxu0 0.0
      %1883 = vmatprep.subr.mxu0 0.0
      %1884 = vmatpush1.msra.mxu0 0.0
      %1885 = vmatprep.subr.mxu0 0.0
      %1886 = vmatpush1.msra.mxu0 0.0
      %1887 = vmatprep.subr.mxu0 0.0
      %1888 = vmatpush1.msra.mxu0 0.0
      %1889 = vmatprep.subr.mxu0 0.0
      %1890 = vmatpush1.msra.mxu0 0.0
      %1891 = vmatprep.subr.mxu0 0.0
      %1892 = vmatpush1.msra.mxu0 0.0
      %1893 = vmatprep.subr.mxu0 0.0
      %1894 = vmatpush1.msra.mxu0 0.0
      %1895 = vmatprep.subr.mxu0 0.0
      %1896 = vmatpush1.msra.mxu0 0.0
      %1897 = vmatprep.mubr.f32.mxu0 0.0
      %1898 = vmatmul.mubr.f32.gmra.mrb[0].mxu0 %v1822
      %v1899 = vpop.f32.mrb[0].mxu0
      %v1900 = vadd.f32 %v1818, %v1899
      %v1901 = vpop.f32.mrb[0].mxu0
      %1902 = vmatprep.mubr.f32.mxu0 0.0
      %1903 = vmatmul.mubr.f32.gmra.mrb[0].mxu0 %v1825
      %v1904 = vpop.f32.mrb[0].mxu0
      %v1905 = vadd.f32 %v1818, %v1904
      %v1906 = vpop.f32.mrb[0].mxu0
      %1907 = vmatprep.mubr.f32.mxu0 0.0
      %1908 = vmatmul.mubr.f32.gmra.mrb[0].mxu0 %v1828
      %v1909 = vpop.f32.mrb[0].mxu0
      %v1910 = vadd.f32 %v1818, %v1909
      %v1911 = vpop.f32.mrb[0].mxu0
      %1912 = vmatprep.mubr.f32.mxu0 0.0
      %1913 = vmatmul.mubr.f32.gmra.mrb[0].mxu0 %v1831
      %v1914 = vpop.f32.mrb[0].mxu0
      %v1915 = vadd.f32 %v1818, %v1914
      %v1916 = vpop.f32.mrb[0].mxu0
      %1917 = vdwg.mxu0
      %v1918 = vmax.f32 %v1900, 0.0
      %v1919 = vmax.f32 %v1905, 0.0
      %v1920 = vmax.f32 %v1910, 0.0
      %v1921 = vmax.f32 %v1915, 0.0
      %vm1922 = vcmask 211968
      %v1923 = vsel %vm1922, %v1372, 0
      %v1925 = vsel %vm1922, %v1373, 0
      %vm1927 = vcmask 1041408
      %v1929 = vsel %vm1927, %v1921, 0
      %1931 = vmatprep.subr.mxu0 0.0
      %1932 = vmatpush1.msra.mxu0 %v1918
      %1933 = vmatprep.subr.mxu0 0.0
      %1934 = vmatpush1.msra.mxu0 %v1919
      %1935 = vmatprep.subr.mxu0 0.0
      %1936 = vmatpush1.msra.mxu0 %v1920
      %1937 = vmatprep.subr.mxu0 0.0
      %1938 = vmatpush1.msra.mxu0 %v1929
      %1939 = vmatprep.subr.mxu0 0.0
      %1940 = vmatpush1.msra.mxu0 0.0
      %1941 = vmatprep.subr.mxu0 0.0
      %1942 = vmatpush1.msra.mxu0 0.0
      %1943 = vmatprep.subr.mxu0 0.0
      %1944 = vmatpush1.msra.mxu0 0.0
      %1945 = vmatprep.subr.mxu0 0.0
      %1946 = vmatpush1.msra.mxu0 0.0
      %1947 = vmatprep.subr.mxu0 0.0
      %1948 = vmatpush1.msra.mxu0 0.0
      %1949 = vmatprep.subr.mxu0 0.0
      %1950 = vmatpush1.msra.mxu0 0.0
      %1951 = vmatprep.subr.mxu0 0.0
      %1952 = vmatpush1.msra.mxu0 0.0
      %1953 = vmatprep.subr.mxu0 0.0
      %1954 = vmatpush1.msra.mxu0 0.0
      %1955 = vmatprep.subr.mxu0 0.0
      %1956 = vmatpush1.msra.mxu0 0.0
      %1957 = vmatprep.subr.mxu0 0.0
      %1958 = vmatpush1.msra.mxu0 0.0
      %1959 = vmatprep.subr.mxu0 0.0
      %1960 = vmatpush1.msra.mxu0 0.0
      %1961 = vmatprep.subr.mxu0 0.0
      %1962 = vmatpush1.msra.mxu0 0.0
      %1963 = vmatprep.subr.mxu0 0.0
      %1964 = vmatpush1.msra.mxu0 0.0
      %1965 = vmatprep.subr.mxu0 0.0
      %1966 = vmatpush1.msra.mxu0 0.0
      %1967 = vmatprep.subr.mxu0 0.0
      %1968 = vmatpush1.msra.mxu0 0.0
      %1969 = vmatprep.subr.mxu0 0.0
      %1970 = vmatpush1.msra.mxu0 0.0
      %1971 = vmatprep.subr.mxu0 0.0
      %1972 = vmatpush1.msra.mxu0 0.0
      %1973 = vmatprep.subr.mxu0 0.0
      %1974 = vmatpush1.msra.mxu0 0.0
      %1975 = vmatprep.subr.mxu0 0.0
      %1976 = vmatpush1.msra.mxu0 0.0
      %1977 = vmatprep.subr.mxu0 0.0
      %1978 = vmatpush1.msra.mxu0 0.0
      %1979 = vmatprep.subr.mxu0 0.0
      %1980 = vmatpush1.msra.mxu0 0.0
      %1981 = vmatprep.subr.mxu0 0.0
      %1982 = vmatpush1.msra.mxu0 0.0
      %1983 = vmatprep.subr.mxu0 0.0
      %1984 = vmatpush1.msra.mxu0 0.0
      %1985 = vmatprep.subr.mxu0 0.0
      %1986 = vmatpush1.msra.mxu0 0.0
      %1987 = vmatprep.subr.mxu0 0.0
      %1988 = vmatpush1.msra.mxu0 0.0
      %1989 = vmatprep.subr.mxu0 0.0
      %1990 = vmatpush1.msra.mxu0 0.0
      %1991 = vmatprep.subr.mxu0 0.0
      %1992 = vmatpush1.msra.mxu0 0.0
      %1993 = vmatprep.subr.mxu0 0.0
      %1994 = vmatpush1.msra.mxu0 0.0
      %1995 = vmatprep.mubr.f32.mxu0 0.0
      %1996 = vmatmul.mubr.f32.gmra.mrb[0].mxu0 %v1923
      %v1997 = vpop.f32.mrb[0].mxu0
      %v1998 = vadd.f32 0.0, %v1997
      %v1999 = vpop.f32.mrb[0].mxu0
      %2000 = vmatprep.mubr.f32.mxu0 0.0
      %2001 = vmatmul.mubr.f32.gmra.mrb[0].mxu0 %v1925
      %v2002 = vpop.f32.mrb[0].mxu0
      %v2003 = vadd.f32 0.0, %v2002
      %v2004 = vpop.f32.mrb[0].mxu0
      %2005 = vdwg.mxu0
      %v2006 = vsel %vm1922, %v1388, 0
      %v2008 = vsel %vm1922, %v1389, 0
      %2010 = vmatprep.subr.mxu0 0.0
      %2011 = vmatpush1.msra.mxu0 %v1918
      %2012 = vmatprep.subr.mxu0 0.0
      %2013 = vmatpush1.msra.mxu0 %v1919
      %2014 = vmatprep.subr.mxu0 0.0
      %2015 = vmatpush1.msra.mxu0 %v1920
      %2016 = vmatprep.subr.mxu0 0.0
      %2017 = vmatpush1.msra.mxu0 %v1929
      %2018 = vmatprep.subr.mxu0 0.0
      %2019 = vmatpush1.msra.mxu0 0.0
      %2020 = vmatprep.subr.mxu0 0.0
      %2021 = vmatpush1.msra.mxu0 0.0
      %2022 = vmatprep.subr.mxu0 0.0
      %2023 = vmatpush1.msra.mxu0 0.0
      %2024 = vmatprep.subr.mxu0 0.0
      %2025 = vmatpush1.msra.mxu0 0.0
      %2026 = vmatprep.subr.mxu0 0.0
      %2027 = vmatpush1.msra.mxu0 0.0
      %2028 = vmatprep.subr.mxu0 0.0
      %2029 = vmatpush1.msra.mxu0 0.0
      %2030 = vmatprep.subr.mxu0 0.0
      %2031 = vmatpush1.msra.mxu0 0.0
      %2032 = vmatprep.subr.mxu0 0.0
      %2033 = vmatpush1.msra.mxu0 0.0
      %2034 = vmatprep.subr.mxu0 0.0
      %2035 = vmatpush1.msra.mxu0 0.0
      %2036 = vmatprep.subr.mxu0 0.0
      %2037 = vmatpush1.msra.mxu0 0.0
      %2038 = vmatprep.subr.mxu0 0.0
      %2039 = vmatpush1.msra.mxu0 0.0
      %2040 = vmatprep.subr.mxu0 0.0
      %2041 = vmatpush1.msra.mxu0 0.0
      %2042 = vmatprep.subr.mxu0 0.0
      %2043 = vmatpush1.msra.mxu0 0.0
      %2044 = vmatprep.subr.mxu0 0.0
      %2045 = vmatpush1.msra.mxu0 0.0
      %2046 = vmatprep.subr.mxu0 0.0
      %2047 = vmatpush1.msra.mxu0 0.0
      %2048 = vmatprep.subr.mxu0 0.0
      %2049 = vmatpush1.msra.mxu0 0.0
      %2050 = vmatprep.subr.mxu0 0.0
      %2051 = vmatpush1.msra.mxu0 0.0
      %2052 = vmatprep.subr.mxu0 0.0
      %2053 = vmatpush1.msra.mxu0 0.0
      %2054 = vmatprep.subr.mxu0 0.0
      %2055 = vmatpush1.msra.mxu0 0.0
      %2056 = vmatprep.subr.mxu0 0.0
      %2057 = vmatpush1.msra.mxu0 0.0
      %2058 = vmatprep.subr.mxu0 0.0
      %2059 = vmatpush1.msra.mxu0 0.0
      %2060 = vmatprep.subr.mxu0 0.0
      %2061 = vmatpush1.msra.mxu0 0.0
      %2062 = vmatprep.subr.mxu0 0.0
      %2063 = vmatpush1.msra.mxu0 0.0
      %2064 = vmatprep.subr.mxu0 0.0
      %2065 = vmatpush1.msra.mxu0 0.0
      %2066 = vmatprep.subr.mxu0 0.0
      %2067 = vmatpush1.msra.mxu0 0.0
      %2068 = vmatprep.subr.mxu0 0.0
      %2069 = vmatpush1.msra.mxu0 0.0
      %2070 = vmatprep.subr.mxu0 0.0
      %2071 = vmatpush1.msra.mxu0 0.0
      %2072 = vmatprep.subr.mxu0 0.0
      %2073 = vmatpush1.msra.mxu0 0.0
      %2074 = vmatprep.mubr.f32.mxu0 0.0
      %2075 = vmatmul.mubr.f32.gmra.mrb[0].mxu0 %v2006
      %v2076 = vpop.f32.mrb[0].mxu0
      %v2077 = vadd.f32 0.0, %v2076
      %v2078 = vpop.f32.mrb[0].mxu0
      %2079 = vmatprep.mubr.f32.mxu0 0.0
      %2080 = vmatmul.mubr.f32.gmra.mrb[0].mxu0 %v2008
      %v2081 = vpop.f32.mrb[0].mxu0
      %v2082 = vadd.f32 0.0, %v2081
      %v2083 = vpop.f32.mrb[0].mxu0
      %2084 = vdwg.mxu0
      %v2085 = vmax.f32 %v1998, %v2077
      %v2086 = vmax.f32 %v2003, %v2082
      %v2087 = vld [vmem:[%s19] sm:$0xff]
      %v2088 = vld [vmem:[%s19 + $0x8] sm:$0xff]
      %v2089 = vld [vmem:[%s19 + $0x10] sm:$0xff]
      %v2090 = vld [vmem:[%s19 + $0x18] sm:$0xff]
      %v2091 = vld [vmem:[%s19 + $0x20] sm:$0xff]
      %v2092 = vld [vmem:[%s19 + $0x28] sm:$0xff]
      %v2093 = vld [vmem:[%s21] sm:$0x1]
      %v2094 = vld [vmem:[%s23] sm:$0xff]
      %v2095 = vld [vmem:[%s23 + $0x8] sm:$0xff]
      %v2096 = vld [vmem:[%s23 + $0x10] sm:$0xff]
      %v2097 = vld [vmem:[%s23 + $0x18] sm:$0xff]
      %v2098 = vld [vmem:[%s23 + $0x20] sm:$0xff]
      %v2099 = vld [vmem:[%s23 + $0x28] sm:$0xff]
      %v2100 = vld [vmem:[%s23 + $0x30] sm:$0xff]
      %v2101 = vld [vmem:[%s23 + $0x38] sm:$0xff]
      %v2102 = vld [vmem:[%s23 + $0x40] sm:$0xff]
      %v2103 = vld [vmem:[%s23 + $0x48] sm:$0xff]
      %v2104 = vld [vmem:[%s23 + $0x50] sm:$0xff]
      %v2105 = vld [vmem:[%s23 + $0x58] sm:$0xff]
      %v2106 = vld [vmem:[%s25] sm:$0x1]
      %v2109 = vrot.slane %v2085, 1
      %v2110 = vrot.slane %v2086, 1
      %v2111 = vsel %vm999, %v2109, %v2110
      %2112 = vrot.lane.b32.xlu0 %v2111, 16
      %v2113 = vpop.permute.xlu0 %2112
      %2114 = vrot.lane.b32.xlu0 %v2110, 16
      %v2115 = vpop.permute.xlu0 %2114
      %v2118 = vrot.slane %v2085, 2
      %v2119 = vrot.slane %v2086, 2
      %v2120 = vsel %vm1051, %v2118, %v2119
      %2121 = vrot.lane.b32.xlu0 %v2120, 32
      %v2122 = vpop.permute.xlu0 %2121
      %2123 = vrot.lane.b32.xlu0 %v2119, 32
      %v2124 = vpop.permute.xlu0 %2123
      %v2127 = vsel %vm1200, %v2085, %v2113
      %v2128 = vsel %vm1200, %v2086, %v2115
      %v2129 = vsel %vm1809, %v2127, %v2122
      %v2130 = vsel %vm1809, %v2128, %v2124
      %v2132 = vlaneseq
      %v2133 = vshrl.u32 %v2132, 7
      %v2134 = vsub.s32 0, %v2133
      %v2135 = vrot.slane %v2093, %v2134
      %v2138 = vsel %vm1820, %v2129, 0
      %v2141 = vsel %vm1820, %v2130, 0
      %2143 = vmatprep.subr.mxu0 0.0
      %2144 = vmatpush1.msra.mxu0 %v2087
      %2145 = vmatprep.subr.mxu0 0.0
      %2146 = vmatpush1.msra.mxu0 %v2088
      %2147 = vmatprep.subr.mxu0 0.0
      %2148 = vmatpush1.msra.mxu0 %v2089
      %2149 = vmatprep.subr.mxu0 0.0
      %2150 = vmatpush1.msra.mxu0 %v2090
      %2151 = vmatprep.subr.mxu0 0.0
      %2152 = vmatpush1.msra.mxu0 %v2091
      %2153 = vmatprep.subr.mxu0 0.0
      %2154 = vmatpush1.msra.mxu0 %v2092
      %2155 = vmatprep.subr.mxu0 0.0
      %2156 = vmatpush1.msra.mxu0 0.0
      %2157 = vmatprep.subr.mxu0 0.0
      %2158 = vmatpush1.msra.mxu0 0.0
      %2159 = vmatprep.subr.mxu0 0.0
      %2160 = vmatpush1.msra.mxu0 0.0
      %2161 = vmatprep.subr.mxu0 0.0
      %2162 = vmatpush1.msra.mxu0 0.0
      %2163 = vmatprep.subr.mxu0 0.0
      %2164 = vmatpush1.msra.mxu0 0.0
      %2165 = vmatprep.subr.mxu0 0.0
      %2166 = vmatpush1.msra.mxu0 0.0
      %2167 = vmatprep.subr.mxu0 0.0
      %2168 = vmatpush1.msra.mxu0 0.0
      %2169 = vmatprep.subr.mxu0 0.0
      %2170 = vmatpush1.msra.mxu0 0.0
      %2171 = vmatprep.subr.mxu0 0.0
      %2172 = vmatpush1.msra.mxu0 0.0
      %2173 = vmatprep.subr.mxu0 0.0
      %2174 = vmatpush1.msra.mxu0 0.0
      %2175 = vmatprep.subr.mxu0 0.0
      %2176 = vmatpush1.msra.mxu0 0.0
      %2177 = vmatprep.subr.mxu0 0.0
      %2178 = vmatpush1.msra.mxu0 0.0
      %2179 = vmatprep.subr.mxu0 0.0
      %2180 = vmatpush1.msra.mxu0 0.0
      %2181 = vmatprep.subr.mxu0 0.0
      %2182 = vmatpush1.msra.mxu0 0.0
      %2183 = vmatprep.subr.mxu0 0.0
      %2184 = vmatpush1.msra.mxu0 0.0
      %2185 = vmatprep.subr.mxu0 0.0
      %2186 = vmatpush1.msra.mxu0 0.0
      %2187 = vmatprep.subr.mxu0 0.0
      %2188 = vmatpush1.msra.mxu0 0.0
      %2189 = vmatprep.subr.mxu0 0.0
      %2190 = vmatpush1.msra.mxu0 0.0
      %2191 = vmatprep.subr.mxu0 0.0
      %2192 = vmatpush1.msra.mxu0 0.0
      %2193 = vmatprep.subr.mxu0 0.0
      %2194 = vmatpush1.msra.mxu0 0.0
      %2195 = vmatprep.subr.mxu0 0.0
      %2196 = vmatpush1.msra.mxu0 0.0
      %2197 = vmatprep.subr.mxu0 0.0
      %2198 = vmatpush1.msra.mxu0 0.0
      %2199 = vmatprep.subr.mxu0 0.0
      %2200 = vmatpush1.msra.mxu0 0.0
      %2201 = vmatprep.subr.mxu0 0.0
      %2202 = vmatpush1.msra.mxu0 0.0
      %2203 = vmatprep.subr.mxu0 0.0
      %2204 = vmatpush1.msra.mxu0 0.0
      %2205 = vmatprep.subr.mxu0 0.0
      %2206 = vmatpush1.msra.mxu0 0.0
      %2207 = vmatprep.mubr.f32.mxu0 0.0
      %2208 = vmatmul.mubr.f32.gmra.mrb[0].mxu0 %v2138
      %v2209 = vpop.f32.mrb[0].mxu0
      %v2210 = vadd.f32 %v2135, %v2209
      %v2211 = vpop.f32.mrb[0].mxu0
      %2212 = vmatprep.mubr.f32.mxu0 0.0
      %2213 = vmatmul.mubr.f32.gmra.mrb[0].mxu0 %v2141
      %v2214 = vpop.f32.mrb[0].mxu0
      %v2215 = vadd.f32 %v2135, %v2214
      %v2216 = vpop.f32.mrb[0].mxu0
      %2217 = vdwg.mxu0
      %v2218 = vmax.f32 %v2210, 0.0
      %v2219 = vmax.f32 %v2215, 0.0
      %v2222 = vrot.slane %v2218, 1
      %v2223 = vrot.slane %v2219, 1
      %v2224 = vsel %vm999, %v2222, %v2223
      %2225 = vrot.lane.b32.xlu0 %v2224, 32
      %v2226 = vpop.permute.xlu0 %2225
      %2227 = vrot.lane.b32.xlu0 %v2223, 32
      %v2228 = vpop.permute.xlu0 %2227
      %v2231 = vrot.slane %v2218, 2
      %v2232 = vrot.slane %v2219, 2
      %v2233 = vsel %vm1051, %v2231, %v2232
      %2234 = vrot.lane.b32.xlu0 %v2233, 64
      %v2235 = vpop.permute.xlu0 %2234
      %2236 = vrot.lane.b32.xlu0 %v2232, 64
      %v2237 = vpop.permute.xlu0 %2236
      %v2240 = vsel %vm1809, %v2218, %v2226
      %v2241 = vsel %vm1809, %v2219, %v2228
      %vm2242 = vcmask 523264
      %v2243 = vsel %vm2242, %v2240, %v2235
      %v2244 = vsel %vm2242, %v2241, %v2237
      %v2246 = vlaneseq
      %v2247 = vshrl.u32 %v2246, 7
      %v2248 = vsub.s32 0, %v2247
      %v2249 = vrot.slane %v2106, %v2248
      %vm2251 = vcmask 785408
      %v2253 = vsel %vm2251, %v2243, 0
      %v2256 = vsel %vm2251, %v2244, 0
      %2258 = vmatprep.subr.mxu0 0.0
      %2259 = vmatpush1.msra.mxu0 %v2094
      %2260 = vmatprep.subr.mxu0 0.0
      %2261 = vmatpush1.msra.mxu0 %v2095
      %2262 = vmatprep.subr.mxu0 0.0
      %2263 = vmatpush1.msra.mxu0 %v2096
      %2264 = vmatprep.subr.mxu0 0.0
      %2265 = vmatpush1.msra.mxu0 %v2097
      %2266 = vmatprep.subr.mxu0 0.0
      %2267 = vmatpush1.msra.mxu0 %v2098
      %2268 = vmatprep.subr.mxu0 0.0
      %2269 = vmatpush1.msra.mxu0 %v2099
      %2270 = vmatprep.subr.mxu0 0.0
      %2271 = vmatpush1.msra.mxu0 %v2100
      %2272 = vmatprep.subr.mxu0 0.0
      %2273 = vmatpush1.msra.mxu0 %v2101
      %2274 = vmatprep.subr.mxu0 0.0
      %2275 = vmatpush1.msra.mxu0 %v2102
      %2276 = vmatprep.subr.mxu0 0.0
      %2277 = vmatpush1.msra.mxu0 %v2103
      %2278 = vmatprep.subr.mxu0 0.0
      %2279 = vmatpush1.msra.mxu0 %v2104
      %2280 = vmatprep.subr.mxu0 0.0
      %2281 = vmatpush1.msra.mxu0 %v2105
      %2282 = vmatprep.subr.mxu0 0.0
      %2283 = vmatpush1.msra.mxu0 0.0
      %2284 = vmatprep.subr.mxu0 0.0
      %2285 = vmatpush1.msra.mxu0 0.0
      %2286 = vmatprep.subr.mxu0 0.0
      %2287 = vmatpush1.msra.mxu0 0.0
      %2288 = vmatprep.subr.mxu0 0.0
      %2289 = vmatpush1.msra.mxu0 0.0
      %2290 = vmatprep.subr.mxu0 0.0
      %2291 = vmatpush1.msra.mxu0 0.0
      %2292 = vmatprep.subr.mxu0 0.0
      %2293 = vmatpush1.msra.mxu0 0.0
      %2294 = vmatprep.subr.mxu0 0.0
      %2295 = vmatpush1.msra.mxu0 0.0
      %2296 = vmatprep.subr.mxu0 0.0
      %2297 = vmatpush1.msra.mxu0 0.0
      %2298 = vmatprep.subr.mxu0 0.0
      %2299 = vmatpush1.msra.mxu0 0.0
      %2300 = vmatprep.subr.mxu0 0.0
      %2301 = vmatpush1.msra.mxu0 0.0
      %2302 = vmatprep.subr.mxu0 0.0
      %2303 = vmatpush1.msra.mxu0 0.0
      %2304 = vmatprep.subr.mxu0 0.0
      %2305 = vmatpush1.msra.mxu0 0.0
      %2306 = vmatprep.subr.mxu0 0.0
      %2307 = vmatpush1.msra.mxu0 0.0
      %2308 = vmatprep.subr.mxu0 0.0
      %2309 = vmatpush1.msra.mxu0 0.0
      %2310 = vmatprep.subr.mxu0 0.0
      %2311 = vmatpush1.msra.mxu0 0.0
      %2312 = vmatprep.subr.mxu0 0.0
      %2313 = vmatpush1.msra.mxu0 0.0
      %2314 = vmatprep.subr.mxu0 0.0
      %2315 = vmatpush1.msra.mxu0 0.0
      %2316 = vmatprep.subr.mxu0 0.0
      %2317 = vmatpush1.msra.mxu0 0.0
      %2318 = vmatprep.subr.mxu0 0.0
      %2319 = vmatpush1.msra.mxu0 0.0
      %2320 = vmatprep.subr.mxu0 0.0
      %2321 = vmatpush1.msra.mxu0 0.0
      %2322 = vmatprep.mubr.f32.mxu0 0.0
      %2323 = vmatmul.mubr.f32.gmra.mrb[0].mxu0 %v2253
      %v2324 = vpop.f32.mrb[0].mxu0
      %v2325 = vadd.f32 %v2249, %v2324
      %v2326 = vpop.f32.mrb[0].mxu0
      %2327 = vmatprep.mubr.f32.mxu0 0.0
      %2328 = vmatmul.mubr.f32.gmra.mrb[0].mxu0 %v2256
      %v2329 = vpop.f32.mrb[0].mxu0
      %v2330 = vadd.f32 %v2249, %v2329
      %v2331 = vpop.f32.mrb[0].mxu0
      %2332 = vdwg.mxu0
      %v2333 = vmax.f32 %v2325, 0.0
      %v2334 = vmax.f32 %v2330, 0.0
      %v2335 = vld [vmem:[%s27] sm:$0xff]
      %v2336 = vld [vmem:[%s27 + $0x8] sm:$0xff]
      %v2337 = vld [vmem:[%s27 + $0x10] sm:$0xff]
      %v2338 = vld [vmem:[%s27 + $0x18] sm:$0xff]
      %v2339 = vld [vmem:[%s29] sm:$0xff]
      %v2340 = vld [vmem:[%s29 + $0x8] sm:$0xff]
      %v2341 = vld [vmem:[%s29 + $0x10] sm:$0xff]
      %v2342 = vld [vmem:[%s29 + $0x18] sm:$0xff]
      %v2343 = vld [vmem:[%s31] sm:$0x1]
      %v2344 = vld [vmem:[%s33] sm:$0xff]
      %v2345 = vld [vmem:[%s33 + $0x8] sm:$0xff]
      %v2346 = vld [vmem:[%s33 + $0x10] sm:$0xff]
      %v2347 = vld [vmem:[%s33 + $0x18] sm:$0xff]
      %v2348 = vld [vmem:[%s33 + $0x20] sm:$0xff]
      %v2349 = vld [vmem:[%s33 + $0x28] sm:$0xff]
      %v2350 = vld [vmem:[%s33 + $0x30] sm:$0xff]
      %v2351 = vld [vmem:[%s33 + $0x38] sm:$0xff]
      %v2352 = vld [vmem:[%s33 + $0x40] sm:$0xff]
      %v2353 = vld [vmem:[%s33 + $0x48] sm:$0xff]
      %v2354 = vld [vmem:[%s33 + $0x50] sm:$0xff]
      %v2355 = vld [vmem:[%s33 + $0x58] sm:$0xff]
      %v2356 = vld [vmem:[%s35] sm:$0x1]
      %v2357 = vld [vmem:[%s37] sm:$0xff]
      %v2358 = vld [vmem:[%s37 + $0x8] sm:$0xff]
      %v2359 = vld [vmem:[%s37 + $0x10] sm:$0xff]
      %v2360 = vld [vmem:[%s37 + $0x18] sm:$0xff]
      %v2361 = vld [vmem:[%s37 + $0x20] sm:$0xff]
      %v2362 = vld [vmem:[%s37 + $0x28] sm:$0xff]
      %v2363 = vld [vmem:[%s39] sm:$0x1]
      %v2365 = vlaneseq
      %v2366 = vshrl.u32 %v2365, 7
      %v2367 = vsub.s32 0, %v2366
      %v2368 = vrot.slane %v2343, %v2367
      %v2371 = vsel %vm1809, %v2333, 0
      %v2374 = vsel %vm1809, %v2334, 0
      %2376 = vmatprep.subr.mxu0 0.0
      %2377 = vmatpush1.msra.mxu0 %v2335
      %2378 = vmatprep.subr.mxu0 0.0
      %2379 = vmatpush1.msra.mxu0 %v2336
      %2380 = vmatprep.subr.mxu0 0.0
      %2381 = vmatpush1.msra.mxu0 %v2337
      %2382 = vmatprep.subr.mxu0 0.0
      %2383 = vmatpush1.msra.mxu0 %v2338
      %2384 = vmatprep.subr.mxu0 0.0
      %2385 = vmatpush1.msra.mxu0 0.0
      %2386 = vmatprep.subr.mxu0 0.0
      %2387 = vmatpush1.msra.mxu0 0.0
      %2388 = vmatprep.subr.mxu0 0.0
      %2389 = vmatpush1.msra.mxu0 0.0
      %2390 = vmatprep.subr.mxu0 0.0
      %2391 = vmatpush1.msra.mxu0 0.0
      %2392 = vmatprep.subr.mxu0 0.0
      %2393 = vmatpush1.msra.mxu0 0.0
      %2394 = vmatprep.subr.mxu0 0.0
      %2395 = vmatpush1.msra.mxu0 0.0
      %2396 = vmatprep.subr.mxu0 0.0
      %2397 = vmatpush1.msra.mxu0 0.0
      %2398 = vmatprep.subr.mxu0 0.0
      %2399 = vmatpush1.msra.mxu0 0.0
      %2400 = vmatprep.subr.mxu0 0.0
      %2401 = vmatpush1.msra.mxu0 0.0
      %2402 = vmatprep.subr.mxu0 0.0
      %2403 = vmatpush1.msra.mxu0 0.0
      %2404 = vmatprep.subr.mxu0 0.0
      %2405 = vmatpush1.msra.mxu0 0.0
      %2406 = vmatprep.subr.mxu0 0.0
      %2407 = vmatpush1.msra.mxu0 0.0
      %2408 = vmatprep.subr.mxu0 0.0
      %2409 = vmatpush1.msra.mxu0 0.0
      %2410 = vmatprep.subr.mxu0 0.0
      %2411 = vmatpush1.msra.mxu0 0.0
      %2412 = vmatprep.subr.mxu0 0.0
      %2413 = vmatpush1.msra.mxu0 0.0
      %2414 = vmatprep.subr.mxu0 0.0
      %2415 = vmatpush1.msra.mxu0 0.0
      %2416 = vmatprep.subr.mxu0 0.0
      %2417 = vmatpush1.msra.mxu0 0.0
      %2418 = vmatprep.subr.mxu0 0.0
      %2419 = vmatpush1.msra.mxu0 0.0
      %2420 = vmatprep.subr.mxu0 0.0
      %2421 = vmatpush1.msra.mxu0 0.0
      %2422 = vmatprep.subr.mxu0 0.0
      %2423 = vmatpush1.msra.mxu0 0.0
      %2424 = vmatprep.subr.mxu0 0.0
      %2425 = vmatpush1.msra.mxu0 0.0
      %2426 = vmatprep.subr.mxu0 0.0
      %2427 = vmatpush1.msra.mxu0 0.0
      %2428 = vmatprep.subr.mxu0 0.0
      %2429 = vmatpush1.msra.mxu0 0.0
      %2430 = vmatprep.subr.mxu0 0.0
      %2431 = vmatpush1.msra.mxu0 0.0
      %2432 = vmatprep.subr.mxu0 0.0
      %2433 = vmatpush1.msra.mxu0 0.0
      %2434 = vmatprep.subr.mxu0 0.0
      %2435 = vmatpush1.msra.mxu0 0.0
      %2436 = vmatprep.subr.mxu0 0.0
      %2437 = vmatpush1.msra.mxu0 0.0
      %2438 = vmatprep.subr.mxu0 0.0
      %2439 = vmatpush1.msra.mxu0 0.0
      %2440 = vmatprep.mubr.f32.mxu0 0.0
      %2441 = vmatmul.mubr.f32.gmra.mrb[0].mxu0 %v2371
      %v2442 = vpop.f32.mrb[0].mxu0
      %v2443 = vadd.f32 %v2368, %v2442
      %v2444 = vpop.f32.mrb[0].mxu0
      %2445 = vmatprep.mubr.f32.mxu0 0.0
      %2446 = vmatmul.mubr.f32.gmra.mrb[0].mxu0 %v2374
      %v2447 = vpop.f32.mrb[0].mxu0
      %v2448 = vadd.f32 %v2368, %v2447
      %v2449 = vpop.f32.mrb[0].mxu0
      %2450 = vdwg.mxu0
      %v2451 = vmax.f32 %v2443, 0.0
      %v2452 = vmax.f32 %v2448, 0.0
      %2453 = vmatprep.subr.mxu0 0.0
      %2454 = vmatpush1.msra.mxu0 %v2339
      %2455 = vmatprep.subr.mxu0 0.0
      %2456 = vmatpush1.msra.mxu0 %v2340
      %2457 = vmatprep.subr.mxu0 0.0
      %2458 = vmatpush1.msra.mxu0 %v2341
      %2459 = vmatprep.subr.mxu0 0.0
      %2460 = vmatpush1.msra.mxu0 %v2342
      %2461 = vmatprep.subr.mxu0 0.0
      %2462 = vmatpush1.msra.mxu0 0.0
      %2463 = vmatprep.subr.mxu0 0.0
      %2464 = vmatpush1.msra.mxu0 0.0
      %2465 = vmatprep.subr.mxu0 0.0
      %2466 = vmatpush1.msra.mxu0 0.0
      %2467 = vmatprep.subr.mxu0 0.0
      %2468 = vmatpush1.msra.mxu0 0.0
      %2469 = vmatprep.subr.mxu0 0.0
      %2470 = vmatpush1.msra.mxu0 0.0
      %2471 = vmatprep.subr.mxu0 0.0
      %2472 = vmatpush1.msra.mxu0 0.0
      %2473 = vmatprep.subr.mxu0 0.0
      %2474 = vmatpush1.msra.mxu0 0.0
      %2475 = vmatprep.subr.mxu0 0.0
      %2476 = vmatpush1.msra.mxu0 0.0
      %2477 = vmatprep.subr.mxu0 0.0
      %2478 = vmatpush1.msra.mxu0 0.0
      %2479 = vmatprep.subr.mxu0 0.0
      %2480 = vmatpush1.msra.mxu0 0.0
      %2481 = vmatprep.subr.mxu0 0.0
      %2482 = vmatpush1.msra.mxu0 0.0
      %2483 = vmatprep.subr.mxu0 0.0
      %2484 = vmatpush1.msra.mxu0 0.0
      %2485 = vmatprep.subr.mxu0 0.0
      %2486 = vmatpush1.msra.mxu0 0.0
      %2487 = vmatprep.subr.mxu0 0.0
      %2488 = vmatpush1.msra.mxu0 0.0
      %2489 = vmatprep.subr.mxu0 0.0
      %2490 = vmatpush1.msra.mxu0 0.0
      %2491 = vmatprep.subr.mxu0 0.0
      %2492 = vmatpush1.msra.mxu0 0.0
      %2493 = vmatprep.subr.mxu0 0.0
      %2494 = vmatpush1.msra.mxu0 0.0
      %2495 = vmatprep.subr.mxu0 0.0
      %2496 = vmatpush1.msra.mxu0 0.0
      %2497 = vmatprep.subr.mxu0 0.0
      %2498 = vmatpush1.msra.mxu0 0.0
      %2499 = vmatprep.subr.mxu0 0.0
      %2500 = vmatpush1.msra.mxu0 0.0
      %2501 = vmatprep.subr.mxu0 0.0
      %2502 = vmatpush1.msra.mxu0 0.0
      %2503 = vmatprep.subr.mxu0 0.0
      %2504 = vmatpush1.msra.mxu0 0.0
      %2505 = vmatprep.subr.mxu0 0.0
      %2506 = vmatpush1.msra.mxu0 0.0
      %2507 = vmatprep.subr.mxu0 0.0
      %2508 = vmatpush1.msra.mxu0 0.0
      %2509 = vmatprep.subr.mxu0 0.0
      %2510 = vmatpush1.msra.mxu0 0.0
      %2511 = vmatprep.subr.mxu0 0.0
      %2512 = vmatpush1.msra.mxu0 0.0
      %2513 = vmatprep.subr.mxu0 0.0
      %2514 = vmatpush1.msra.mxu0 0.0
      %2515 = vmatprep.subr.mxu0 0.0
      %2516 = vmatpush1.msra.mxu0 0.0
      %2517 = vmatprep.mubr.f32.mxu0 0.0
      %2518 = vmatmul.mubr.f32.gmra.mrb[0].mxu0 %v2371
      %v2519 = vpop.f32.mrb[0].mxu0
      %v2520 = vadd.f32 %v2368, %v2519
      %v2521 = vpop.f32.mrb[0].mxu0
      %2522 = vmatprep.mubr.f32.mxu0 0.0
      %2523 = vmatmul.mubr.f32.gmra.mrb[0].mxu0 %v2374
      %v2524 = vpop.f32.mrb[0].mxu0
      %v2525 = vadd.f32 %v2368, %v2524
      %v2526 = vpop.f32.mrb[0].mxu0
      %2527 = vdwg.mxu0
      %v2528 = vmax.f32 %v2520, 0.0
      %v2529 = vmax.f32 %v2525, 0.0
      %v2530 = vmul.u32 %v1359, 2
      %vm2531 = vcmp.eq.s32.totalorder %v1354, %v2530
      %vm2532 = vcmp.eq.s32.totalorder %v1355, %v2530
      %vm2533 = vcmp.eq.s32.totalorder %v1356, %v2530
      %v2534 = vsel %vm2531, 1, 0
      %v2535 = vsel %vm2532, 1, 0
      %v2536 = vsel %vm2533, 1, 0
      %v2537 = vcvt.s32.f32 %v2534
      %v2538 = vcvt.s32.f32 %v2535
      %v2539 = vcvt.s32.f32 %v2536
      %v2540 = vadd.s32 %v2530, 1
      %vm2541 = vcmp.eq.s32.totalorder %v1354, %v2540
      %vm2542 = vcmp.eq.s32.totalorder %v1355, %v2540
      %vm2543 = vcmp.eq.s32.totalorder %v1356, %v2540
      %v2544 = vsel %vm2541, 1, 0
      %v2545 = vsel %vm2542, 1, 0
      %v2546 = vsel %vm2543, 1, 0
      %v2547 = vcvt.s32.f32 %v2544
      %v2548 = vcvt.s32.f32 %v2545
      %v2549 = vcvt.s32.f32 %v2546
      %vm2550 = vcmask 72704
      %v2552 = vsel %vm2550, %v2547, 0
      %v2555 = vsel %vm2550, %v2548, 0
      %v2558 = vsel %vm2550, %v2549, 0
      %vm2560 = vcmask 1040384
      %v2562 = vsel %vm2560, %v2529, 0
      %2564 = vmatprep.subr.mxu0 0.0
      %2565 = vmatpush1.msra.mxu0 %v2528
      %2566 = vmatprep.subr.mxu0 0.0
      %2567 = vmatpush1.msra.mxu0 %v2562
      %2568 = vmatprep.subr.mxu0 0.0
      %2569 = vmatpush1.msra.mxu0 0.0
      %2570 = vmatprep.subr.mxu0 0.0
      %2571 = vmatpush1.msra.mxu0 0.0
      %2572 = vmatprep.subr.mxu0 0.0
      %2573 = vmatpush1.msra.mxu0 0.0
      %2574 = vmatprep.subr.mxu0 0.0
      %2575 = vmatpush1.msra.mxu0 0.0
      %2576 = vmatprep.subr.mxu0 0.0
      %2577 = vmatpush1.msra.mxu0 0.0
      %2578 = vmatprep.subr.mxu0 0.0
      %2579 = vmatpush1.msra.mxu0 0.0
      %2580 = vmatprep.subr.mxu0 0.0
      %2581 = vmatpush1.msra.mxu0 0.0
      %2582 = vmatprep.subr.mxu0 0.0
      %2583 = vmatpush1.msra.mxu0 0.0
      %2584 = vmatprep.subr.mxu0 0.0
      %2585 = vmatpush1.msra.mxu0 0.0
      %2586 = vmatprep.subr.mxu0 0.0
      %2587 = vmatpush1.msra.mxu0 0.0
      %2588 = vmatprep.subr.mxu0 0.0
      %2589 = vmatpush1.msra.mxu0 0.0
      %2590 = vmatprep.subr.mxu0 0.0
      %2591 = vmatpush1.msra.mxu0 0.0
      %2592 = vmatprep.subr.mxu0 0.0
      %2593 = vmatpush1.msra.mxu0 0.0
      %2594 = vmatprep.subr.mxu0 0.0
      %2595 = vmatpush1.msra.mxu0 0.0
      %2596 = vmatprep.subr.mxu0 0.0
      %2597 = vmatpush1.msra.mxu0 0.0
      %2598 = vmatprep.subr.mxu0 0.0
      %2599 = vmatpush1.msra.mxu0 0.0
      %2600 = vmatprep.subr.mxu0 0.0
      %2601 = vmatpush1.msra.mxu0 0.0
      %2602 = vmatprep.subr.mxu0 0.0
      %2603 = vmatpush1.msra.mxu0 0.0
      %2604 = vmatprep.subr.mxu0 0.0
      %2605 = vmatpush1.msra.mxu0 0.0
      %2606 = vmatprep.subr.mxu0 0.0
      %2607 = vmatpush1.msra.mxu0 0.0
      %2608 = vmatprep.subr.mxu0 0.0
      %2609 = vmatpush1.msra.mxu0 0.0
      %2610 = vmatprep.subr.mxu0 0.0
      %2611 = vmatpush1.msra.mxu0 0.0
      %2612 = vmatprep.subr.mxu0 0.0
      %2613 = vmatpush1.msra.mxu0 0.0
      %2614 = vmatprep.subr.mxu0 0.0
      %2615 = vmatpush1.msra.mxu0 0.0
      %2616 = vmatprep.subr.mxu0 0.0
      %2617 = vmatpush1.msra.mxu0 0.0
      %2618 = vmatprep.subr.mxu0 0.0
      %2619 = vmatpush1.msra.mxu0 0.0
      %2620 = vmatprep.subr.mxu0 0.0
      %2621 = vmatpush1.msra.mxu0 0.0
      %2622 = vmatprep.subr.mxu0 0.0
      %2623 = vmatpush1.msra.mxu0 0.0
      %2624 = vmatprep.subr.mxu0 0.0
      %2625 = vmatpush1.msra.mxu0 0.0
      %2626 = vmatprep.subr.mxu0 0.0
      %2627 = vmatpush1.msra.mxu0 0.0
      %2628 = vmatprep.mubr.f32.mxu0 0.0
      %2629 = vmatmul.mubr.f32.gmra.mrb[0].mxu0 %v2552
      %v2630 = vpop.f32.mrb[0].mxu0
      %v2631 = vadd.f32 0.0, %v2630
      %v2632 = vpop.f32.mrb[0].mxu0
      %2633 = vmatprep.mubr.f32.mxu0 0.0
      %2634 = vmatmul.mubr.f32.gmra.mrb[0].mxu0 %v2555
      %v2635 = vpop.f32.mrb[0].mxu0
      %v2636 = vadd.f32 0.0, %v2635
      %v2637 = vpop.f32.mrb[0].mxu0
      %2638 = vmatprep.mubr.f32.mxu0 0.0
      %2639 = vmatmul.mubr.f32.gmra.mrb[0].mxu0 %v2558
      %v2640 = vpop.f32.mrb[0].mxu0
      %v2641 = vadd.f32 0.0, %v2640
      %v2642 = vpop.f32.mrb[0].mxu0
      %2643 = vdwg.mxu0
      %v2645 = vsel %vm2550, %v2537, 0
      %v2648 = vsel %vm2550, %v2538, 0
      %v2651 = vsel %vm2550, %v2539, 0
      %v2654 = vsel %vm2560, %v2452, 0
      %2656 = vmatprep.subr.mxu0 0.0
      %2657 = vmatpush1.msra.mxu0 %v2451
      %2658 = vmatprep.subr.mxu0 0.0
      %2659 = vmatpush1.msra.mxu0 %v2654
      %2660 = vmatprep.subr.mxu0 0.0
      %2661 = vmatpush1.msra.mxu0 0.0
      %2662 = vmatprep.subr.mxu0 0.0
      %2663 = vmatpush1.msra.mxu0 0.0
      %2664 = vmatprep.subr.mxu0 0.0
      %2665 = vmatpush1.msra.mxu0 0.0
      %2666 = vmatprep.subr.mxu0 0.0
      %2667 = vmatpush1.msra.mxu0 0.0
      %2668 = vmatprep.subr.mxu0 0.0
      %2669 = vmatpush1.msra.mxu0 0.0
      %2670 = vmatprep.subr.mxu0 0.0
      %2671 = vmatpush1.msra.mxu0 0.0
      %2672 = vmatprep.subr.mxu0 0.0
      %2673 = vmatpush1.msra.mxu0 0.0
      %2674 = vmatprep.subr.mxu0 0.0
      %2675 = vmatpush1.msra.mxu0 0.0
      %2676 = vmatprep.subr.mxu0 0.0
      %2677 = vmatpush1.msra.mxu0 0.0
      %2678 = vmatprep.subr.mxu0 0.0
      %2679 = vmatpush1.msra.mxu0 0.0
      %2680 = vmatprep.subr.mxu0 0.0
      %2681 = vmatpush1.msra.mxu0 0.0
      %2682 = vmatprep.subr.mxu0 0.0
      %2683 = vmatpush1.msra.mxu0 0.0
      %2684 = vmatprep.subr.mxu0 0.0
      %2685 = vmatpush1.msra.mxu0 0.0
      %2686 = vmatprep.subr.mxu0 0.0
      %2687 = vmatpush1.msra.mxu0 0.0
      %2688 = vmatprep.subr.mxu0 0.0
      %2689 = vmatpush1.msra.mxu0 0.0
      %2690 = vmatprep.subr.mxu0 0.0
      %2691 = vmatpush1.msra.mxu0 0.0
      %2692 = vmatprep.subr.mxu0 0.0
      %2693 = vmatpush1.msra.mxu0 0.0
      %2694 = vmatprep.subr.mxu0 0.0
      %2695 = vmatpush1.msra.mxu0 0.0
      %2696 = vmatprep.subr.mxu0 0.0
      %2697 = vmatpush1.msra.mxu0 0.0
      %2698 = vmatprep.subr.mxu0 0.0
      %2699 = vmatpush1.msra.mxu0 0.0
      %2700 = vmatprep.subr.mxu0 0.0
      %2701 = vmatpush1.msra.mxu0 0.0
      %2702 = vmatprep.subr.mxu0 0.0
      %2703 = vmatpush1.msra.mxu0 0.0
      %2704 = vmatprep.subr.mxu0 0.0
      %2705 = vmatpush1.msra.mxu0 0.0
      %2706 = vmatprep.subr.mxu0 0.0
      %2707 = vmatpush1.msra.mxu0 0.0
      %2708 = vmatprep.subr.mxu0 0.0
      %2709 = vmatpush1.msra.mxu0 0.0
      %2710 = vmatprep.subr.mxu0 0.0
      %2711 = vmatpush1.msra.mxu0 0.0
      %2712 = vmatprep.subr.mxu0 0.0
      %2713 = vmatpush1.msra.mxu0 0.0
      %2714 = vmatprep.subr.mxu0 0.0
      %2715 = vmatpush1.msra.mxu0 0.0
      %2716 = vmatprep.subr.mxu0 0.0
      %2717 = vmatpush1.msra.mxu0 0.0
      %2718 = vmatprep.subr.mxu0 0.0
      %2719 = vmatpush1.msra.mxu0 0.0
      %2720 = vmatprep.mubr.f32.mxu0 0.0
      %2721 = vmatmul.mubr.f32.gmra.mrb[0].mxu0 %v2645
      %v2722 = vpop.f32.mrb[0].mxu0
      %v2723 = vadd.f32 %v2631, %v2722
      %v2724 = vpop.f32.mrb[0].mxu0
      %2725 = vmatprep.mubr.f32.mxu0 0.0
      %2726 = vmatmul.mubr.f32.gmra.mrb[0].mxu0 %v2648
      %v2727 = vpop.f32.mrb[0].mxu0
      %v2728 = vadd.f32 %v2636, %v2727
      %v2729 = vpop.f32.mrb[0].mxu0
      %2730 = vmatprep.mubr.f32.mxu0 0.0
      %2731 = vmatmul.mubr.f32.gmra.mrb[0].mxu0 %v2651
      %v2732 = vpop.f32.mrb[0].mxu0
      %v2733 = vadd.f32 %v2641, %v2732
      %v2734 = vpop.f32.mrb[0].mxu0
      %2735 = vdwg.mxu0
      %v2739 = vrot.slane %v2723, 4
      %v2740 = vrot.slane %v2728, 4
      %v2741 = vsel %vm1405, %v2739, %v2740
      %v2742 = vrot.slane %v2733, 4
      %v2743 = vsel %vm1405, %v2740, %v2742
      %2744 = vrot.lane.b32.xlu0 %v2739, 16
      %v2745 = vpop.permute.xlu0 %2744
      %2746 = vrot.lane.b32.xlu0 %v2741, 16
      %v2747 = vpop.permute.xlu0 %2746
      %2748 = vrot.lane.b32.xlu0 %v2743, 16
      %v2749 = vpop.permute.xlu0 %2748
      %v2753 = vsel %vm1200, %v1918, %v2745
      %v2754 = vsel %vm1200, %v1919, %v2747
      %v2755 = vsel %vm1200, %v1920, %v2749
      %v2759 = vrot.slane %v2753, 1
      %v2760 = vrot.slane %v2754, 1
      %v2761 = vsel %vm999, %v2759, %v2760
      %v2762 = vrot.slane %v2755, 1
      %v2763 = vsel %vm999, %v2760, %v2762
      %2764 = vrot.lane.b32.xlu0 %v2761, 32
      %v2765 = vpop.permute.xlu0 %2764
      %2766 = vrot.lane.b32.xlu0 %v2763, 32
      %v2767 = vpop.permute.xlu0 %2766
      %2768 = vrot.lane.b32.xlu0 %v2762, 32
      %v2769 = vpop.permute.xlu0 %2768
      %v2773 = vrot.slane %v2753, 2
      %v2774 = vrot.slane %v2754, 2
      %v2775 = vsel %vm1051, %v2773, %v2774
      %v2776 = vrot.slane %v2755, 2
      %v2777 = vsel %vm1051, %v2774, %v2776
      %2778 = vrot.lane.b32.xlu0 %v2775, 64
      %v2779 = vpop.permute.xlu0 %2778
      %2780 = vrot.lane.b32.xlu0 %v2777, 64
      %v2781 = vpop.permute.xlu0 %2780
      %2782 = vrot.lane.b32.xlu0 %v2776, 64
      %v2783 = vpop.permute.xlu0 %2782
      %v2787 = vsel %vm1809, %v2753, %v2765
      %v2788 = vsel %vm1809, %v2754, %v2767
      %v2789 = vsel %vm1809, %v2755, %v2769
      %v2790 = vsel %vm2242, %v2787, %v2779
      %v2791 = vsel %vm2242, %v2788, %v2781
      %v2792 = vsel %vm2242, %v2789, %v2783
      %v2794 = vlaneseq
      %v2795 = vshrl.u32 %v2794, 7
      %v2796 = vsub.s32 0, %v2795
      %v2797 = vrot.slane %v2356, %v2796
      %v2802 = vrot.slane %v2790, 4
      %v2803 = vrot.slane %v2791, 4
      %v2804 = vsel %vm1405, %v2802, %v2803
      %v2805 = vrot.slane %v2792, 4
      %v2806 = vsel %vm1405, %v2803, %v2805
      %v2807 = vsel %vm2251, %v2804, 0
      %v2809 = vsel %vm2251, %v2806, 0
      %2811 = vmatprep.subr.mxu0 0.0
      %2812 = vmatpush1.msra.mxu0 %v2344
      %2813 = vmatprep.subr.mxu0 0.0
      %2814 = vmatpush1.msra.mxu0 %v2345
      %2815 = vmatprep.subr.mxu0 0.0
      %2816 = vmatpush1.msra.mxu0 %v2346
      %2817 = vmatprep.subr.mxu0 0.0
      %2818 = vmatpush1.msra.mxu0 %v2347
      %2819 = vmatprep.subr.mxu0 0.0
      %2820 = vmatpush1.msra.mxu0 %v2348
      %2821 = vmatprep.subr.mxu0 0.0
      %2822 = vmatpush1.msra.mxu0 %v2349
      %2823 = vmatprep.subr.mxu0 0.0
      %2824 = vmatpush1.msra.mxu0 %v2350
      %2825 = vmatprep.subr.mxu0 0.0
      %2826 = vmatpush1.msra.mxu0 %v2351
      %2827 = vmatprep.subr.mxu0 0.0
      %2828 = vmatpush1.msra.mxu0 %v2352
      %2829 = vmatprep.subr.mxu0 0.0
      %2830 = vmatpush1.msra.mxu0 %v2353
      %2831 = vmatprep.subr.mxu0 0.0
      %2832 = vmatpush1.msra.mxu0 %v2354
      %2833 = vmatprep.subr.mxu0 0.0
      %2834 = vmatpush1.msra.mxu0 %v2355
      %2835 = vmatprep.subr.mxu0 0.0
      %2836 = vmatpush1.msra.mxu0 0.0
      %2837 = vmatprep.subr.mxu0 0.0
      %2838 = vmatpush1.msra.mxu0 0.0
      %2839 = vmatprep.subr.mxu0 0.0
      %2840 = vmatpush1.msra.mxu0 0.0
      %2841 = vmatprep.subr.mxu0 0.0
      %2842 = vmatpush1.msra.mxu0 0.0
      %2843 = vmatprep.subr.mxu0 0.0
      %2844 = vmatpush1.msra.mxu0 0.0
      %2845 = vmatprep.subr.mxu0 0.0
      %2846 = vmatpush1.msra.mxu0 0.0
      %2847 = vmatprep.subr.mxu0 0.0
      %2848 = vmatpush1.msra.mxu0 0.0
      %2849 = vmatprep.subr.mxu0 0.0
      %2850 = vmatpush1.msra.mxu0 0.0
      %2851 = vmatprep.subr.mxu0 0.0
      %2852 = vmatpush1.msra.mxu0 0.0
      %2853 = vmatprep.subr.mxu0 0.0
      %2854 = vmatpush1.msra.mxu0 0.0
      %2855 = vmatprep.subr.mxu0 0.0
      %2856 = vmatpush1.msra.mxu0 0.0
      %2857 = vmatprep.subr.mxu0 0.0
      %2858 = vmatpush1.msra.mxu0 0.0
      %2859 = vmatprep.subr.mxu0 0.0
      %2860 = vmatpush1.msra.mxu0 0.0
      %2861 = vmatprep.subr.mxu0 0.0
      %2862 = vmatpush1.msra.mxu0 0.0
      %2863 = vmatprep.subr.mxu0 0.0
      %2864 = vmatpush1.msra.mxu0 0.0
      %2865 = vmatprep.subr.mxu0 0.0
      %2866 = vmatpush1.msra.mxu0 0.0
      %2867 = vmatprep.subr.mxu0 0.0
      %2868 = vmatpush1.msra.mxu0 0.0
      %2869 = vmatprep.subr.mxu0 0.0
      %2870 = vmatpush1.msra.mxu0 0.0
      %2871 = vmatprep.subr.mxu0 0.0
      %2872 = vmatpush1.msra.mxu0 0.0
      %2873 = vmatprep.subr.mxu0 0.0
      %2874 = vmatpush1.msra.mxu0 0.0
      %2875 = vmatprep.mubr.f32.mxu0 0.0
      %2876 = vmatmul.mubr.f32.gmra.mrb[0].mxu0 %v2807
      %v2877 = vpop.f32.mrb[0].mxu0
      %v2878 = vadd.f32 %v2797, %v2877
      %v2879 = vpop.f32.mrb[0].mxu0
      %2880 = vmatprep.mubr.f32.mxu0 0.0
      %2881 = vmatmul.mubr.f32.gmra.mrb[0].mxu0 %v2809
      %v2882 = vpop.f32.mrb[0].mxu0
      %v2883 = vadd.f32 %v2797, %v2882
      %v2884 = vpop.f32.mrb[0].mxu0
      %2885 = vdwg.mxu0
      %v2886 = vmax.f32 %v2878, 0.0
      %v2887 = vmax.f32 %v2883, 0.0
      %v2890 = vrot.slane %v2886, 1
      %v2891 = vrot.slane %v2887, 1
      %v2892 = vsel %vm999, %v2890, %v2891
      %2893 = vrot.lane.b32.xlu0 %v2892, 16
      %v2894 = vpop.permute.xlu0 %2893
      %2895 = vrot.lane.b32.xlu0 %v2891, 16
      %v2896 = vpop.permute.xlu0 %2895
      %v2899 = vrot.slane %v2886, 2
      %v2900 = vrot.slane %v2887, 2
      %v2901 = vsel %vm1051, %v2899, %v2900
      %2902 = vrot.lane.b32.xlu0 %v2901, 32
      %v2903 = vpop.permute.xlu0 %2902
      %2904 = vrot.lane.b32.xlu0 %v2900, 32
      %v2905 = vpop.permute.xlu0 %2904
      %v2908 = vsel %vm1200, %v2886, %v2894
      %v2909 = vsel %vm1200, %v2887, %v2896
      %v2910 = vsel %vm1809, %v2908, %v2903
      %v2911 = vsel %vm1809, %v2909, %v2905
      %v2913 = vlaneseq
      %v2914 = vshrl.u32 %v2913, 7
      %v2915 = vsub.s32 0, %v2914
      %v2916 = vrot.slane %v2363, %v2915
      %v2919 = vsel %vm1820, %v2910, 0
      %v2922 = vsel %vm1820, %v2911, 0
      %2924 = vmatprep.subr.mxu0 0.0
      %2925 = vmatpush1.msra.mxu0 %v2357
      %2926 = vmatprep.subr.mxu0 0.0
      %2927 = vmatpush1.msra.mxu0 %v2358
      %2928 = vmatprep.subr.mxu0 0.0
      %2929 = vmatpush1.msra.mxu0 %v2359
      %2930 = vmatprep.subr.mxu0 0.0
      %2931 = vmatpush1.msra.mxu0 %v2360
      %2932 = vmatprep.subr.mxu0 0.0
      %2933 = vmatpush1.msra.mxu0 %v2361
      %2934 = vmatprep.subr.mxu0 0.0
      %2935 = vmatpush1.msra.mxu0 %v2362
      %2936 = vmatprep.subr.mxu0 0.0
      %2937 = vmatpush1.msra.mxu0 0.0
      %2938 = vmatprep.subr.mxu0 0.0
      %2939 = vmatpush1.msra.mxu0 0.0
      %2940 = vmatprep.subr.mxu0 0.0
      %2941 = vmatpush1.msra.mxu0 0.0
      %2942 = vmatprep.subr.mxu0 0.0
      %2943 = vmatpush1.msra.mxu0 0.0
      %2944 = vmatprep.subr.mxu0 0.0
      %2945 = vmatpush1.msra.mxu0 0.0
      %2946 = vmatprep.subr.mxu0 0.0
      %2947 = vmatpush1.msra.mxu0 0.0
      %2948 = vmatprep.subr.mxu0 0.0
      %2949 = vmatpush1.msra.mxu0 0.0
      %2950 = vmatprep.subr.mxu0 0.0
      %2951 = vmatpush1.msra.mxu0 0.0
      %2952 = vmatprep.subr.mxu0 0.0
      %2953 = vmatpush1.msra.mxu0 0.0
      %2954 = vmatprep.subr.mxu0 0.0
      %2955 = vmatpush1.msra.mxu0 0.0
      %2956 = vmatprep.subr.mxu0 0.0
      %2957 = vmatpush1.msra.mxu0 0.0
      %2958 = vmatprep.subr.mxu0 0.0
      %2959 = vmatpush1.msra.mxu0 0.0
      %2960 = vmatprep.subr.mxu0 0.0
      %2961 = vmatpush1.msra.mxu0 0.0
      %2962 = vmatprep.subr.mxu0 0.0
      %2963 = vmatpush1.msra.mxu0 0.0
      %2964 = vmatprep.subr.mxu0 0.0
      %2965 = vmatpush1.msra.mxu0 0.0
      %2966 = vmatprep.subr.mxu0 0.0
      %2967 = vmatpush1.msra.mxu0 0.0
      %2968 = vmatprep.subr.mxu0 0.0
      %2969 = vmatpush1.msra.mxu0 0.0
      %2970 = vmatprep.subr.mxu0 0.0
      %2971 = vmatpush1.msra.mxu0 0.0
      %2972 = vmatprep.subr.mxu0 0.0
      %2973 = vmatpush1.msra.mxu0 0.0
      %2974 = vmatprep.subr.mxu0 0.0
      %2975 = vmatpush1.msra.mxu0 0.0
      %2976 = vmatprep.subr.mxu0 0.0
      %2977 = vmatpush1.msra.mxu0 0.0
      %2978 = vmatprep.subr.mxu0 0.0
      %2979 = vmatpush1.msra.mxu0 0.0
      %2980 = vmatprep.subr.mxu0 0.0
      %2981 = vmatpush1.msra.mxu0 0.0
      %2982 = vmatprep.subr.mxu0 0.0
      %2983 = vmatpush1.msra.mxu0 0.0
      %2984 = vmatprep.subr.mxu0 0.0
      %2985 = vmatpush1.msra.mxu0 0.0
      %2986 = vmatprep.subr.mxu0 0.0
      %2987 = vmatpush1.msra.mxu0 0.0
      %2988 = vmatprep.mubr.f32.mxu0 0.0
      %2989 = vmatmul.mubr.f32.gmra.mrb[0].mxu0 %v2919
      %v2990 = vpop.f32.mrb[0].mxu0
      %v2991 = vadd.f32 %v2916, %v2990
      %v2992 = vpop.f32.mrb[0].mxu0
      %2993 = vmatprep.mubr.f32.mxu0 0.0
      %2994 = vmatmul.mubr.f32.gmra.mrb[0].mxu0 %v2922
      %v2995 = vpop.f32.mrb[0].mxu0
      %v2996 = vadd.f32 %v2916, %v2995
      %v2997 = vpop.f32.mrb[0].mxu0
      %2998 = vdwg.mxu0
      %v2999 = vmax.f32 %v2991, 0.0
      %v3000 = vmax.f32 %v2996, 0.0
      %v3001 = vld [vmem:[%s41] sm:$0xff]
      %v3002 = vld [vmem:[%s41 + $0x8] sm:$0xff]
      %v3003 = vld [vmem:[%s43] sm:$0xff]
      %v3004 = vld [vmem:[%s43 + $0x8] sm:$0xff]
      %v3005 = vld [vmem:[%s45] sm:$0x1]
      %v3006 = vld [vmem:[%s47] sm:$0xff]
      %v3007 = vld [vmem:[%s47 + $0x8] sm:$0xff]
      %v3008 = vld [vmem:[%s47 + $0x10] sm:$0xff]
      %v3009 = vld [vmem:[%s47 + $0x18] sm:$0xff]
      %v3010 = vld [vmem:[%s47 + $0x20] sm:$0xff]
      %v3011 = vld [vmem:[%s47 + $0x28] sm:$0xff]
      %v3012 = vld [vmem:[%s49] sm:$0x1]
      %v3013 = vld [vmem:[%s51] sm:$0xff]
      %v3014 = vld [vmem:[%s51 + $0x8] sm:$0xff]
      %v3015 = vld [vmem:[%s51 + $0x10] sm:$0xff]
      %v3016 = vld [vmem:[%s53] sm:$0x1]
      %v3018 = vlaneseq
      %v3019 = vshrl.u32 %v3018, 7
      %v3020 = vsub.s32 0, %v3019
      %v3021 = vrot.slane %v3005, %v3020
      %v3024 = vsel %vm1200, %v2999, 0
      %v3027 = vsel %vm1200, %v3000, 0
      %3029 = vmatprep.subr.mxu0 0.0
      %3030 = vmatpush1.msra.mxu0 %v3001
      %3031 = vmatprep.subr.mxu0 0.0
      %3032 = vmatpush1.msra.mxu0 %v3002
      %3033 = vmatprep.subr.mxu0 0.0
      %3034 = vmatpush1.msra.mxu0 0.0
      %3035 = vmatprep.subr.mxu0 0.0
      %3036 = vmatpush1.msra.mxu0 0.0
      %3037 = vmatprep.subr.mxu0 0.0
      %3038 = vmatpush1.msra.mxu0 0.0
      %3039 = vmatprep.subr.mxu0 0.0
      %3040 = vmatpush1.msra.mxu0 0.0
      %3041 = vmatprep.subr.mxu0 0.0
      %3042 = vmatpush1.msra.mxu0 0.0
      %3043 = vmatprep.subr.mxu0 0.0
      %3044 = vmatpush1.msra.mxu0 0.0
      %3045 = vmatprep.subr.mxu0 0.0
      %3046 = vmatpush1.msra.mxu0 0.0
      %3047 = vmatprep.subr.mxu0 0.0
      %3048 = vmatpush1.msra.mxu0 0.0
      %3049 = vmatprep.subr.mxu0 0.0
      %3050 = vmatpush1.msra.mxu0 0.0
      %3051 = vmatprep.subr.mxu0 0.0
      %3052 = vmatpush1.msra.mxu0 0.0
      %3053 = vmatprep.subr.mxu0 0.0
      %3054 = vmatpush1.msra.mxu0 0.0
      %3055 = vmatprep.subr.mxu0 0.0
      %3056 = vmatpush1.msra.mxu0 0.0
      %3057 = vmatprep.subr.mxu0 0.0
      %3058 = vmatpush1.msra.mxu0 0.0
      %3059 = vmatprep.subr.mxu0 0.0
      %3060 = vmatpush1.msra.mxu0 0.0
      %3061 = vmatprep.subr.mxu0 0.0
      %3062 = vmatpush1.msra.mxu0 0.0
      %3063 = vmatprep.subr.mxu0 0.0
      %3064 = vmatpush1.msra.mxu0 0.0
      %3065 = vmatprep.subr.mxu0 0.0
      %3066 = vmatpush1.msra.mxu0 0.0
      %3067 = vmatprep.subr.mxu0 0.0
      %3068 = vmatpush1.msra.mxu0 0.0
      %3069 = vmatprep.subr.mxu0 0.0
      %3070 = vmatpush1.msra.mxu0 0.0
      %3071 = vmatprep.subr.mxu0 0.0
      %3072 = vmatpush1.msra.mxu0 0.0
      %3073 = vmatprep.subr.mxu0 0.0
      %3074 = vmatpush1.msra.mxu0 0.0
      %3075 = vmatprep.subr.mxu0 0.0
      %3076 = vmatpush1.msra.mxu0 0.0
      %3077 = vmatprep.subr.mxu0 0.0
      %3078 = vmatpush1.msra.mxu0 0.0
      %3079 = vmatprep.subr.mxu0 0.0
      %3080 = vmatpush1.msra.mxu0 0.0
      %3081 = vmatprep.subr.mxu0 0.0
      %3082 = vmatpush1.msra.mxu0 0.0
      %3083 = vmatprep.subr.mxu0 0.0
      %3084 = vmatpush1.msra.mxu0 0.0
      %3085 = vmatprep.subr.mxu0 0.0
      %3086 = vmatpush1.msra.mxu0 0.0
      %3087 = vmatprep.subr.mxu0 0.0
      %3088 = vmatpush1.msra.mxu0 0.0
      %3089 = vmatprep.subr.mxu0 0.0
      %3090 = vmatpush1.msra.mxu0 0.0
      %3091 = vmatprep.subr.mxu0 0.0
      %3092 = vmatpush1.msra.mxu0 0.0
      %3093 = vmatprep.mubr.f32.mxu0 0.0
      %3094 = vmatmul.mubr.f32.gmra.mrb[0].mxu0 %v3024
      %v3095 = vpop.f32.mrb[0].mxu0
      %v3096 = vadd.f32 %v3021, %v3095
      %v3097 = vpop.f32.mrb[0].mxu0
      %3098 = vmatprep.mubr.f32.mxu0 0.0
      %3099 = vmatmul.mubr.f32.gmra.mrb[0].mxu0 %v3027
      %v3100 = vpop.f32.mrb[0].mxu0
      %v3101 = vadd.f32 %v3021, %v3100
      %v3102 = vpop.f32.mrb[0].mxu0
      %3103 = vdwg.mxu0
      %v3104 = vmax.f32 %v3096, 0.0
      %v3105 = vmax.f32 %v3101, 0.0
      %3106 = vmatprep.subr.mxu0 0.0
      %3107 = vmatpush1.msra.mxu0 %v3003
      %3108 = vmatprep.subr.mxu0 0.0
      %3109 = vmatpush1.msra.mxu0 %v3004
      %3110 = vmatprep.subr.mxu0 0.0
      %3111 = vmatpush1.msra.mxu0 0.0
      %3112 = vmatprep.subr.mxu0 0.0
      %3113 = vmatpush1.msra.mxu0 0.0
      %3114 = vmatprep.subr.mxu0 0.0
      %3115 = vmatpush1.msra.mxu0 0.0
      %3116 = vmatprep.subr.mxu0 0.0
      %3117 = vmatpush1.msra.mxu0 0.0
      %3118 = vmatprep.subr.mxu0 0.0
      %3119 = vmatpush1.msra.mxu0 0.0
      %3120 = vmatprep.subr.mxu0 0.0
      %3121 = vmatpush1.msra.mxu0 0.0
      %3122 = vmatprep.subr.mxu0 0.0
      %3123 = vmatpush1.msra.mxu0 0.0
      %3124 = vmatprep.subr.mxu0 0.0
      %3125 = vmatpush1.msra.mxu0 0.0
      %3126 = vmatprep.subr.mxu0 0.0
      %3127 = vmatpush1.msra.mxu0 0.0
      %3128 = vmatprep.subr.mxu0 0.0
      %3129 = vmatpush1.msra.mxu0 0.0
      %3130 = vmatprep.subr.mxu0 0.0
      %3131 = vmatpush1.msra.mxu0 0.0
      %3132 = vmatprep.subr.mxu0 0.0
      %3133 = vmatpush1.msra.mxu0 0.0
      %3134 = vmatprep.subr.mxu0 0.0
      %3135 = vmatpush1.msra.mxu0 0.0
      %3136 = vmatprep.subr.mxu0 0.0
      %3137 = vmatpush1.msra.mxu0 0.0
      %3138 = vmatprep.subr.mxu0 0.0
      %3139 = vmatpush1.msra.mxu0 0.0
      %3140 = vmatprep.subr.mxu0 0.0
      %3141 = vmatpush1.msra.mxu0 0.0
      %3142 = vmatprep.subr.mxu0 0.0
      %3143 = vmatpush1.msra.mxu0 0.0
      %3144 = vmatprep.subr.mxu0 0.0
      %3145 = vmatpush1.msra.mxu0 0.0
      %3146 = vmatprep.subr.mxu0 0.0
      %3147 = vmatpush1.msra.mxu0 0.0
      %3148 = vmatprep.subr.mxu0 0.0
      %3149 = vmatpush1.msra.mxu0 0.0
      %3150 = vmatprep.subr.mxu0 0.0
      %3151 = vmatpush1.msra.mxu0 0.0
      %3152 = vmatprep.subr.mxu0 0.0
      %3153 = vmatpush1.msra.mxu0 0.0
      %3154 = vmatprep.subr.mxu0 0.0
      %3155 = vmatpush1.msra.mxu0 0.0
      %3156 = vmatprep.subr.mxu0 0.0
      %3157 = vmatpush1.msra.mxu0 0.0
      %3158 = vmatprep.subr.mxu0 0.0
      %3159 = vmatpush1.msra.mxu0 0.0
      %3160 = vmatprep.subr.mxu0 0.0
      %3161 = vmatpush1.msra.mxu0 0.0
      %3162 = vmatprep.subr.mxu0 0.0
      %3163 = vmatpush1.msra.mxu0 0.0
      %3164 = vmatprep.subr.mxu0 0.0
      %3165 = vmatpush1.msra.mxu0 0.0
      %3166 = vmatprep.subr.mxu0 0.0
      %3167 = vmatpush1.msra.mxu0 0.0
      %3168 = vmatprep.subr.mxu0 0.0
      %3169 = vmatpush1.msra.mxu0 0.0
      %3170 = vmatprep.mubr.f32.mxu0 0.0
      %3171 = vmatmul.mubr.f32.gmra.mrb[0].mxu0 %v3024
      %v3172 = vpop.f32.mrb[0].mxu0
      %v3173 = vadd.f32 %v3021, %v3172
      %v3174 = vpop.f32.mrb[0].mxu0
      %3175 = vmatprep.mubr.f32.mxu0 0.0
      %3176 = vmatmul.mubr.f32.gmra.mrb[0].mxu0 %v3027
      %v3177 = vpop.f32.mrb[0].mxu0
      %v3178 = vadd.f32 %v3021, %v3177
      %v3179 = vpop.f32.mrb[0].mxu0
      %3180 = vdwg.mxu0
      %v3181 = vmax.f32 %v3173, 0.0
      %v3182 = vmax.f32 %v3178, 0.0
      %vm3183 = vcmp.eq.s32.totalorder %v1357, %v2530
      %v3184 = vsel %vm3183, 1, 0
      %v3185 = vcvt.s32.f32 %v3184
      %vm3186 = vcmp.eq.s32.totalorder %v1357, %v2540
      %v3187 = vsel %vm3186, 1, 0
      %v3188 = vcvt.s32.f32 %v3187
      %vm3189 = vcmask 113664
      %v3190 = vsel %vm3189, %v2547, 0
      %v3192 = vsel %vm3189, %v2548, 0
      %v3194 = vsel %vm3189, %v2549, 0
      %v3197 = vsel %vm3189, %v3188, 0
      %v3200 = vsel %vm1051, %v3182, 0
      %3202 = vmatprep.subr.mxu0 0.0
      %3203 = vmatpush1.msra.mxu0 %v3181
      %3204 = vmatprep.subr.mxu0 0.0
      %3205 = vmatpush1.msra.mxu0 %v3200
      %3206 = vmatprep.subr.mxu0 0.0
      %3207 = vmatpush1.msra.mxu0 0.0
      %3208 = vmatprep.subr.mxu0 0.0
      %3209 = vmatpush1.msra.mxu0 0.0
      %3210 = vmatprep.subr.mxu0 0.0
      %3211 = vmatpush1.msra.mxu0 0.0
      %3212 = vmatprep.subr.mxu0 0.0
      %3213 = vmatpush1.msra.mxu0 0.0
      %3214 = vmatprep.subr.mxu0 0.0
      %3215 = vmatpush1.msra.mxu0 0.0
      %3216 = vmatprep.subr.mxu0 0.0
      %3217 = vmatpush1.msra.mxu0 0.0
      %3218 = vmatprep.subr.mxu0 0.0
      %3219 = vmatpush1.msra.mxu0 0.0
      %3220 = vmatprep.subr.mxu0 0.0
      %3221 = vmatpush1.msra.mxu0 0.0
      %3222 = vmatprep.subr.mxu0 0.0
      %3223 = vmatpush1.msra.mxu0 0.0
      %3224 = vmatprep.subr.mxu0 0.0
      %3225 = vmatpush1.msra.mxu0 0.0
      %3226 = vmatprep.subr.mxu0 0.0
      %3227 = vmatpush1.msra.mxu0 0.0
      %3228 = vmatprep.subr.mxu0 0.0
      %3229 = vmatpush1.msra.mxu0 0.0
      %3230 = vmatprep.subr.mxu0 0.0
      %3231 = vmatpush1.msra.mxu0 0.0
      %3232 = vmatprep.subr.mxu0 0.0
      %3233 = vmatpush1.msra.mxu0 0.0
      %3234 = vmatprep.subr.mxu0 0.0
      %3235 = vmatpush1.msra.mxu0 0.0
      %3236 = vmatprep.subr.mxu0 0.0
      %3237 = vmatpush1.msra.mxu0 0.0
      %3238 = vmatprep.subr.mxu0 0.0
      %3239 = vmatpush1.msra.mxu0 0.0
      %3240 = vmatprep.subr.mxu0 0.0
      %3241 = vmatpush1.msra.mxu0 0.0
      %3242 = vmatprep.subr.mxu0 0.0
      %3243 = vmatpush1.msra.mxu0 0.0
      %3244 = vmatprep.subr.mxu0 0.0
      %3245 = vmatpush1.msra.mxu0 0.0
      %3246 = vmatprep.subr.mxu0 0.0
      %3247 = vmatpush1.msra.mxu0 0.0
      %3248 = vmatprep.subr.mxu0 0.0
      %3249 = vmatpush1.msra.mxu0 0.0
      %3250 = vmatprep.subr.mxu0 0.0
      %3251 = vmatpush1.msra.mxu0 0.0
      %3252 = vmatprep.subr.mxu0 0.0
      %3253 = vmatpush1.msra.mxu0 0.0
      %3254 = vmatprep.subr.mxu0 0.0
      %3255 = vmatpush1.msra.mxu0 0.0
      %3256 = vmatprep.subr.mxu0 0.0
      %3257 = vmatpush1.msra.mxu0 0.0
      %3258 = vmatprep.subr.mxu0 0.0
      %3259 = vmatpush1.msra.mxu0 0.0
      %3260 = vmatprep.subr.mxu0 0.0
      %3261 = vmatpush1.msra.mxu0 0.0
      %3262 = vmatprep.subr.mxu0 0.0
      %3263 = vmatpush1.msra.mxu0 0.0
      %3264 = vmatprep.subr.mxu0 0.0
      %3265 = vmatpush1.msra.mxu0 0.0
      %3266 = vmatprep.mubr.f32.mxu0 0.0
      %3267 = vmatmul.mubr.f32.gmra.mrb[0].mxu0 %v3190
      %v3268 = vpop.f32.mrb[0].mxu0
      %v3269 = vadd.f32 0.0, %v3268
      %v3270 = vpop.f32.mrb[0].mxu0
      %3271 = vmatprep.mubr.f32.mxu0 0.0
      %3272 = vmatmul.mubr.f32.gmra.mrb[0].mxu0 %v3192
      %v3273 = vpop.f32.mrb[0].mxu0
      %v3274 = vadd.f32 0.0, %v3273
      %v3275 = vpop.f32.mrb[0].mxu0
      %3276 = vmatprep.mubr.f32.mxu0 0.0
      %3277 = vmatmul.mubr.f32.gmra.mrb[0].mxu0 %v3194
      %v3278 = vpop.f32.mrb[0].mxu0
      %v3279 = vadd.f32 0.0, %v3278
      %v3280 = vpop.f32.mrb[0].mxu0
      %3281 = vmatprep.mubr.f32.mxu0 0.0
      %3282 = vmatmul.mubr.f32.gmra.mrb[0].mxu0 %v3197
      %v3283 = vpop.f32.mrb[0].mxu0
      %v3284 = vadd.f32 0.0, %v3283
      %v3285 = vpop.f32.mrb[0].mxu0
      %3286 = vdwg.mxu0
      %v3287 = vsel %vm3189, %v2537, 0
      %v3289 = vsel %vm3189, %v2538, 0
      %v3291 = vsel %vm3189, %v2539, 0
      %v3294 = vsel %vm3189, %v3185, 0
      %v3297 = vsel %vm1051, %v3105, 0
      %3299 = vmatprep.subr.mxu0 0.0
      %3300 = vmatpush1.msra.mxu0 %v3104
      %3301 = vmatprep.subr.mxu0 0.0
      %3302 = vmatpush1.msra.mxu0 %v3297
      %3303 = vmatprep.subr.mxu0 0.0
      %3304 = vmatpush1.msra.mxu0 0.0
      %3305 = vmatprep.subr.mxu0 0.0
      %3306 = vmatpush1.msra.mxu0 0.0
      %3307 = vmatprep.subr.mxu0 0.0
      %3308 = vmatpush1.msra.mxu0 0.0
      %3309 = vmatprep.subr.mxu0 0.0
      %3310 = vmatpush1.msra.mxu0 0.0
      %3311 = vmatprep.subr.mxu0 0.0
      %3312 = vmatpush1.msra.mxu0 0.0
      %3313 = vmatprep.subr.mxu0 0.0
      %3314 = vmatpush1.msra.mxu0 0.0
      %3315 = vmatprep.subr.mxu0 0.0
      %3316 = vmatpush1.msra.mxu0 0.0
      %3317 = vmatprep.subr.mxu0 0.0
      %3318 = vmatpush1.msra.mxu0 0.0
      %3319 = vmatprep.subr.mxu0 0.0
      %3320 = vmatpush1.msra.mxu0 0.0
      %3321 = vmatprep.subr.mxu0 0.0
      %3322 = vmatpush1.msra.mxu0 0.0
      %3323 = vmatprep.subr.mxu0 0.0
      %3324 = vmatpush1.msra.mxu0 0.0
      %3325 = vmatprep.subr.mxu0 0.0
      %3326 = vmatpush1.msra.mxu0 0.0
      %3327 = vmatprep.subr.mxu0 0.0
      %3328 = vmatpush1.msra.mxu0 0.0
      %3329 = vmatprep.subr.mxu0 0.0
      %3330 = vmatpush1.msra.mxu0 0.0
      %3331 = vmatprep.subr.mxu0 0.0
      %3332 = vmatpush1.msra.mxu0 0.0
      %3333 = vmatprep.subr.mxu0 0.0
      %3334 = vmatpush1.msra.mxu0 0.0
      %3335 = vmatprep.subr.mxu0 0.0
      %3336 = vmatpush1.msra.mxu0 0.0
      %3337 = vmatprep.subr.mxu0 0.0
      %3338 = vmatpush1.msra.mxu0 0.0
      %3339 = vmatprep.subr.mxu0 0.0
      %3340 = vmatpush1.msra.mxu0 0.0
      %3341 = vmatprep.subr.mxu0 0.0
      %3342 = vmatpush1.msra.mxu0 0.0
      %3343 = vmatprep.subr.mxu0 0.0
      %3344 = vmatpush1.msra.mxu0 0.0
      %3345 = vmatprep.subr.mxu0 0.0
      %3346 = vmatpush1.msra.mxu0 0.0
      %3347 = vmatprep.subr.mxu0 0.0
      %3348 = vmatpush1.msra.mxu0 0.0
      %3349 = vmatprep.subr.mxu0 0.0
      %3350 = vmatpush1.msra.mxu0 0.0
      %3351 = vmatprep.subr.mxu0 0.0
      %3352 = vmatpush1.msra.mxu0 0.0
      %3353 = vmatprep.subr.mxu0 0.0
      %3354 = vmatpush1.msra.mxu0 0.0
      %3355 = vmatprep.subr.mxu0 0.0
      %3356 = vmatpush1.msra.mxu0 0.0
      %3357 = vmatprep.subr.mxu0 0.0
      %3358 = vmatpush1.msra.mxu0 0.0
      %3359 = vmatprep.subr.mxu0 0.0
      %3360 = vmatpush1.msra.mxu0 0.0
      %3361 = vmatprep.subr.mxu0 0.0
      %3362 = vmatpush1.msra.mxu0 0.0
      %3363 = vmatprep.mubr.f32.mxu0 0.0
      %3364 = vmatmul.mubr.f32.gmra.mrb[0].mxu0 %v3287
      %v3365 = vpop.f32.mrb[0].mxu0
      %v3366 = vadd.f32 %v3269, %v3365
      %v3367 = vpop.f32.mrb[0].mxu0
      %3368 = vmatprep.mubr.f32.mxu0 0.0
      %3369 = vmatmul.mubr.f32.gmra.mrb[0].mxu0 %v3289
      %v3370 = vpop.f32.mrb[0].mxu0
      %v3371 = vadd.f32 %v3274, %v3370
      %v3372 = vpop.f32.mrb[0].mxu0
      %3373 = vmatprep.mubr.f32.mxu0 0.0
      %3374 = vmatmul.mubr.f32.gmra.mrb[0].mxu0 %v3291
      %v3375 = vpop.f32.mrb[0].mxu0
      %v3376 = vadd.f32 %v3279, %v3375
      %v3377 = vpop.f32.mrb[0].mxu0
      %3378 = vmatprep.mubr.f32.mxu0 0.0
      %3379 = vmatmul.mubr.f32.gmra.mrb[0].mxu0 %v3294
      %v3380 = vpop.f32.mrb[0].mxu0
      %v3381 = vadd.f32 %v3284, %v3380
      %v3382 = vpop.f32.mrb[0].mxu0
      %3383 = vdwg.mxu0
      %3388 = vrot.lane.b32.xlu0 %v3366, 8
      %v3389 = vpop.permute.xlu0 %3388
      %3390 = vrot.lane.b32.xlu0 %v3371, 8
      %v3391 = vpop.permute.xlu0 %3390
      %3392 = vrot.lane.b32.xlu0 %v3376, 8
      %v3393 = vpop.permute.xlu0 %3392
      %3394 = vrot.lane.b32.xlu0 %v3381, 8
      %v3395 = vpop.permute.xlu0 %3394
      %v3400 = vsel %vm1191, %v1347, %v3389
      %v3401 = vsel %vm1191, %v1348, %v3391
      %v3402 = vsel %vm1191, %v1349, %v3393
      %v3403 = vsel %vm1191, %v1350, %v3395
      %v3408 = vrot.slane %v3400, 1
      %v3409 = vrot.slane %v3401, 1
      %v3410 = vsel %vm999, %v3408, %v3409
      %v3411 = vrot.slane %v3402, 1
      %v3412 = vsel %vm999, %v3409, %v3411
      %v3413 = vrot.slane %v3403, 1
      %v3414 = vsel %vm999, %v3411, %v3413
      %3415 = vrot.lane.b32.xlu0 %v3410, 16
      %v3416 = vpop.permute.xlu0 %3415
      %3417 = vrot.lane.b32.xlu0 %v3412, 16
      %v3418 = vpop.permute.xlu0 %3417
      %3419 = vrot.lane.b32.xlu0 %v3414, 16
      %v3420 = vpop.permute.xlu0 %3419
      %3421 = vrot.lane.b32.xlu0 %v3413, 16
      %v3422 = vpop.permute.xlu0 %3421
      %v3427 = vrot.slane %v3400, 2
      %v3428 = vrot.slane %v3401, 2
      %v3429 = vsel %vm1051, %v3427, %v3428
      %v3430 = vrot.slane %v3402, 2
      %v3431 = vsel %vm1051, %v3428, %v3430
      %v3432 = vrot.slane %v3403, 2
      %v3433 = vsel %vm1051, %v3430, %v3432
      %3434 = vrot.lane.b32.xlu0 %v3429, 32
      %v3435 = vpop.permute.xlu0 %3434
      %3436 = vrot.lane.b32.xlu0 %v3431, 32
      %v3437 = vpop.permute.xlu0 %3436
      %3438 = vrot.lane.b32.xlu0 %v3433, 32
      %v3439 = vpop.permute.xlu0 %3438
      %3440 = vrot.lane.b32.xlu0 %v3432, 32
      %v3441 = vpop.permute.xlu0 %3440
      %v3446 = vsel %vm1200, %v3400, %v3416
      %v3447 = vsel %vm1200, %v3401, %v3418
      %v3448 = vsel %vm1200, %v3402, %v3420
      %v3449 = vsel %vm1200, %v3403, %v3422
      %v3450 = vsel %vm1809, %v3446, %v3435
      %v3451 = vsel %vm1809, %v3447, %v3437
      %v3452 = vsel %vm1809, %v3448, %v3439
      %v3453 = vsel %vm1809, %v3449, %v3441
      %v3455 = vlaneseq
      %v3456 = vshrl.u32 %v3455, 7
      %v3457 = vsub.s32 0, %v3456
      %v3458 = vrot.slane %v3012, %v3457
      %v3461 = vsel %vm1820, %v3450, 0
      %v3464 = vsel %vm1820, %v3451, 0
      %v3467 = vsel %vm1820, %v3452, 0
      %v3470 = vsel %vm1820, %v3453, 0
      %3472 = vmatprep.subr.mxu0 0.0
      %3473 = vmatpush1.msra.mxu0 %v3006
      %3474 = vmatprep.subr.mxu0 0.0
      %3475 = vmatpush1.msra.mxu0 %v3007
      %3476 = vmatprep.subr.mxu0 0.0
      %3477 = vmatpush1.msra.mxu0 %v3008
      %3478 = vmatprep.subr.mxu0 0.0
      %3479 = vmatpush1.msra.mxu0 %v3009
      %3480 = vmatprep.subr.mxu0 0.0
      %3481 = vmatpush1.msra.mxu0 %v3010
      %3482 = vmatprep.subr.mxu0 0.0
      %3483 = vmatpush1.msra.mxu0 %v3011
      %3484 = vmatprep.subr.mxu0 0.0
      %3485 = vmatpush1.msra.mxu0 0.0
      %3486 = vmatprep.subr.mxu0 0.0
      %3487 = vmatpush1.msra.mxu0 0.0
      %3488 = vmatprep.subr.mxu0 0.0
      %3489 = vmatpush1.msra.mxu0 0.0
      %3490 = vmatprep.subr.mxu0 0.0
      %3491 = vmatpush1.msra.mxu0 0.0
      %3492 = vmatprep.subr.mxu0 0.0
      %3493 = vmatpush1.msra.mxu0 0.0
      %3494 = vmatprep.subr.mxu0 0.0
      %3495 = vmatpush1.msra.mxu0 0.0
      %3496 = vmatprep.subr.mxu0 0.0
      %3497 = vmatpush1.msra.mxu0 0.0
      %3498 = vmatprep.subr.mxu0 0.0
      %3499 = vmatpush1.msra.mxu0 0.0
      %3500 = vmatprep.subr.mxu0 0.0
      %3501 = vmatpush1.msra.mxu0 0.0
      %3502 = vmatprep.subr.mxu0 0.0
      %3503 = vmatpush1.msra.mxu0 0.0
      %3504 = vmatprep.subr.mxu0 0.0
      %3505 = vmatpush1.msra.mxu0 0.0
      %3506 = vmatprep.subr.mxu0 0.0
      %3507 = vmatpush1.msra.mxu0 0.0
      %3508 = vmatprep.subr.mxu0 0.0
      %3509 = vmatpush1.msra.mxu0 0.0
      %3510 = vmatprep.subr.mxu0 0.0
      %3511 = vmatpush1.msra.mxu0 0.0
      %3512 = vmatprep.subr.mxu0 0.0
      %3513 = vmatpush1.msra.mxu0 0.0
      %3514 = vmatprep.subr.mxu0 0.0
      %3515 = vmatpush1.msra.mxu0 0.0
      %3516 = vmatprep.subr.mxu0 0.0
      %3517 = vmatpush1.msra.mxu0 0.0
      %3518 = vmatprep.subr.mxu0 0.0
      %3519 = vmatpush1.msra.mxu0 0.0
      %3520 = vmatprep.subr.mxu0 0.0
      %3521 = vmatpush1.msra.mxu0 0.0
      %3522 = vmatprep.subr.mxu0 0.0
      %3523 = vmatpush1.msra.mxu0 0.0
      %3524 = vmatprep.subr.mxu0 0.0
      %3525 = vmatpush1.msra.mxu0 0.0
      %3526 = vmatprep.subr.mxu0 0.0
      %3527 = vmatpush1.msra.mxu0 0.0
      %3528 = vmatprep.subr.mxu0 0.0
      %3529 = vmatpush1.msra.mxu0 0.0
      %3530 = vmatprep.subr.mxu0 0.0
      %3531 = vmatpush1.msra.mxu0 0.0
      %3532 = vmatprep.subr.mxu0 0.0
      %3533 = vmatpush1.msra.mxu0 0.0
      %3534 = vmatprep.subr.mxu0 0.0
      %3535 = vmatpush1.msra.mxu0 0.0
      %3536 = vmatprep.mubr.f32.mxu0 0.0
      %3537 = vmatmul.mubr.f32.gmra.mrb[0].mxu0 %v3461
      %v3538 = vpop.f32.mrb[0].mxu0
      %v3539 = vadd.f32 %v3458, %v3538
      %v3540 = vpop.f32.mrb[0].mxu0
      %3541 = vmatprep.mubr.f32.mxu0 0.0
      %3542 = vmatmul.mubr.f32.gmra.mrb[0].mxu0 %v3464
      %v3543 = vpop.f32.mrb[0].mxu0
      %v3544 = vadd.f32 %v3458, %v3543
      %v3545 = vpop.f32.mrb[0].mxu0
      %3546 = vmatprep.mubr.f32.mxu0 0.0
      %3547 = vmatmul.mubr.f32.gmra.mrb[0].mxu0 %v3467
      %v3548 = vpop.f32.mrb[0].mxu0
      %v3549 = vadd.f32 %v3458, %v3548
      %v3550 = vpop.f32.mrb[0].mxu0
      %3551 = vmatprep.mubr.f32.mxu0 0.0
      %3552 = vmatmul.mubr.f32.gmra.mrb[0].mxu0 %v3470
      %v3553 = vpop.f32.mrb[0].mxu0
      %v3554 = vadd.f32 %v3458, %v3553
      %v3555 = vpop.f32.mrb[0].mxu0
      %3556 = vdwg.mxu0
      %v3557 = vmax.f32 %v3539, 0.0
      %v3558 = vmax.f32 %v3544, 0.0
      %v3559 = vmax.f32 %v3549, 0.0
      %v3560 = vmax.f32 %v3554, 0.0
      %v3565 = vrot.slane %v3557, 1
      %v3566 = vrot.slane %v3558, 1
      %v3567 = vsel %vm999, %v3565, %v3566
      %v3568 = vrot.slane %v3559, 1
      %v3569 = vsel %vm999, %v3566, %v3568
      %v3570 = vrot.slane %v3560, 1
      %v3571 = vsel %vm999, %v3568, %v3570
      %3572 = vrot.lane.b32.xlu0 %v3567, 8
      %v3573 = vpop.permute.xlu0 %3572
      %3574 = vrot.lane.b32.xlu0 %v3569, 8
      %v3575 = vpop.permute.xlu0 %3574
      %3576 = vrot.lane.b32.xlu0 %v3571, 8
      %v3577 = vpop.permute.xlu0 %3576
      %v3581 = vrot.slane %v3557, 2
      %v3582 = vrot.slane %v3558, 2
      %v3583 = vsel %vm1051, %v3581, %v3582
      %v3584 = vrot.slane %v3559, 2
      %v3585 = vsel %vm1051, %v3582, %v3584
      %v3586 = vrot.slane %v3560, 2
      %v3587 = vsel %vm1051, %v3584, %v3586
      %3588 = vrot.lane.b32.xlu0 %v3583, 16
      %v3589 = vpop.permute.xlu0 %3588
      %3590 = vrot.lane.b32.xlu0 %v3585, 16
      %v3591 = vpop.permute.xlu0 %3590
      %3592 = vrot.lane.b32.xlu0 %v3587, 16
      %v3593 = vpop.permute.xlu0 %3592
      %v3597 = vsel %vm1191, %v3557, %v3573
      %v3598 = vsel %vm1191, %v3558, %v3575
      %v3599 = vsel %vm1191, %v3559, %v3577
      %v3600 = vsel %vm1200, %v3597, %v3589
      %v3601 = vsel %vm1200, %v3598, %v3591
      %v3602 = vsel %vm1200, %v3599, %v3593
      %v3604 = vlaneseq
      %v3605 = vshrl.u32 %v3604, 7
      %v3606 = vsub.s32 0, %v3605
      %v3607 = vrot.slane %v3016, %v3606
      %v3610 = vsel %vm1215, %v3600, 0
      %v3613 = vsel %vm1215, %v3601, 0
      %v3616 = vsel %vm1215, %v3602, 0
      %3618 = vmatprep.subr.mxu0 0.0
      %3619 = vmatpush1.msra.mxu0 %v3013
      %3620 = vmatprep.subr.mxu0 0.0
      %3621 = vmatpush1.msra.mxu0 %v3014
      %3622 = vmatprep.subr.mxu0 0.0
      %3623 = vmatpush1.msra.mxu0 %v3015
      %3624 = vmatprep.subr.mxu0 0.0
      %3625 = vmatpush1.msra.mxu0 0.0
      %3626 = vmatprep.subr.mxu0 0.0
      %3627 = vmatpush1.msra.mxu0 0.0
      %3628 = vmatprep.subr.mxu0 0.0
      %3629 = vmatpush1.msra.mxu0 0.0
      %3630 = vmatprep.subr.mxu0 0.0
      %3631 = vmatpush1.msra.mxu0 0.0
      %3632 = vmatprep.subr.mxu0 0.0
      %3633 = vmatpush1.msra.mxu0 0.0
      %3634 = vmatprep.subr.mxu0 0.0
      %3635 = vmatpush1.msra.mxu0 0.0
      %3636 = vmatprep.subr.mxu0 0.0
      %3637 = vmatpush1.msra.mxu0 0.0
      %3638 = vmatprep.subr.mxu0 0.0
      %3639 = vmatpush1.msra.mxu0 0.0
      %3640 = vmatprep.subr.mxu0 0.0
      %3641 = vmatpush1.msra.mxu0 0.0
      %3642 = vmatprep.subr.mxu0 0.0
      %3643 = vmatpush1.msra.mxu0 0.0
      %3644 = vmatprep.subr.mxu0 0.0
      %3645 = vmatpush1.msra.mxu0 0.0
      %3646 = vmatprep.subr.mxu0 0.0
      %3647 = vmatpush1.msra.mxu0 0.0
      %3648 = vmatprep.subr.mxu0 0.0
      %3649 = vmatpush1.msra.mxu0 0.0
      %3650 = vmatprep.subr.mxu0 0.0
      %3651 = vmatpush1.msra.mxu0 0.0
      %3652 = vmatprep.subr.mxu0 0.0
      %3653 = vmatpush1.msra.mxu0 0.0
      %3654 = vmatprep.subr.mxu0 0.0
      %3655 = vmatpush1.msra.mxu0 0.0
      %3656 = vmatprep.subr.mxu0 0.0
      %3657 = vmatpush1.msra.mxu0 0.0
      %3658 = vmatprep.subr.mxu0 0.0
      %3659 = vmatpush1.msra.mxu0 0.0
      %3660 = vmatprep.subr.mxu0 0.0
      %3661 = vmatpush1.msra.mxu0 0.0
      %3662 = vmatprep.subr.mxu0 0.0
      %3663 = vmatpush1.msra.mxu0 0.0
      %3664 = vmatprep.subr.mxu0 0.0
      %3665 = vmatpush1.msra.mxu0 0.0
      %3666 = vmatprep.subr.mxu0 0.0
      %3667 = vmatpush1.msra.mxu0 0.0
      %3668 = vmatprep.subr.mxu0 0.0
      %3669 = vmatpush1.msra.mxu0 0.0
      %3670 = vmatprep.subr.mxu0 0.0
      %3671 = vmatpush1.msra.mxu0 0.0
      %3672 = vmatprep.subr.mxu0 0.0
      %3673 = vmatpush1.msra.mxu0 0.0
      %3674 = vmatprep.subr.mxu0 0.0
      %3675 = vmatpush1.msra.mxu0 0.0
      %3676 = vmatprep.subr.mxu0 0.0
      %3677 = vmatpush1.msra.mxu0 0.0
      %3678 = vmatprep.subr.mxu0 0.0
      %3679 = vmatpush1.msra.mxu0 0.0
      %3680 = vmatprep.subr.mxu0 0.0
      %3681 = vmatpush1.msra.mxu0 0.0
      %3682 = vmatprep.mubr.f32.mxu0 0.0
      %3683 = vmatmul.mubr.f32.gmra.mrb[0].mxu0 %v3610
      %v3684 = vpop.f32.mrb[0].mxu0
      %v3685 = vadd.f32 %v3607, %v3684
      %v3686 = vpop.f32.mrb[0].mxu0
      %3687 = vmatprep.mubr.f32.mxu0 0.0
      %3688 = vmatmul.mubr.f32.gmra.mrb[0].mxu0 %v3613
      %v3689 = vpop.f32.mrb[0].mxu0
      %v3690 = vadd.f32 %v3607, %v3689
      %v3691 = vpop.f32.mrb[0].mxu0
      %3692 = vmatprep.mubr.f32.mxu0 0.0
      %3693 = vmatmul.mubr.f32.gmra.mrb[0].mxu0 %v3616
      %v3694 = vpop.f32.mrb[0].mxu0
      %v3695 = vadd.f32 %v3607, %v3694
      %v3696 = vpop.f32.mrb[0].mxu0
      %3697 = vdwg.mxu0
      %v3698 = vmax.f32 %v3685, 0.0
      %v3699 = vmax.f32 %v3690, 0.0
      %v3700 = vmax.f32 %v3695, 0.0
      %v3701 = vld [vmem:[%s55] sm:$0xff]
      %v3702 = vld [vmem:[#allocation2] sm:$0x1]
      %v3704 = vlaneseq
      %v3705 = vshrl.u32 %v3704, 7
      %v3706 = vsub.s32 0, %v3705
      %v3707 = vrot.slane %v3702, %v3706
      %v3710 = vsel %vm1191, %v3698, 0
      %v3713 = vsel %vm1191, %v3699, 0
      %v3716 = vsel %vm1191, %v3700, 0
      %3718 = vmatprep.subr.mxu0 0.0
      %3719 = vmatpush1.msra.mxu0 %v3701
      %3720 = vmatprep.subr.mxu0 0.0
      %3721 = vmatpush1.msra.mxu0 0.0
      %3722 = vmatprep.subr.mxu0 0.0
      %3723 = vmatpush1.msra.mxu0 0.0
      %3724 = vmatprep.subr.mxu0 0.0
      %3725 = vmatpush1.msra.mxu0 0.0
      %3726 = vmatprep.subr.mxu0 0.0
      %3727 = vmatpush1.msra.mxu0 0.0
      %3728 = vmatprep.subr.mxu0 0.0
      %3729 = vmatpush1.msra.mxu0 0.0
      %3730 = vmatprep.subr.mxu0 0.0
      %3731 = vmatpush1.msra.mxu0 0.0
      %3732 = vmatprep.subr.mxu0 0.0
      %3733 = vmatpush1.msra.mxu0 0.0
      %3734 = vmatprep.subr.mxu0 0.0
      %3735 = vmatpush1.msra.mxu0 0.0
      %3736 = vmatprep.subr.mxu0 0.0
      %3737 = vmatpush1.msra.mxu0 0.0
      %3738 = vmatprep.subr.mxu0 0.0
      %3739 = vmatpush1.msra.mxu0 0.0
      %3740 = vmatprep.subr.mxu0 0.0
      %3741 = vmatpush1.msra.mxu0 0.0
      %3742 = vmatprep.subr.mxu0 0.0
      %3743 = vmatpush1.msra.mxu0 0.0
      %3744 = vmatprep.subr.mxu0 0.0
      %3745 = vmatpush1.msra.mxu0 0.0
      %3746 = vmatprep.subr.mxu0 0.0
      %3747 = vmatpush1.msra.mxu0 0.0
      %3748 = vmatprep.subr.mxu0 0.0
      %3749 = vmatpush1.msra.mxu0 0.0
      %3750 = vmatprep.subr.mxu0 0.0
      %3751 = vmatpush1.msra.mxu0 0.0
      %3752 = vmatprep.subr.mxu0 0.0
      %3753 = vmatpush1.msra.mxu0 0.0
      %3754 = vmatprep.subr.mxu0 0.0
      %3755 = vmatpush1.msra.mxu0 0.0
      %3756 = vmatprep.subr.mxu0 0.0
      %3757 = vmatpush1.msra.mxu0 0.0
      %3758 = vmatprep.subr.mxu0 0.0
      %3759 = vmatpush1.msra.mxu0 0.0
      %3760 = vmatprep.subr.mxu0 0.0
      %3761 = vmatpush1.msra.mxu0 0.0
      %3762 = vmatprep.subr.mxu0 0.0
      %3763 = vmatpush1.msra.mxu0 0.0
      %3764 = vmatprep.subr.mxu0 0.0
      %3765 = vmatpush1.msra.mxu0 0.0
      %3766 = vmatprep.subr.mxu0 0.0
      %3767 = vmatpush1.msra.mxu0 0.0
      %3768 = vmatprep.subr.mxu0 0.0
      %3769 = vmatpush1.msra.mxu0 0.0
      %3770 = vmatprep.subr.mxu0 0.0
      %3771 = vmatpush1.msra.mxu0 0.0
      %3772 = vmatprep.subr.mxu0 0.0
      %3773 = vmatpush1.msra.mxu0 0.0
      %3774 = vmatprep.subr.mxu0 0.0
      %3775 = vmatpush1.msra.mxu0 0.0
      %3776 = vmatprep.subr.mxu0 0.0
      %3777 = vmatpush1.msra.mxu0 0.0
      %3778 = vmatprep.subr.mxu0 0.0
      %3779 = vmatpush1.msra.mxu0 0.0
      %3780 = vmatprep.subr.mxu0 0.0
      %3781 = vmatpush1.msra.mxu0 0.0
      %3782 = vmatprep.mubr.f32.mxu0 0.0
      %3783 = vmatmul.mubr.f32.gmra.mrb[0].mxu0 %v3710
      %v3784 = vpop.f32.mrb[0].mxu0
      %v3785 = vadd.f32 %v3707, %v3784
      %v3786 = vpop.f32.mrb[0].mxu0
      %3787 = vmatprep.mubr.f32.mxu0 0.0
      %3788 = vmatmul.mubr.f32.gmra.mrb[0].mxu0 %v3713
      %v3789 = vpop.f32.mrb[0].mxu0
      %v3790 = vadd.f32 %v3707, %v3789
      %v3791 = vpop.f32.mrb[0].mxu0
      %3792 = vmatprep.mubr.f32.mxu0 0.0
      %3793 = vmatmul.mubr.f32.gmra.mrb[0].mxu0 %v3716
      %v3794 = vpop.f32.mrb[0].mxu0
      %v3795 = vadd.f32 %v3707, %v3794
      %v3796 = vpop.f32.mrb[0].mxu0
      %3797 = vdwg.mxu0
      %vm3798 = vcmask 7168
      %3799 = vst.msk [vmem:[%s904] sm:$0xff] %vm3798, %v3785
      %3800 = vst.msk [vmem:[%s904 + $0x8] sm:$0xff] %vm3798, %v3790
      %3801 = vst.msk [vmem:[%s904 + $0x10] sm:$0xff] %vm3798, %v3795
      %p3802 = scmp.lt.s32.totalorder %s72, 1
      %s3803 = scalar_select %p3802, %s72, 1
      %s3804 = smul.addr %s3803, 3
      %s3805 = smul.addr %s3804, 8
      %s3806 = scalar_lea.vmem %s59, %s3805
      // Predicated region
      $region137: #{unet_forward.1} parent=135 // pred_check
        %p3807 = pneg %p704
      $region138: #{unet_forward.1} parent=135 // pred_check_branch
        %3809 = sbr.rel (%p3807) target = $region140
      $region139: #{unet_forward.1} parent=135 // pred_region
        _
      $region140: #{unet_forward.1} parent=135 // pred_fallthru
        _
    $region136: #{unet_forward.1} parent=5 // pred_fallthru
      _
    %p3810 = scmp.le.s32.totalorder 2, %s67
    // Predicated region
    $region141: #{unet_forward.1} parent=5 // pred_check
      %p3811 = pneg %p3810
    $region142: #{unet_forward.1} parent=5 // pred_check_branch
      %3813 = sbr.rel (%p3811) target = $region144
    $region143: #{unet_forward.1} parent=5 // pred_region
      %s3814 = ssub.s32 %s67, 2
      // Predicated region
      $region145: #{unet_forward.1} parent=143 // pred_check
        %p3815 = pneg %p710
      $region146: #{unet_forward.1} parent=143 // pred_check_branch
        %3817 = sbr.rel (%p3815) target = $region148
      $region147: #{unet_forward.1} parent=143 // pred_region
        %p3818 = scmp.lt.s32.totalorder %s73, 1
        %s3819 = scalar_select %p3818, %s73, 1
        %s3820 = smul.addr %s3819, 3
        %s3821 = smul.addr %s3820, 8
        %s3822 = scalar_lea.vmem %s59, %s3821
      $region148: #{unet_forward.1} parent=143 // pred_fallthru
        _
    $region144: #{unet_forward.1} parent=5 // pred_fallthru
      _
  $region6: #{unet_forward.1} parent=0 // loop_footer
    %s71 = sadd.s32 1, %s67
  $region7: #{unet_forward.1} parent=0 // loop_footer_branch
    %66 = sbr.rel target = $region3
  $region8: #{unet_forward.1} parent=0 // loop_exit
    _

</llo_original>
